<compile_context>
chip_gen: v7x
topology: tpu7x:2x2x1
jax: 0.10.0
libtpu: 0.0.40
codegen_flags: <defaults>
</compile_context>

<pallas_src>
import math

import jax
import jax.numpy as jnp
from jax import lax
from jax.experimental import pallas as pl
from jax.experimental.pallas import tpu as pltpu


def _sigmoid(z):
    # exp and approximate reciprocal both ride the EUP slot (no f32 divide).
    return pl.reciprocal(1.0 + jnp.exp(-z), approx=True)


def lstm_bidir_kernel(x_ref, wih_ref, whh_ref, b_ref,
                      out_ref, hN_ref, cN_ref,
                      h_sc, c_sc, gx_sc):
    """One (direction, time-block) grid step of a bidirectional LSTM layer.

    Grid = (2, NB): axis 0 = direction (parallel), axis 1 = time blocks
    (arbitrary, carries h/c in VMEM scratch).

    x_ref  : (T_BLK*B, In) bf16   flattened (time-major) inputs of this block
    wih_ref: (In, 4H)      bf16   W_ih^T for this direction
    whh_ref: (H, 4H)       bf16   W_hh^T for this direction
    b_ref  : (1, 4H)       f32    b_ih + b_hh
    out_ref: (T_BLK, B, H) f32/bf16   per-timestep hidden states
    hN_ref : (B, H)        f32    final hidden state (written on last block)
    cN_ref : (B, H)        f32    final cell state
    h_sc/c_sc : VMEM (B, H) f32   recurrent carry across time blocks
    gx_sc     : VMEM (T_BLK, B, 4H) f32  precomputed input-gate contributions
    """
    d = pl.program_id(0)           # 0 = forward, 1 = reverse
    tb = pl.program_id(1)
    T = gx_sc.shape[0]
    B = h_sc.shape[0]
    H = h_sc.shape[1]

    @pl.when(tb == 0)
    def _():
        h_sc[...] = jnp.zeros_like(h_sc)
        c_sc[...] = jnp.zeros_like(c_sc)

    # Input projection for all T timesteps of this block: a single MXU matmul
    # with M = T*B rows (off the serial recurrent path). Bias fused here.
    gx = (jnp.dot(x_ref[...], wih_ref[...], preferred_element_type=jnp.float32)
          + b_ref[...])                                   # (T*B, 4H) f32
    for ti in range(T):                                   # static scatter
        gx_sc[ti] = gx[ti * B:(ti + 1) * B, :]

    w_hh = whh_ref[...]                                   # (H, 4H) bf16

    def step(i, carry):
        h, c = carry
        # within-block time index: forward -> i, reverse -> T-1-i
        tt = i + d * (T - 1 - 2 * i)
        gates = gx_sc[tt] + jnp.dot(h.astype(w_hh.dtype), w_hh,
                                    preferred_element_type=jnp.float32)
        i_g = _sigmoid(gates[:, 0 * H:1 * H])
        f_g = _sigmoid(gates[:, 1 * H:2 * H])
        g_g = jnp.tanh(gates[:, 2 * H:3 * H])
        o_g = _sigmoid(gates[:, 3 * H:4 * H])
        c_new = f_g * c + i_g * g_g
        h_new = o_g * jnp.tanh(c_new)
        out_ref[tt] = h_new.astype(out_ref.dtype)
        return h_new, c_new

    h_fin, c_fin = lax.fori_loop(0, T, step, (h_sc[...], c_sc[...]),
                                 unroll=True)
    h_sc[...] = h_fin
    c_sc[...] = c_fin

    @pl.when(tb == pl.num_programs(1) - 1)
    def _():
        hN_ref[...] = h_fin
        cN_ref[...] = c_fin


def _pick_time_block(S, B, H4, in_dim, max_steps=64, vmem_budget=4 << 20):
    """Largest divisor t of S with t <= cap and (t*B) % 8 == 0, else S (= full).

    cap limits per-block VMEM growth (gx scratch + double-buffered x/out tiles)
    so large sequences still fit comfortably inside the scoped VMEM limit.
    """
    bytes_per_step = B * (4 * H4              # f32 gx scratch
                          + 2 * 2 * in_dim    # bf16 x block, double buffered
                          + 2 * 4 * (H4 // 4))  # out block, double buffered
    cap = max(1, min(S, max_steps, vmem_budget // max(bytes_per_step, 1)))
    for t in range(cap, 0, -1):
        if S % t == 0 and (t * B) % 8 == 0:
            return t
    return S   # fall back to one full-sequence block (block dims == full dims)


def run_bidir_lstm_layer(x_flat, S, B, layer_params, t_blk, out_dtype):
    """x_flat: (S*B, In) time-major flattened.

    Returns (out (2, S, B, H) out_dtype, hN (2, B, H) f32, cN (2, B, H) f32)."""
    (wih_f, whh_f, bih_f, bhh_f), (wih_r, whh_r, bih_r, bhh_r) = layer_params
    In = x_flat.shape[-1]
    H4 = wih_f.shape[0]
    H = H4 // 4
    assert S % t_blk == 0
    NB = S // t_blk

    # Stack the two directions so one pallas_call handles both.
    wihT = jnp.stack([wih_f.T, wih_r.T], axis=0).astype(jnp.bfloat16)  # (2,In,4H)
    whhT = jnp.stack([whh_f.T, whh_r.T], axis=0).astype(jnp.bfloat16)  # (2,H,4H)
    bias = jnp.stack([(bih_f + bhh_f)[None, :],
                      (bih_r + bhh_r)[None, :]], axis=0).astype(jnp.float32)
    xb = x_flat.astype(jnp.bfloat16)

    def tb_map(d, tb):
        # forward: tb ; reverse: NB-1-tb (block-level time reversal via index_map)
        return tb + d * (NB - 1 - 2 * tb)

    out, hN, cN = pl.pallas_call(
        lstm_bidir_kernel,
        out_shape=(jax.ShapeDtypeStruct((2, S, B, H), out_dtype),
                   jax.ShapeDtypeStruct((2, B, H), jnp.float32),
                   jax.ShapeDtypeStruct((2, B, H), jnp.float32)),
        grid_spec=pltpu.PrefetchScalarGridSpec(
            num_scalar_prefetch=0,
            grid=(2, NB),
            in_specs=[
                pl.BlockSpec((t_blk * B, In), lambda d, tb: (tb_map(d, tb), 0)),
                pl.BlockSpec((None, In, H4), lambda d, tb: (d, 0, 0)),
                pl.BlockSpec((None, H, H4), lambda d, tb: (d, 0, 0)),
                pl.BlockSpec((None, 1, H4), lambda d, tb: (d, 0, 0)),
            ],
            out_specs=[
                pl.BlockSpec((None, t_blk, B, H),
                             lambda d, tb: (d, tb_map(d, tb), 0, 0)),
                pl.BlockSpec((None, B, H), lambda d, tb: (d, 0, 0)),
                pl.BlockSpec((None, B, H), lambda d, tb: (d, 0, 0)),
            ],
            scratch_shapes=[
                pltpu.VMEM((B, H), jnp.float32),          # h carry
                pltpu.VMEM((B, H), jnp.float32),          # c carry
                pltpu.VMEM((t_blk, B, H4), jnp.float32),  # precomputed x-gates
            ],
        ),
        compiler_params=pltpu.CompilerParams(
            dimension_semantics=("parallel", "arbitrary")),
    )(xb, wihT, whhT, bias)
    return out, hN, cN


def init_lstm_params(key, embedding_dim, hidden_dim, num_layers):
    """PyTorch-like nn.LSTM init (bidirectional, hidden size hidden_dim // 2)."""
    H = hidden_dim // 2
    k = 1.0 / math.sqrt(H)
    params = []
    for layer in range(num_layers):
        in_dim = embedding_dim if layer == 0 else 2 * H
        layer_dirs = []
        for _direction in range(2):
            key, k1, k2, k3, k4 = jax.random.split(key, 5)
            w_ih = jax.random.uniform(k1, (4 * H, in_dim), jnp.float32, -k, k)
            w_hh = jax.random.uniform(k2, (4 * H, H), jnp.float32, -k, k)
            b_ih = jax.random.uniform(k3, (4 * H,), jnp.float32, -k, k)
            b_hh = jax.random.uniform(k4, (4 * H,), jnp.float32, -k, k)
            layer_dirs.append((w_ih, w_hh, b_ih, b_hh))
        params.append(tuple(layer_dirs))
    return params


def rnn_forward(x, params):
    """Equivalent of Rnn.forward (cell_type='LSTM').

    x: (batch, seq, embedding_dim)   [batch_first, like PyTorch]
    Returns (output (batch, seq, hidden_dim), (h_n, c_n)) with
    h_n, c_n of shape (num_layers*2, batch, hidden_dim // 2).
    """
    B, S, E = x.shape
    x_tm = jnp.transpose(x, (1, 0, 2))            # (S, B, E) time-major (once)
    layer_in = x_tm.reshape(S * B, E).astype(jnp.bfloat16)

    num_layers = len(params)
    h_list, c_list = [], []
    final_cat = None
    for li, layer_params in enumerate(params):
        last = (li == num_layers - 1)
        H4 = layer_params[0][0].shape[0]
        In = layer_in.shape[-1]
        t_blk = _pick_time_block(S, B, H4, In)
        # Intermediate activations go to HBM in bf16 (they feed a bf16 matmul
        # anyway -> identical numerics, half the traffic); last layer is f32.
        out_dtype = jnp.float32 if last else jnp.bfloat16
        out, hN, cN = run_bidir_lstm_layer(layer_in, S, B, layer_params,
                                           t_blk, out_dtype)
        cat = jnp.concatenate([out[0], out[1]], axis=-1)   # (S, B, 2H)
        if last:
            final_cat = cat
        else:
            layer_in = cat.reshape(S * B, cat.shape[-1])
        h_list.extend([hN[0], hN[1]])
        c_list.extend([cN[0], cN[1]])

    output = jnp.transpose(final_cat, (1, 0, 2))  # (B, S, hidden_dim) f32
    h_n = jnp.stack(h_list, axis=0)
    c_n = jnp.stack(c_list, axis=0)
    return output, (h_n, c_n)


def lstm_reference(x, params):
    """Pure-JAX f32 reference with PyTorch nn.LSTM semantics (for validation)."""
    B, S, _ = x.shape
    layer_in = x                                    # (B, S, F)
    h_all, c_all = [], []
    for layer_params in params:
        dir_outs = []
        for d, (w_ih, w_hh, b_ih, b_hh) in enumerate(layer_params):
            H = w_hh.shape[1]
            seq = layer_in[:, ::-1, :] if d == 1 else layer_in
            xs = jnp.transpose(seq, (1, 0, 2))      # (S, B, F)

            def step(carry, xt, w_ih=w_ih, w_hh=w_hh, b_ih=b_ih, b_hh=b_hh, H=H):
                h, c = carry
                g = xt @ w_ih.T + b_ih + h @ w_hh.T + b_hh
                i = jax.nn.sigmoid(g[:, 0 * H:1 * H])
                f = jax.nn.sigmoid(g[:, 1 * H:2 * H])
                gg = jnp.tanh(g[:, 2 * H:3 * H])
                o = jax.nn.sigmoid(g[:, 3 * H:4 * H])
                c = f * c + i * gg
                h = o * jnp.tanh(c)
                return (h, c), h

            (hT, cT), ys = lax.scan(step,
                                    (jnp.zeros((B, H)), jnp.zeros((B, H))), xs)
            ys = jnp.transpose(ys, (1, 0, 2))       # (B, S, H)
            if d == 1:
                ys = ys[:, ::-1, :]
            dir_outs.append(ys)
            h_all.append(hT)
            c_all.append(cT)
        layer_in = jnp.concatenate(dir_outs, axis=-1)
    return layer_in, (jnp.stack(h_all, 0), jnp.stack(c_all, 0))


if __name__ == "__main__":
    # Rnn(cell_type='LSTM', embedding_dim=32, hidden_dim=32, num_layers=2)
    batch, seq, embedding_dim, hidden_dim, num_layers = 2, 8, 32, 32, 2

    key = jax.random.PRNGKey(0)
    key, kx = jax.random.split(key)
    x = jax.random.normal(kx, (batch, seq, embedding_dim), jnp.float32)

    params = init_lstm_params(key, embedding_dim, hidden_dim, num_layers)

    fwd = jax.jit(rnn_forward)
    output, (h_n, c_n) = fwd(x, params)
    jax.block_until_ready((output, h_n, c_n))

    assert output.shape == (batch, seq, hidden_dim)
    assert h_n.shape == (num_layers * 2, batch, hidden_dim // 2)
    assert c_n.shape == (num_layers * 2, batch, hidden_dim // 2)
    assert bool(jnp.all(jnp.isfinite(output)))

    # Validate against a pure-JAX f32 reference (tolerance covers bf16 matmuls
    # and the approximate-reciprocal sigmoid).
    ref_out, (ref_h, ref_c) = lstm_reference(x, params)
    assert float(jnp.max(jnp.abs(output - ref_out))) < 0.15
    assert float(jnp.max(jnp.abs(h_n - ref_h))) < 0.15
    assert float(jnp.max(jnp.abs(c_n - ref_c))) < 0.15

    print("KERNEL_OK")
</pallas_src>

<mosaic_0001>
module attributes {stable_mosaic.version = 11 : i64} {
  func.func @lstm_bidir_kernel(%arg0: i32, %arg1: i32, %arg2: memref<16x32xbf16, #tpu.memory_space<vmem>>, %arg3: memref<1x32x64xbf16, #tpu.memory_space<vmem>>, %arg4: memref<1x16x64xbf16, #tpu.memory_space<vmem>>, %arg5: memref<1x1x64xf32, #tpu.memory_space<vmem>>, %arg6: memref<1x8x2x16xbf16, #tpu.memory_space<vmem>>, %arg7: memref<1x2x16xf32, #tpu.memory_space<vmem>>, %arg8: memref<1x2x16xf32, #tpu.memory_space<vmem>>, %arg9: memref<2x16xf32, #tpu.memory_space<vmem>>, %arg10: memref<2x16xf32, #tpu.memory_space<vmem>>, %arg11: memref<8x2x64xf32, #tpu.memory_space<vmem>>) attributes {dimension_semantics = [#tpu.dimension_semantics<parallel>, #tpu.dimension_semantics<arbitrary>], iteration_bounds = array<i64: 2, 1>, scalar_prefetch = 0 : i64, scratch_operands = 3 : i64, tpu.core_type = #tpu.core_type<tc>, window_params = [{transform_indices = @transform_0, window_bounds = array<i64: 16, 32>}, {transform_indices = @transform_1, window_bounds = array<i64: 1, 32, 64>}, {transform_indices = @transform_2, window_bounds = array<i64: 1, 16, 64>}, {transform_indices = @transform_3, window_bounds = array<i64: 1, 1, 64>}, {transform_indices = @transform_4, window_bounds = array<i64: 1, 8, 2, 16>}, {transform_indices = @transform_5, window_bounds = array<i64: 1, 2, 16>}, {transform_indices = @transform_6, window_bounds = array<i64: 1, 2, 16>}]} {
    %c0_i32 = arith.constant 0 : i32
    %0 = arith.cmpi eq, %arg1, %c0_i32 : i32
    %1 = arith.extui %0 : i1 to i32
    %c0_i32_0 = arith.constant 0 : i32
    %2 = arith.cmpi ne, %1, %c0_i32_0 : i32
    scf.if %2 {
      %cst_151 = arith.constant 0.000000e+00 : f32
      %396 = vector.broadcast %cst_151 : f32 to vector<2x16xf32>
      %c0_152 = arith.constant 0 : index
      %c0_153 = arith.constant 0 : index
      %397 = vector.load %arg9[%c0_152, %c0_153] : memref<2x16xf32, #tpu.memory_space<vmem>>, vector<2x16xf32>
      tpu.vector_store %arg9[%c0_152, %c0_153], %396 {strides = array<i32>} : memref<2x16xf32, #tpu.memory_space<vmem>>, vector<2x16xf32>,
      %cst_154 = arith.constant 0.000000e+00 : f32
      %398 = vector.broadcast %cst_154 : f32 to vector<2x16xf32>
      %c0_155 = arith.constant 0 : index
      %c0_156 = arith.constant 0 : index
      %399 = vector.load %arg10[%c0_155, %c0_156] : memref<2x16xf32, #tpu.memory_space<vmem>>, vector<2x16xf32>
      tpu.vector_store %arg10[%c0_155, %c0_156], %398 {strides = array<i32>} : memref<2x16xf32, #tpu.memory_space<vmem>>, vector<2x16xf32>,
    } else {
    }
    %c0 = arith.constant 0 : index
    %c0_1 = arith.constant 0 : index
    %3 = vector.load %arg2[%c0, %c0_1] : memref<16x32xbf16, #tpu.memory_space<vmem>>, vector<16x32xbf16>
    %c0_2 = arith.constant 0 : index
    %c0_3 = arith.constant 0 : index
    %c0_4 = arith.constant 0 : index
    %4 = vector.load %arg3[%c0_2, %c0_3, %c0_4] : memref<1x32x64xbf16, #tpu.memory_space<vmem>>, vector<1x32x64xbf16>
    %5 = vector.shape_cast %4 : vector<1x32x64xbf16> to vector<32x64xbf16>
    %cst = arith.constant dense<0.000000e+00> : vector<16x64xf32>
    %6 = tpu.matmul %3, %5, %cst {dimension_numbers = #tpu.dot_dimension_numbers<[1], [0], [0], [1], [0, 0, 1, 1], [], []>} : vector<16x32xbf16>, vector<32x64xbf16>, vector<16x64xf32> -> vector<16x64xf32>
    %c0_5 = arith.constant 0 : index
    %c0_6 = arith.constant 0 : index
    %c0_7 = arith.constant 0 : index
    %7 = vector.load %arg5[%c0_5, %c0_6, %c0_7] : memref<1x1x64xf32, #tpu.memory_space<vmem>>, vector<1x1x64xf32>
    %8 = vector.shape_cast %7 : vector<1x1x64xf32> to vector<1x64xf32>
    %9 = vector.broadcast %8 : vector<1x64xf32> to vector<16x64xf32>
    %10 = arith.addf %6, %9 : vector<16x64xf32>
    %11 = vector.extract_strided_slice %10 {offsets = [0, 0], sizes = [2, 64], strides = [1, 1]} : vector<16x64xf32> to vector<2x64xf32>
    %c0_8 = arith.constant 0 : index
    %c0_9 = arith.constant 0 : index
    %c0_10 = arith.constant 0 : index
    %12 = vector.load %arg11[%c0_8, %c0_9, %c0_10] : memref<8x2x64xf32, #tpu.memory_space<vmem>>, vector<1x2x64xf32>
    %13 = vector.shape_cast %12 : vector<1x2x64xf32> to vector<2x64xf32>
    %14 = vector.shape_cast %11 : vector<2x64xf32> to vector<1x2x64xf32>
    tpu.vector_store %arg11[%c0_8, %c0_9, %c0_10], %14 {strides = array<i32>} : memref<8x2x64xf32, #tpu.memory_space<vmem>>, vector<1x2x64xf32>,
    %15 = vector.extract_strided_slice %10 {offsets = [2, 0], sizes = [2, 64], strides = [1, 1]} : vector<16x64xf32> to vector<2x64xf32>
    %c1 = arith.constant 1 : index
    %c0_11 = arith.constant 0 : index
    %c0_12 = arith.constant 0 : index
    %16 = vector.load %arg11[%c1, %c0_11, %c0_12] : memref<8x2x64xf32, #tpu.memory_space<vmem>>, vector<1x2x64xf32>
    %17 = vector.shape_cast %16 : vector<1x2x64xf32> to vector<2x64xf32>
    %18 = vector.shape_cast %15 : vector<2x64xf32> to vector<1x2x64xf32>
    tpu.vector_store %arg11[%c1, %c0_11, %c0_12], %18 {strides = array<i32>} : memref<8x2x64xf32, #tpu.memory_space<vmem>>, vector<1x2x64xf32>,
    %19 = vector.extract_strided_slice %10 {offsets = [4, 0], sizes = [2, 64], strides = [1, 1]} : vector<16x64xf32> to vector<2x64xf32>
    %c2 = arith.constant 2 : index
    %c0_13 = arith.constant 0 : index
    %c0_14 = arith.constant 0 : index
    %20 = vector.load %arg11[%c2, %c0_13, %c0_14] : memref<8x2x64xf32, #tpu.memory_space<vmem>>, vector<1x2x64xf32>
    %21 = vector.shape_cast %20 : vector<1x2x64xf32> to vector<2x64xf32>
    %22 = vector.shape_cast %19 : vector<2x64xf32> to vector<1x2x64xf32>
    tpu.vector_store %arg11[%c2, %c0_13, %c0_14], %22 {strides = array<i32>} : memref<8x2x64xf32, #tpu.memory_space<vmem>>, vector<1x2x64xf32>,
    %23 = vector.extract_strided_slice %10 {offsets = [6, 0], sizes = [2, 64], strides = [1, 1]} : vector<16x64xf32> to vector<2x64xf32>
    %c3 = arith.constant 3 : index
    %c0_15 = arith.constant 0 : index
    %c0_16 = arith.constant 0 : index
    %24 = vector.load %arg11[%c3, %c0_15, %c0_16] : memref<8x2x64xf32, #tpu.memory_space<vmem>>, vector<1x2x64xf32>
    %25 = vector.shape_cast %24 : vector<1x2x64xf32> to vector<2x64xf32>
    %26 = vector.shape_cast %23 : vector<2x64xf32> to vector<1x2x64xf32>
    tpu.vector_store %arg11[%c3, %c0_15, %c0_16], %26 {strides = array<i32>} : memref<8x2x64xf32, #tpu.memory_space<vmem>>, vector<1x2x64xf32>,
    %27 = vector.extract_strided_slice %10 {offsets = [8, 0], sizes = [2, 64], strides = [1, 1]} : vector<16x64xf32> to vector<2x64xf32>
    %c4 = arith.constant 4 : index
    %c0_17 = arith.constant 0 : index
    %c0_18 = arith.constant 0 : index
    %28 = vector.load %arg11[%c4, %c0_17, %c0_18] : memref<8x2x64xf32, #tpu.memory_space<vmem>>, vector<1x2x64xf32>
    %29 = vector.shape_cast %28 : vector<1x2x64xf32> to vector<2x64xf32>
    %30 = vector.shape_cast %27 : vector<2x64xf32> to vector<1x2x64xf32>
    tpu.vector_store %arg11[%c4, %c0_17, %c0_18], %30 {strides = array<i32>} : memref<8x2x64xf32, #tpu.memory_space<vmem>>, vector<1x2x64xf32>,
    %31 = vector.extract_strided_slice %10 {offsets = [10, 0], sizes = [2, 64], strides = [1, 1]} : vector<16x64xf32> to vector<2x64xf32>
    %c5 = arith.constant 5 : index
    %c0_19 = arith.constant 0 : index
    %c0_20 = arith.constant 0 : index
    %32 = vector.load %arg11[%c5, %c0_19, %c0_20] : memref<8x2x64xf32, #tpu.memory_space<vmem>>, vector<1x2x64xf32>
    %33 = vector.shape_cast %32 : vector<1x2x64xf32> to vector<2x64xf32>
    %34 = vector.shape_cast %31 : vector<2x64xf32> to vector<1x2x64xf32>
    tpu.vector_store %arg11[%c5, %c0_19, %c0_20], %34 {strides = array<i32>} : memref<8x2x64xf32, #tpu.memory_space<vmem>>, vector<1x2x64xf32>,
    %35 = vector.extract_strided_slice %10 {offsets = [12, 0], sizes = [2, 64], strides = [1, 1]} : vector<16x64xf32> to vector<2x64xf32>
    %c6 = arith.constant 6 : index
    %c0_21 = arith.constant 0 : index
    %c0_22 = arith.constant 0 : index
    %36 = vector.load %arg11[%c6, %c0_21, %c0_22] : memref<8x2x64xf32, #tpu.memory_space<vmem>>, vector<1x2x64xf32>
    %37 = vector.shape_cast %36 : vector<1x2x64xf32> to vector<2x64xf32>
    %38 = vector.shape_cast %35 : vector<2x64xf32> to vector<1x2x64xf32>
    tpu.vector_store %arg11[%c6, %c0_21, %c0_22], %38 {strides = array<i32>} : memref<8x2x64xf32, #tpu.memory_space<vmem>>, vector<1x2x64xf32>,
    %39 = vector.extract_strided_slice %10 {offsets = [14, 0], sizes = [2, 64], strides = [1, 1]} : vector<16x64xf32> to vector<2x64xf32>
    %c7 = arith.constant 7 : index
    %c0_23 = arith.constant 0 : index
    %c0_24 = arith.constant 0 : index
    %40 = vector.load %arg11[%c7, %c0_23, %c0_24] : memref<8x2x64xf32, #tpu.memory_space<vmem>>, vector<1x2x64xf32>
    %41 = vector.shape_cast %40 : vector<1x2x64xf32> to vector<2x64xf32>
    %42 = vector.shape_cast %39 : vector<2x64xf32> to vector<1x2x64xf32>
    tpu.vector_store %arg11[%c7, %c0_23, %c0_24], %42 {strides = array<i32>} : memref<8x2x64xf32, #tpu.memory_space<vmem>>, vector<1x2x64xf32>,
    %c0_25 = arith.constant 0 : index
    %c0_26 = arith.constant 0 : index
    %c0_27 = arith.constant 0 : index
    %43 = vector.load %arg4[%c0_25, %c0_26, %c0_27] : memref<1x16x64xbf16, #tpu.memory_space<vmem>>, vector<1x16x64xbf16>
    %44 = vector.shape_cast %43 : vector<1x16x64xbf16> to vector<16x64xbf16>
    %c0_28 = arith.constant 0 : index
    %c0_29 = arith.constant 0 : index
    %45 = vector.load %arg9[%c0_28, %c0_29] : memref<2x16xf32, #tpu.memory_space<vmem>>, vector<2x16xf32>
    %c0_30 = arith.constant 0 : index
    %c0_31 = arith.constant 0 : index
    %46 = vector.load %arg10[%c0_30, %c0_31] : memref<2x16xf32, #tpu.memory_space<vmem>>, vector<2x16xf32>
    %c0_i32_32 = arith.constant 0 : i32
    %c2_i32 = arith.constant 2 : i32
    %47 = arith.muli %c2_i32, %c0_i32_32 : i32
    %c7_i32 = arith.constant 7 : i32
    %48 = arith.subi %c7_i32, %47 : i32
    %49 = arith.muli %arg0, %48 : i32
    %50 = arith.addi %c0_i32_32, %49 : i32
    %51 = arith.index_cast %50 : i32 to index
    %c0_33 = arith.constant 0 : index
    %c0_34 = arith.constant 0 : index
    %52 = vector.load %arg11[%51, %c0_33, %c0_34] : memref<8x2x64xf32, #tpu.memory_space<vmem>>, vector<1x2x64xf32>
    %53 = vector.shape_cast %52 : vector<1x2x64xf32> to vector<2x64xf32>
    %54 = arith.truncf %45 : vector<2x16xf32> to vector<2x16xbf16>
    %cst_35 = arith.constant dense<0.000000e+00> : vector<2x64xf32>
    %55 = tpu.matmul %54, %44, %cst_35 {dimension_numbers = #tpu.dot_dimension_numbers<[1], [0], [0], [1], [0, 0, 1, 1], [], []>} : vector<2x16xbf16>, vector<16x64xbf16>, vector<2x64xf32> -> vector<2x64xf32>
    %56 = arith.addf %53, %55 : vector<2x64xf32>
    %57 = vector.extract_strided_slice %56 {offsets = [0, 0], sizes = [2, 16], strides = [1, 1]} : vector<2x64xf32> to vector<2x16xf32>
    %cst_36 = arith.constant 0.000000e+00 : f32
    %58 = vector.broadcast %cst_36 : f32 to vector<2x16xf32>
    %59 = arith.subf %58, %57 : vector<2x16xf32>
    %60 = math.exp %59 : vector<2x16xf32>
    %cst_37 = arith.constant 1.000000e+00 : f32
    %61 = vector.broadcast %cst_37 : f32 to vector<2x16xf32>
    %62 = arith.addf %61, %60 : vector<2x16xf32>
    %63 = tpu.reciprocal %62 {approx = true} : vector<2x16xf32> -> vector<2x16xf32>
    %64 = vector.extract_strided_slice %56 {offsets = [0, 16], sizes = [2, 16], strides = [1, 1]} : vector<2x64xf32> to vector<2x16xf32>
    %cst_38 = arith.constant 0.000000e+00 : f32
    %65 = vector.broadcast %cst_38 : f32 to vector<2x16xf32>
    %66 = arith.subf %65, %64 : vector<2x16xf32>
    %67 = math.exp %66 : vector<2x16xf32>
    %cst_39 = arith.constant 1.000000e+00 : f32
    %68 = vector.broadcast %cst_39 : f32 to vector<2x16xf32>
    %69 = arith.addf %68, %67 : vector<2x16xf32>
    %70 = tpu.reciprocal %69 {approx = true} : vector<2x16xf32> -> vector<2x16xf32>
    %71 = vector.extract_strided_slice %56 {offsets = [0, 32], sizes = [2, 16], strides = [1, 1]} : vector<2x64xf32> to vector<2x16xf32>
    %72 = math.tanh %71 : vector<2x16xf32>
    %73 = vector.extract_strided_slice %56 {offsets = [0, 48], sizes = [2, 16], strides = [1, 1]} : vector<2x64xf32> to vector<2x16xf32>
    %cst_40 = arith.constant 0.000000e+00 : f32
    %74 = vector.broadcast %cst_40 : f32 to vector<2x16xf32>
    %75 = arith.subf %74, %73 : vector<2x16xf32>
    %76 = math.exp %75 : vector<2x16xf32>
    %cst_41 = arith.constant 1.000000e+00 : f32
    %77 = vector.broadcast %cst_41 : f32 to vector<2x16xf32>
    %78 = arith.addf %77, %76 : vector<2x16xf32>
    %79 = tpu.reciprocal %78 {approx = true} : vector<2x16xf32> -> vector<2x16xf32>
    %80 = arith.mulf %70, %46 : vector<2x16xf32>
    %81 = arith.mulf %63, %72 : vector<2x16xf32>
    %82 = arith.addf %80, %81 : vector<2x16xf32>
    %83 = math.tanh %82 : vector<2x16xf32>
    %84 = arith.mulf %79, %83 : vector<2x16xf32>
    %85 = arith.truncf %84 : vector<2x16xf32> to vector<2x16xbf16>
    %c0_42 = arith.constant 0 : index
    %86 = arith.index_cast %50 : i32 to index
    %c0_43 = arith.constant 0 : index
    %c0_44 = arith.constant 0 : index
    %87 = vector.load %arg6[%c0_42, %86, %c0_43, %c0_44] : memref<1x8x2x16xbf16, #tpu.memory_space<vmem>>, vector<1x1x2x16xbf16>
    %88 = vector.shape_cast %87 : vector<1x1x2x16xbf16> to vector<2x16xbf16>
    %89 = vector.shape_cast %85 : vector<2x16xbf16> to vector<1x1x2x16xbf16>
    tpu.vector_store %arg6[%c0_42, %86, %c0_43, %c0_44], %89 {strides = array<i32>} : memref<1x8x2x16xbf16, #tpu.memory_space<vmem>>, vector<1x1x2x16xbf16>,
    %c1_i32 = arith.constant 1 : i32
    %c2_i32_45 = arith.constant 2 : i32
    %90 = arith.muli %c2_i32_45, %c1_i32 : i32
    %c7_i32_46 = arith.constant 7 : i32
    %91 = arith.subi %c7_i32_46, %90 : i32
    %92 = arith.muli %arg0, %91 : i32
    %93 = arith.addi %c1_i32, %92 : i32
    %94 = arith.index_cast %93 : i32 to index
    %c0_47 = arith.constant 0 : index
    %c0_48 = arith.constant 0 : index
    %95 = vector.load %arg11[%94, %c0_47, %c0_48] : memref<8x2x64xf32, #tpu.memory_space<vmem>>, vector<1x2x64xf32>
    %96 = vector.shape_cast %95 : vector<1x2x64xf32> to vector<2x64xf32>
    %97 = arith.truncf %84 : vector<2x16xf32> to vector<2x16xbf16>
    %cst_49 = arith.constant dense<0.000000e+00> : vector<2x64xf32>
    %98 = tpu.matmul %97, %44, %cst_49 {dimension_numbers = #tpu.dot_dimension_numbers<[1], [0], [0], [1], [0, 0, 1, 1], [], []>} : vector<2x16xbf16>, vector<16x64xbf16>, vector<2x64xf32> -> vector<2x64xf32>
    %99 = arith.addf %96, %98 : vector<2x64xf32>
    %100 = vector.extract_strided_slice %99 {offsets = [0, 0], sizes = [2, 16], strides = [1, 1]} : vector<2x64xf32> to vector<2x16xf32>
    %cst_50 = arith.constant 0.000000e+00 : f32
    %101 = vector.broadcast %cst_50 : f32 to vector<2x16xf32>
    %102 = arith.subf %101, %100 : vector<2x16xf32>
    %103 = math.exp %102 : vector<2x16xf32>
    %cst_51 = arith.constant 1.000000e+00 : f32
    %104 = vector.broadcast %cst_51 : f32 to vector<2x16xf32>
    %105 = arith.addf %104, %103 : vector<2x16xf32>
    %106 = tpu.reciprocal %105 {approx = true} : vector<2x16xf32> -> vector<2x16xf32>
    %107 = vector.extract_strided_slice %99 {offsets = [0, 16], sizes = [2, 16], strides = [1, 1]} : vector<2x64xf32> to vector<2x16xf32>
    %cst_52 = arith.constant 0.000000e+00 : f32
    %108 = vector.broadcast %cst_52 : f32 to vector<2x16xf32>
    %109 = arith.subf %108, %107 : vector<2x16xf32>
    %110 = math.exp %109 : vector<2x16xf32>
    %cst_53 = arith.constant 1.000000e+00 : f32
    %111 = vector.broadcast %cst_53 : f32 to vector<2x16xf32>
    %112 = arith.addf %111, %110 : vector<2x16xf32>
    %113 = tpu.reciprocal %112 {approx = true} : vector<2x16xf32> -> vector<2x16xf32>
    %114 = vector.extract_strided_slice %99 {offsets = [0, 32], sizes = [2, 16], strides = [1, 1]} : vector<2x64xf32> to vector<2x16xf32>
    %115 = math.tanh %114 : vector<2x16xf32>
    %116 = vector.extract_strided_slice %99 {offsets = [0, 48], sizes = [2, 16], strides = [1, 1]} : vector<2x64xf32> to vector<2x16xf32>
    %cst_54 = arith.constant 0.000000e+00 : f32
    %117 = vector.broadcast %cst_54 : f32 to vector<2x16xf32>
    %118 = arith.subf %117, %116 : vector<2x16xf32>
    %119 = math.exp %118 : vector<2x16xf32>
    %cst_55 = arith.constant 1.000000e+00 : f32
    %120 = vector.broadcast %cst_55 : f32 to vector<2x16xf32>
    %121 = arith.addf %120, %119 : vector<2x16xf32>
    %122 = tpu.reciprocal %121 {approx = true} : vector<2x16xf32> -> vector<2x16xf32>
    %123 = arith.mulf %113, %82 : vector<2x16xf32>
    %124 = arith.mulf %106, %115 : vector<2x16xf32>
    %125 = arith.addf %123, %124 : vector<2x16xf32>
    %126 = math.tanh %125 : vector<2x16xf32>
    %127 = arith.mulf %122, %126 : vector<2x16xf32>
    %128 = arith.truncf %127 : vector<2x16xf32> to vector<2x16xbf16>
    %c0_56 = arith.constant 0 : index
    %129 = arith.index_cast %93 : i32 to index
    %c0_57 = arith.constant 0 : index
    %c0_58 = arith.constant 0 : index
    %130 = vector.load %arg6[%c0_56, %129, %c0_57, %c0_58] : memref<1x8x2x16xbf16, #tpu.memory_space<vmem>>, vector<1x1x2x16xbf16>
    %131 = vector.shape_cast %130 : vector<1x1x2x16xbf16> to vector<2x16xbf16>
    %132 = vector.shape_cast %128 : vector<2x16xbf16> to vector<1x1x2x16xbf16>
    tpu.vector_store %arg6[%c0_56, %129, %c0_57, %c0_58], %132 {strides = array<i32>} : memref<1x8x2x16xbf16, #tpu.memory_space<vmem>>, vector<1x1x2x16xbf16>,
    %c2_i32_59 = arith.constant 2 : i32
    %c2_i32_60 = arith.constant 2 : i32
    %133 = arith.muli %c2_i32_60, %c2_i32_59 : i32
    %c7_i32_61 = arith.constant 7 : i32
    %134 = arith.subi %c7_i32_61, %133 : i32
    %135 = arith.muli %arg0, %134 : i32
    %136 = arith.addi %c2_i32_59, %135 : i32
    %137 = arith.index_cast %136 : i32 to index
    %c0_62 = arith.constant 0 : index
    %c0_63 = arith.constant 0 : index
    %138 = vector.load %arg11[%137, %c0_62, %c0_63] : memref<8x2x64xf32, #tpu.memory_space<vmem>>, vector<1x2x64xf32>
    %139 = vector.shape_cast %138 : vector<1x2x64xf32> to vector<2x64xf32>
    %140 = arith.truncf %127 : vector<2x16xf32> to vector<2x16xbf16>
    %cst_64 = arith.constant dense<0.000000e+00> : vector<2x64xf32>
    %141 = tpu.matmul %140, %44, %cst_64 {dimension_numbers = #tpu.dot_dimension_numbers<[1], [0], [0], [1], [0, 0, 1, 1], [], []>} : vector<2x16xbf16>, vector<16x64xbf16>, vector<2x64xf32> -> vector<2x64xf32>
    %142 = arith.addf %139, %141 : vector<2x64xf32>
    %143 = vector.extract_strided_slice %142 {offsets = [0, 0], sizes = [2, 16], strides = [1, 1]} : vector<2x64xf32> to vector<2x16xf32>
    %cst_65 = arith.constant 0.000000e+00 : f32
    %144 = vector.broadcast %cst_65 : f32 to vector<2x16xf32>
    %145 = arith.subf %144, %143 : vector<2x16xf32>
    %146 = math.exp %145 : vector<2x16xf32>
    %cst_66 = arith.constant 1.000000e+00 : f32
    %147 = vector.broadcast %cst_66 : f32 to vector<2x16xf32>
    %148 = arith.addf %147, %146 : vector<2x16xf32>
    %149 = tpu.reciprocal %148 {approx = true} : vector<2x16xf32> -> vector<2x16xf32>
    %150 = vector.extract_strided_slice %142 {offsets = [0, 16], sizes = [2, 16], strides = [1, 1]} : vector<2x64xf32> to vector<2x16xf32>
    %cst_67 = arith.constant 0.000000e+00 : f32
    %151 = vector.broadcast %cst_67 : f32 to vector<2x16xf32>
    %152 = arith.subf %151, %150 : vector<2x16xf32>
    %153 = math.exp %152 : vector<2x16xf32>
    %cst_68 = arith.constant 1.000000e+00 : f32
    %154 = vector.broadcast %cst_68 : f32 to vector<2x16xf32>
    %155 = arith.addf %154, %153 : vector<2x16xf32>
    %156 = tpu.reciprocal %155 {approx = true} : vector<2x16xf32> -> vector<2x16xf32>
    %157 = vector.extract_strided_slice %142 {offsets = [0, 32], sizes = [2, 16], strides = [1, 1]} : vector<2x64xf32> to vector<2x16xf32>
    %158 = math.tanh %157 : vector<2x16xf32>
    %159 = vector.extract_strided_slice %142 {offsets = [0, 48], sizes = [2, 16], strides = [1, 1]} : vector<2x64xf32> to vector<2x16xf32>
    %cst_69 = arith.constant 0.000000e+00 : f32
    %160 = vector.broadcast %cst_69 : f32 to vector<2x16xf32>
    %161 = arith.subf %160, %159 : vector<2x16xf32>
    %162 = math.exp %161 : vector<2x16xf32>
    %cst_70 = arith.constant 1.000000e+00 : f32
    %163 = vector.broadcast %cst_70 : f32 to vector<2x16xf32>
    %164 = arith.addf %163, %162 : vector<2x16xf32>
    %165 = tpu.reciprocal %164 {approx = true} : vector<2x16xf32> -> vector<2x16xf32>
    %166 = arith.mulf %156, %125 : vector<2x16xf32>
    %167 = arith.mulf %149, %158 : vector<2x16xf32>
    %168 = arith.addf %166, %167 : vector<2x16xf32>
    %169 = math.tanh %168 : vector<2x16xf32>
    %170 = arith.mulf %165, %169 : vector<2x16xf32>
    %171 = arith.truncf %170 : vector<2x16xf32> to vector<2x16xbf16>
    %c0_71 = arith.constant 0 : index
    %172 = arith.index_cast %136 : i32 to index
    %c0_72 = arith.constant 0 : index
    %c0_73 = arith.constant 0 : index
    %173 = vector.load %arg6[%c0_71, %172, %c0_72, %c0_73] : memref<1x8x2x16xbf16, #tpu.memory_space<vmem>>, vector<1x1x2x16xbf16>
    %174 = vector.shape_cast %173 : vector<1x1x2x16xbf16> to vector<2x16xbf16>
    %175 = vector.shape_cast %171 : vector<2x16xbf16> to vector<1x1x2x16xbf16>
    tpu.vector_store %arg6[%c0_71, %172, %c0_72, %c0_73], %175 {strides = array<i32>} : memref<1x8x2x16xbf16, #tpu.memory_space<vmem>>, vector<1x1x2x16xbf16>,
    %c3_i32 = arith.constant 3 : i32
    %c2_i32_74 = arith.constant 2 : i32
    %176 = arith.muli %c2_i32_74, %c3_i32 : i32
    %c7_i32_75 = arith.constant 7 : i32
    %177 = arith.subi %c7_i32_75, %176 : i32
    %178 = arith.muli %arg0, %177 : i32
    %179 = arith.addi %c3_i32, %178 : i32
    %180 = arith.index_cast %179 : i32 to index
    %c0_76 = arith.constant 0 : index
    %c0_77 = arith.constant 0 : index
    %181 = vector.load %arg11[%180, %c0_76, %c0_77] : memref<8x2x64xf32, #tpu.memory_space<vmem>>, vector<1x2x64xf32>
    %182 = vector.shape_cast %181 : vector<1x2x64xf32> to vector<2x64xf32>
    %183 = arith.truncf %170 : vector<2x16xf32> to vector<2x16xbf16>
    %cst_78 = arith.constant dense<0.000000e+00> : vector<2x64xf32>
    %184 = tpu.matmul %183, %44, %cst_78 {dimension_numbers = #tpu.dot_dimension_numbers<[1], [0], [0], [1], [0, 0, 1, 1], [], []>} : vector<2x16xbf16>, vector<16x64xbf16>, vector<2x64xf32> -> vector<2x64xf32>
    %185 = arith.addf %182, %184 : vector<2x64xf32>
    %186 = vector.extract_strided_slice %185 {offsets = [0, 0], sizes = [2, 16], strides = [1, 1]} : vector<2x64xf32> to vector<2x16xf32>
    %cst_79 = arith.constant 0.000000e+00 : f32
    %187 = vector.broadcast %cst_79 : f32 to vector<2x16xf32>
    %188 = arith.subf %187, %186 : vector<2x16xf32>
    %189 = math.exp %188 : vector<2x16xf32>
    %cst_80 = arith.constant 1.000000e+00 : f32
    %190 = vector.broadcast %cst_80 : f32 to vector<2x16xf32>
    %191 = arith.addf %190, %189 : vector<2x16xf32>
    %192 = tpu.reciprocal %191 {approx = true} : vector<2x16xf32> -> vector<2x16xf32>
    %193 = vector.extract_strided_slice %185 {offsets = [0, 16], sizes = [2, 16], strides = [1, 1]} : vector<2x64xf32> to vector<2x16xf32>
    %cst_81 = arith.constant 0.000000e+00 : f32
    %194 = vector.broadcast %cst_81 : f32 to vector<2x16xf32>
    %195 = arith.subf %194, %193 : vector<2x16xf32>
    %196 = math.exp %195 : vector<2x16xf32>
    %cst_82 = arith.constant 1.000000e+00 : f32
    %197 = vector.broadcast %cst_82 : f32 to vector<2x16xf32>
    %198 = arith.addf %197, %196 : vector<2x16xf32>
    %199 = tpu.reciprocal %198 {approx = true} : vector<2x16xf32> -> vector<2x16xf32>
    %200 = vector.extract_strided_slice %185 {offsets = [0, 32], sizes = [2, 16], strides = [1, 1]} : vector<2x64xf32> to vector<2x16xf32>
    %201 = math.tanh %200 : vector<2x16xf32>
    %202 = vector.extract_strided_slice %185 {offsets = [0, 48], sizes = [2, 16], strides = [1, 1]} : vector<2x64xf32> to vector<2x16xf32>
    %cst_83 = arith.constant 0.000000e+00 : f32
    %203 = vector.broadcast %cst_83 : f32 to vector<2x16xf32>
    %204 = arith.subf %203, %202 : vector<2x16xf32>
    %205 = math.exp %204 : vector<2x16xf32>
    %cst_84 = arith.constant 1.000000e+00 : f32
    %206 = vector.broadcast %cst_84 : f32 to vector<2x16xf32>
    %207 = arith.addf %206, %205 : vector<2x16xf32>
    %208 = tpu.reciprocal %207 {approx = true} : vector<2x16xf32> -> vector<2x16xf32>
    %209 = arith.mulf %199, %168 : vector<2x16xf32>
    %210 = arith.mulf %192, %201 : vector<2x16xf32>
    %211 = arith.addf %209, %210 : vector<2x16xf32>
    %212 = math.tanh %211 : vector<2x16xf32>
    %213 = arith.mulf %208, %212 : vector<2x16xf32>
    %214 = arith.truncf %213 : vector<2x16xf32> to vector<2x16xbf16>
    %c0_85 = arith.constant 0 : index
    %215 = arith.index_cast %179 : i32 to index
    %c0_86 = arith.constant 0 : index
    %c0_87 = arith.constant 0 : index
    %216 = vector.load %arg6[%c0_85, %215, %c0_86, %c0_87] : memref<1x8x2x16xbf16, #tpu.memory_space<vmem>>, vector<1x1x2x16xbf16>
    %217 = vector.shape_cast %216 : vector<1x1x2x16xbf16> to vector<2x16xbf16>
    %218 = vector.shape_cast %214 : vector<2x16xbf16> to vector<1x1x2x16xbf16>
    tpu.vector_store %arg6[%c0_85, %215, %c0_86, %c0_87], %218 {strides = array<i32>} : memref<1x8x2x16xbf16, #tpu.memory_space<vmem>>, vector<1x1x2x16xbf16>,
    %c4_i32 = arith.constant 4 : i32
    %c2_i32_88 = arith.constant 2 : i32
    %219 = arith.muli %c2_i32_88, %c4_i32 : i32
    %c7_i32_89 = arith.constant 7 : i32
    %220 = arith.subi %c7_i32_89, %219 : i32
    %221 = arith.muli %arg0, %220 : i32
    %222 = arith.addi %c4_i32, %221 : i32
    %223 = arith.index_cast %222 : i32 to index
    %c0_90 = arith.constant 0 : index
    %c0_91 = arith.constant 0 : index
    %224 = vector.load %arg11[%223, %c0_90, %c0_91] : memref<8x2x64xf32, #tpu.memory_space<vmem>>, vector<1x2x64xf32>
    %225 = vector.shape_cast %224 : vector<1x2x64xf32> to vector<2x64xf32>
    %226 = arith.truncf %213 : vector<2x16xf32> to vector<2x16xbf16>
    %cst_92 = arith.constant dense<0.000000e+00> : vector<2x64xf32>
    %227 = tpu.matmul %226, %44, %cst_92 {dimension_numbers = #tpu.dot_dimension_numbers<[1], [0], [0], [1], [0, 0, 1, 1], [], []>} : vector<2x16xbf16>, vector<16x64xbf16>, vector<2x64xf32> -> vector<2x64xf32>
    %228 = arith.addf %225, %227 : vector<2x64xf32>
    %229 = vector.extract_strided_slice %228 {offsets = [0, 0], sizes = [2, 16], strides = [1, 1]} : vector<2x64xf32> to vector<2x16xf32>
    %cst_93 = arith.constant 0.000000e+00 : f32
    %230 = vector.broadcast %cst_93 : f32 to vector<2x16xf32>
    %231 = arith.subf %230, %229 : vector<2x16xf32>
    %232 = math.exp %231 : vector<2x16xf32>
    %cst_94 = arith.constant 1.000000e+00 : f32
    %233 = vector.broadcast %cst_94 : f32 to vector<2x16xf32>
    %234 = arith.addf %233, %232 : vector<2x16xf32>
    %235 = tpu.reciprocal %234 {approx = true} : vector<2x16xf32> -> vector<2x16xf32>
    %236 = vector.extract_strided_slice %228 {offsets = [0, 16], sizes = [2, 16], strides = [1, 1]} : vector<2x64xf32> to vector<2x16xf32>
    %cst_95 = arith.constant 0.000000e+00 : f32
    %237 = vector.broadcast %cst_95 : f32 to vector<2x16xf32>
    %238 = arith.subf %237, %236 : vector<2x16xf32>
    %239 = math.exp %238 : vector<2x16xf32>
    %cst_96 = arith.constant 1.000000e+00 : f32
    %240 = vector.broadcast %cst_96 : f32 to vector<2x16xf32>
    %241 = arith.addf %240, %239 : vector<2x16xf32>
    %242 = tpu.reciprocal %241 {approx = true} : vector<2x16xf32> -> vector<2x16xf32>
    %243 = vector.extract_strided_slice %228 {offsets = [0, 32], sizes = [2, 16], strides = [1, 1]} : vector<2x64xf32> to vector<2x16xf32>
    %244 = math.tanh %243 : vector<2x16xf32>
    %245 = vector.extract_strided_slice %228 {offsets = [0, 48], sizes = [2, 16], strides = [1, 1]} : vector<2x64xf32> to vector<2x16xf32>
    %cst_97 = arith.constant 0.000000e+00 : f32
    %246 = vector.broadcast %cst_97 : f32 to vector<2x16xf32>
    %247 = arith.subf %246, %245 : vector<2x16xf32>
    %248 = math.exp %247 : vector<2x16xf32>
    %cst_98 = arith.constant 1.000000e+00 : f32
    %249 = vector.broadcast %cst_98 : f32 to vector<2x16xf32>
    %250 = arith.addf %249, %248 : vector<2x16xf32>
    %251 = tpu.reciprocal %250 {approx = true} : vector<2x16xf32> -> vector<2x16xf32>
    %252 = arith.mulf %242, %211 : vector<2x16xf32>
    %253 = arith.mulf %235, %244 : vector<2x16xf32>
    %254 = arith.addf %252, %253 : vector<2x16xf32>
    %255 = math.tanh %254 : vector<2x16xf32>
    %256 = arith.mulf %251, %255 : vector<2x16xf32>
    %257 = arith.truncf %256 : vector<2x16xf32> to vector<2x16xbf16>
    %c0_99 = arith.constant 0 : index
    %258 = arith.index_cast %222 : i32 to index
    %c0_100 = arith.constant 0 : index
    %c0_101 = arith.constant 0 : index
    %259 = vector.load %arg6[%c0_99, %258, %c0_100, %c0_101] : memref<1x8x2x16xbf16, #tpu.memory_space<vmem>>, vector<1x1x2x16xbf16>
    %260 = vector.shape_cast %259 : vector<1x1x2x16xbf16> to vector<2x16xbf16>
    %261 = vector.shape_cast %257 : vector<2x16xbf16> to vector<1x1x2x16xbf16>
    tpu.vector_store %arg6[%c0_99, %258, %c0_100, %c0_101], %261 {strides = array<i32>} : memref<1x8x2x16xbf16, #tpu.memory_space<vmem>>, vector<1x1x2x16xbf16>,
    %c5_i32 = arith.constant 5 : i32
    %c2_i32_102 = arith.constant 2 : i32
    %262 = arith.muli %c2_i32_102, %c5_i32 : i32
    %c7_i32_103 = arith.constant 7 : i32
    %263 = arith.subi %c7_i32_103, %262 : i32
    %264 = arith.muli %arg0, %263 : i32
    %265 = arith.addi %c5_i32, %264 : i32
    %266 = arith.index_cast %265 : i32 to index
    %c0_104 = arith.constant 0 : index
    %c0_105 = arith.constant 0 : index
    %267 = vector.load %arg11[%266, %c0_104, %c0_105] : memref<8x2x64xf32, #tpu.memory_space<vmem>>, vector<1x2x64xf32>
    %268 = vector.shape_cast %267 : vector<1x2x64xf32> to vector<2x64xf32>
    %269 = arith.truncf %256 : vector<2x16xf32> to vector<2x16xbf16>
    %cst_106 = arith.constant dense<0.000000e+00> : vector<2x64xf32>
    %270 = tpu.matmul %269, %44, %cst_106 {dimension_numbers = #tpu.dot_dimension_numbers<[1], [0], [0], [1], [0, 0, 1, 1], [], []>} : vector<2x16xbf16>, vector<16x64xbf16>, vector<2x64xf32> -> vector<2x64xf32>
    %271 = arith.addf %268, %270 : vector<2x64xf32>
    %272 = vector.extract_strided_slice %271 {offsets = [0, 0], sizes = [2, 16], strides = [1, 1]} : vector<2x64xf32> to vector<2x16xf32>
    %cst_107 = arith.constant 0.000000e+00 : f32
    %273 = vector.broadcast %cst_107 : f32 to vector<2x16xf32>
    %274 = arith.subf %273, %272 : vector<2x16xf32>
    %275 = math.exp %274 : vector<2x16xf32>
    %cst_108 = arith.constant 1.000000e+00 : f32
    %276 = vector.broadcast %cst_108 : f32 to vector<2x16xf32>
    %277 = arith.addf %276, %275 : vector<2x16xf32>
    %278 = tpu.reciprocal %277 {approx = true} : vector<2x16xf32> -> vector<2x16xf32>
    %279 = vector.extract_strided_slice %271 {offsets = [0, 16], sizes = [2, 16], strides = [1, 1]} : vector<2x64xf32> to vector<2x16xf32>
    %cst_109 = arith.constant 0.000000e+00 : f32
    %280 = vector.broadcast %cst_109 : f32 to vector<2x16xf32>
    %281 = arith.subf %280, %279 : vector<2x16xf32>
    %282 = math.exp %281 : vector<2x16xf32>
    %cst_110 = arith.constant 1.000000e+00 : f32
    %283 = vector.broadcast %cst_110 : f32 to vector<2x16xf32>
    %284 = arith.addf %283, %282 : vector<2x16xf32>
    %285 = tpu.reciprocal %284 {approx = true} : vector<2x16xf32> -> vector<2x16xf32>
    %286 = vector.extract_strided_slice %271 {offsets = [0, 32], sizes = [2, 16], strides = [1, 1]} : vector<2x64xf32> to vector<2x16xf32>
    %287 = math.tanh %286 : vector<2x16xf32>
    %288 = vector.extract_strided_slice %271 {offsets = [0, 48], sizes = [2, 16], strides = [1, 1]} : vector<2x64xf32> to vector<2x16xf32>
    %cst_111 = arith.constant 0.000000e+00 : f32
    %289 = vector.broadcast %cst_111 : f32 to vector<2x16xf32>
    %290 = arith.subf %289, %288 : vector<2x16xf32>
    %291 = math.exp %290 : vector<2x16xf32>
    %cst_112 = arith.constant 1.000000e+00 : f32
    %292 = vector.broadcast %cst_112 : f32 to vector<2x16xf32>
    %293 = arith.addf %292, %291 : vector<2x16xf32>
    %294 = tpu.reciprocal %293 {approx = true} : vector<2x16xf32> -> vector<2x16xf32>
    %295 = arith.mulf %285, %254 : vector<2x16xf32>
    %296 = arith.mulf %278, %287 : vector<2x16xf32>
    %297 = arith.addf %295, %296 : vector<2x16xf32>
    %298 = math.tanh %297 : vector<2x16xf32>
    %299 = arith.mulf %294, %298 : vector<2x16xf32>
    %300 = arith.truncf %299 : vector<2x16xf32> to vector<2x16xbf16>
    %c0_113 = arith.constant 0 : index
    %301 = arith.index_cast %265 : i32 to index
    %c0_114 = arith.constant 0 : index
    %c0_115 = arith.constant 0 : index
    %302 = vector.load %arg6[%c0_113, %301, %c0_114, %c0_115] : memref<1x8x2x16xbf16, #tpu.memory_space<vmem>>, vector<1x1x2x16xbf16>
    %303 = vector.shape_cast %302 : vector<1x1x2x16xbf16> to vector<2x16xbf16>
    %304 = vector.shape_cast %300 : vector<2x16xbf16> to vector<1x1x2x16xbf16>
    tpu.vector_store %arg6[%c0_113, %301, %c0_114, %c0_115], %304 {strides = array<i32>} : memref<1x8x2x16xbf16, #tpu.memory_space<vmem>>, vector<1x1x2x16xbf16>,
    %c6_i32 = arith.constant 6 : i32
    %c2_i32_116 = arith.constant 2 : i32
    %305 = arith.muli %c2_i32_116, %c6_i32 : i32
    %c7_i32_117 = arith.constant 7 : i32
    %306 = arith.subi %c7_i32_117, %305 : i32
    %307 = arith.muli %arg0, %306 : i32
    %308 = arith.addi %c6_i32, %307 : i32
    %309 = arith.index_cast %308 : i32 to index
    %c0_118 = arith.constant 0 : index
    %c0_119 = arith.constant 0 : index
    %310 = vector.load %arg11[%309, %c0_118, %c0_119] : memref<8x2x64xf32, #tpu.memory_space<vmem>>, vector<1x2x64xf32>
    %311 = vector.shape_cast %310 : vector<1x2x64xf32> to vector<2x64xf32>
    %312 = arith.truncf %299 : vector<2x16xf32> to vector<2x16xbf16>
    %cst_120 = arith.constant dense<0.000000e+00> : vector<2x64xf32>
    %313 = tpu.matmul %312, %44, %cst_120 {dimension_numbers = #tpu.dot_dimension_numbers<[1], [0], [0], [1], [0, 0, 1, 1], [], []>} : vector<2x16xbf16>, vector<16x64xbf16>, vector<2x64xf32> -> vector<2x64xf32>
    %314 = arith.addf %311, %313 : vector<2x64xf32>
    %315 = vector.extract_strided_slice %314 {offsets = [0, 0], sizes = [2, 16], strides = [1, 1]} : vector<2x64xf32> to vector<2x16xf32>
    %cst_121 = arith.constant 0.000000e+00 : f32
    %316 = vector.broadcast %cst_121 : f32 to vector<2x16xf32>
    %317 = arith.subf %316, %315 : vector<2x16xf32>
    %318 = math.exp %317 : vector<2x16xf32>
    %cst_122 = arith.constant 1.000000e+00 : f32
    %319 = vector.broadcast %cst_122 : f32 to vector<2x16xf32>
    %320 = arith.addf %319, %318 : vector<2x16xf32>
    %321 = tpu.reciprocal %320 {approx = true} : vector<2x16xf32> -> vector<2x16xf32>
    %322 = vector.extract_strided_slice %314 {offsets = [0, 16], sizes = [2, 16], strides = [1, 1]} : vector<2x64xf32> to vector<2x16xf32>
    %cst_123 = arith.constant 0.000000e+00 : f32
    %323 = vector.broadcast %cst_123 : f32 to vector<2x16xf32>
    %324 = arith.subf %323, %322 : vector<2x16xf32>
    %325 = math.exp %324 : vector<2x16xf32>
    %cst_124 = arith.constant 1.000000e+00 : f32
    %326 = vector.broadcast %cst_124 : f32 to vector<2x16xf32>
    %327 = arith.addf %326, %325 : vector<2x16xf32>
    %328 = tpu.reciprocal %327 {approx = true} : vector<2x16xf32> -> vector<2x16xf32>
    %329 = vector.extract_strided_slice %314 {offsets = [0, 32], sizes = [2, 16], strides = [1, 1]} : vector<2x64xf32> to vector<2x16xf32>
    %330 = math.tanh %329 : vector<2x16xf32>
    %331 = vector.extract_strided_slice %314 {offsets = [0, 48], sizes = [2, 16], strides = [1, 1]} : vector<2x64xf32> to vector<2x16xf32>
    %cst_125 = arith.constant 0.000000e+00 : f32
    %332 = vector.broadcast %cst_125 : f32 to vector<2x16xf32>
    %333 = arith.subf %332, %331 : vector<2x16xf32>
    %334 = math.exp %333 : vector<2x16xf32>
    %cst_126 = arith.constant 1.000000e+00 : f32
    %335 = vector.broadcast %cst_126 : f32 to vector<2x16xf32>
    %336 = arith.addf %335, %334 : vector<2x16xf32>
    %337 = tpu.reciprocal %336 {approx = true} : vector<2x16xf32> -> vector<2x16xf32>
    %338 = arith.mulf %328, %297 : vector<2x16xf32>
    %339 = arith.mulf %321, %330 : vector<2x16xf32>
    %340 = arith.addf %338, %339 : vector<2x16xf32>
    %341 = math.tanh %340 : vector<2x16xf32>
    %342 = arith.mulf %337, %341 : vector<2x16xf32>
    %343 = arith.truncf %342 : vector<2x16xf32> to vector<2x16xbf16>
    %c0_127 = arith.constant 0 : index
    %344 = arith.index_cast %308 : i32 to index
    %c0_128 = arith.constant 0 : index
    %c0_129 = arith.constant 0 : index
    %345 = vector.load %arg6[%c0_127, %344, %c0_128, %c0_129] : memref<1x8x2x16xbf16, #tpu.memory_space<vmem>>, vector<1x1x2x16xbf16>
    %346 = vector.shape_cast %345 : vector<1x1x2x16xbf16> to vector<2x16xbf16>
    %347 = vector.shape_cast %343 : vector<2x16xbf16> to vector<1x1x2x16xbf16>
    tpu.vector_store %arg6[%c0_127, %344, %c0_128, %c0_129], %347 {strides = array<i32>} : memref<1x8x2x16xbf16, #tpu.memory_space<vmem>>, vector<1x1x2x16xbf16>,
    %c7_i32_130 = arith.constant 7 : i32
    %c2_i32_131 = arith.constant 2 : i32
    %348 = arith.muli %c2_i32_131, %c7_i32_130 : i32
    %c7_i32_132 = arith.constant 7 : i32
    %349 = arith.subi %c7_i32_132, %348 : i32
    %350 = arith.muli %arg0, %349 : i32
    %351 = arith.addi %c7_i32_130, %350 : i32
    %352 = arith.index_cast %351 : i32 to index
    %c0_133 = arith.constant 0 : index
    %c0_134 = arith.constant 0 : index
    %353 = vector.load %arg11[%352, %c0_133, %c0_134] : memref<8x2x64xf32, #tpu.memory_space<vmem>>, vector<1x2x64xf32>
    %354 = vector.shape_cast %353 : vector<1x2x64xf32> to vector<2x64xf32>
    %355 = arith.truncf %342 : vector<2x16xf32> to vector<2x16xbf16>
    %cst_135 = arith.constant dense<0.000000e+00> : vector<2x64xf32>
    %356 = tpu.matmul %355, %44, %cst_135 {dimension_numbers = #tpu.dot_dimension_numbers<[1], [0], [0], [1], [0, 0, 1, 1], [], []>} : vector<2x16xbf16>, vector<16x64xbf16>, vector<2x64xf32> -> vector<2x64xf32>
    %357 = arith.addf %354, %356 : vector<2x64xf32>
    %358 = vector.extract_strided_slice %357 {offsets = [0, 0], sizes = [2, 16], strides = [1, 1]} : vector<2x64xf32> to vector<2x16xf32>
    %cst_136 = arith.constant 0.000000e+00 : f32
    %359 = vector.broadcast %cst_136 : f32 to vector<2x16xf32>
    %360 = arith.subf %359, %358 : vector<2x16xf32>
    %361 = math.exp %360 : vector<2x16xf32>
    %cst_137 = arith.constant 1.000000e+00 : f32
    %362 = vector.broadcast %cst_137 : f32 to vector<2x16xf32>
    %363 = arith.addf %362, %361 : vector<2x16xf32>
    %364 = tpu.reciprocal %363 {approx = true} : vector<2x16xf32> -> vector<2x16xf32>
    %365 = vector.extract_strided_slice %357 {offsets = [0, 16], sizes = [2, 16], strides = [1, 1]} : vector<2x64xf32> to vector<2x16xf32>
    %cst_138 = arith.constant 0.000000e+00 : f32
    %366 = vector.broadcast %cst_138 : f32 to vector<2x16xf32>
    %367 = arith.subf %366, %365 : vector<2x16xf32>
    %368 = math.exp %367 : vector<2x16xf32>
    %cst_139 = arith.constant 1.000000e+00 : f32
    %369 = vector.broadcast %cst_139 : f32 to vector<2x16xf32>
    %370 = arith.addf %369, %368 : vector<2x16xf32>
    %371 = tpu.reciprocal %370 {approx = true} : vector<2x16xf32> -> vector<2x16xf32>
    %372 = vector.extract_strided_slice %357 {offsets = [0, 32], sizes = [2, 16], strides = [1, 1]} : vector<2x64xf32> to vector<2x16xf32>
    %373 = math.tanh %372 : vector<2x16xf32>
    %374 = vector.extract_strided_slice %357 {offsets = [0, 48], sizes = [2, 16], strides = [1, 1]} : vector<2x64xf32> to vector<2x16xf32>
    %cst_140 = arith.constant 0.000000e+00 : f32
    %375 = vector.broadcast %cst_140 : f32 to vector<2x16xf32>
    %376 = arith.subf %375, %374 : vector<2x16xf32>
    %377 = math.exp %376 : vector<2x16xf32>
    %cst_141 = arith.constant 1.000000e+00 : f32
    %378 = vector.broadcast %cst_141 : f32 to vector<2x16xf32>
    %379 = arith.addf %378, %377 : vector<2x16xf32>
    %380 = tpu.reciprocal %379 {approx = true} : vector<2x16xf32> -> vector<2x16xf32>
    %381 = arith.mulf %371, %340 : vector<2x16xf32>
    %382 = arith.mulf %364, %373 : vector<2x16xf32>
    %383 = arith.addf %381, %382 : vector<2x16xf32>
    %384 = math.tanh %383 : vector<2x16xf32>
    %385 = arith.mulf %380, %384 : vector<2x16xf32>
    %386 = arith.truncf %385 : vector<2x16xf32> to vector<2x16xbf16>
    %c0_142 = arith.constant 0 : index
    %387 = arith.index_cast %351 : i32 to index
    %c0_143 = arith.constant 0 : index
    %c0_144 = arith.constant 0 : index
    %388 = vector.load %arg6[%c0_142, %387, %c0_143, %c0_144] : memref<1x8x2x16xbf16, #tpu.memory_space<vmem>>, vector<1x1x2x16xbf16>
    %389 = vector.shape_cast %388 : vector<1x1x2x16xbf16> to vector<2x16xbf16>
    %390 = vector.shape_cast %386 : vector<2x16xbf16> to vector<1x1x2x16xbf16>
    tpu.vector_store %arg6[%c0_142, %387, %c0_143, %c0_144], %390 {strides = array<i32>} : memref<1x8x2x16xbf16, #tpu.memory_space<vmem>>, vector<1x1x2x16xbf16>,
    %c8_i32 = arith.constant 8 : i32
    %c0_145 = arith.constant 0 : index
    %c0_146 = arith.constant 0 : index
    %391 = vector.load %arg9[%c0_145, %c0_146] : memref<2x16xf32, #tpu.memory_space<vmem>>, vector<2x16xf32>
    tpu.vector_store %arg9[%c0_145, %c0_146], %385 {strides = array<i32>} : memref<2x16xf32, #tpu.memory_space<vmem>>, vector<2x16xf32>,
    %c0_147 = arith.constant 0 : index
    %c0_148 = arith.constant 0 : index
    %392 = vector.load %arg10[%c0_147, %c0_148] : memref<2x16xf32, #tpu.memory_space<vmem>>, vector<2x16xf32>
    tpu.vector_store %arg10[%c0_147, %c0_148], %383 {strides = array<i32>} : memref<2x16xf32, #tpu.memory_space<vmem>>, vector<2x16xf32>,
    %c0_i32_149 = arith.constant 0 : i32
    %393 = arith.cmpi eq, %arg1, %c0_i32_149 : i32
    %394 = arith.extui %393 : i1 to i32
    %c0_i32_150 = arith.constant 0 : i32
    %395 = arith.cmpi ne, %394, %c0_i32_150 : i32
    scf.if %395 {
      %c0_151 = arith.constant 0 : index
      %c0_152 = arith.constant 0 : index
      %c0_153 = arith.constant 0 : index
      %396 = vector.load %arg7[%c0_151, %c0_152, %c0_153] : memref<1x2x16xf32, #tpu.memory_space<vmem>>, vector<1x2x16xf32>
      %397 = vector.shape_cast %396 : vector<1x2x16xf32> to vector<2x16xf32>
      %398 = vector.shape_cast %385 : vector<2x16xf32> to vector<1x2x16xf32>
      tpu.vector_store %arg7[%c0_151, %c0_152, %c0_153], %398 {strides = array<i32>} : memref<1x2x16xf32, #tpu.memory_space<vmem>>, vector<1x2x16xf32>,
      %c0_154 = arith.constant 0 : index
      %c0_155 = arith.constant 0 : index
      %c0_156 = arith.constant 0 : index
      %399 = vector.load %arg8[%c0_154, %c0_155, %c0_156] : memref<1x2x16xf32, #tpu.memory_space<vmem>>, vector<1x2x16xf32>
      %400 = vector.shape_cast %399 : vector<1x2x16xf32> to vector<2x16xf32>
      %401 = vector.shape_cast %383 : vector<2x16xf32> to vector<1x2x16xf32>
      tpu.vector_store %arg8[%c0_154, %c0_155, %c0_156], %401 {strides = array<i32>} : memref<1x2x16xf32, #tpu.memory_space<vmem>>, vector<1x2x16xf32>,
    } else {
    }
    return
  }
  func.func @transform_0(%arg0: i32, %arg1: i32) -> (i32, i32) {
    %c2_i32 = arith.constant 2 : i32
    %0 = arith.muli %c2_i32, %arg1 : i32
    %c0_i32 = arith.constant 0 : i32
    %1 = arith.subi %c0_i32, %0 : i32
    %2 = arith.muli %arg0, %1 : i32
    %3 = arith.addi %arg1, %2 : i32
    %c0_i32_0 = arith.constant 0 : i32
    %c0_i32_1 = arith.constant 0 : i32
    return %3, %c0_i32_0 : i32, i32
  }
  func.func @transform_1(%arg0: i32, %arg1: i32) -> (i32, i32, i32) {
    %c0_i32 = arith.constant 0 : i32
    %c0_i32_0 = arith.constant 0 : i32
    %c0_i32_1 = arith.constant 0 : i32
    return %arg0, %c0_i32, %c0_i32_0 : i32, i32, i32
  }
  func.func @transform_2(%arg0: i32, %arg1: i32) -> (i32, i32, i32) {
    %c0_i32 = arith.constant 0 : i32
    %c0_i32_0 = arith.constant 0 : i32
    %c0_i32_1 = arith.constant 0 : i32
    return %arg0, %c0_i32, %c0_i32_0 : i32, i32, i32
  }
  func.func @transform_3(%arg0: i32, %arg1: i32) -> (i32, i32, i32) {
    %c0_i32 = arith.constant 0 : i32
    %c0_i32_0 = arith.constant 0 : i32
    %c0_i32_1 = arith.constant 0 : i32
    return %arg0, %c0_i32, %c0_i32_0 : i32, i32, i32
  }
  func.func @transform_4(%arg0: i32, %arg1: i32) -> (i32, i32, i32, i32) {
    %c2_i32 = arith.constant 2 : i32
    %0 = arith.muli %c2_i32, %arg1 : i32
    %c0_i32 = arith.constant 0 : i32
    %1 = arith.subi %c0_i32, %0 : i32
    %2 = arith.muli %arg0, %1 : i32
    %3 = arith.addi %arg1, %2 : i32
    %c0_i32_0 = arith.constant 0 : i32
    %c0_i32_1 = arith.constant 0 : i32
    %c0_i32_2 = arith.constant 0 : i32
    return %arg0, %3, %c0_i32_0, %c0_i32_1 : i32, i32, i32, i32
  }
  func.func @transform_5(%arg0: i32, %arg1: i32) -> (i32, i32, i32) {
    %c0_i32 = arith.constant 0 : i32
    %c0_i32_0 = arith.constant 0 : i32
    %c0_i32_1 = arith.constant 0 : i32
    return %arg0, %c0_i32, %c0_i32_0 : i32, i32, i32
  }
  func.func @transform_6(%arg0: i32, %arg1: i32) -> (i32, i32, i32) {
    %c0_i32 = arith.constant 0 : i32
    %c0_i32_0 = arith.constant 0 : i32
    %c0_i32_1 = arith.constant 0 : i32
    return %arg0, %c0_i32, %c0_i32_0 : i32, i32, i32
  }
}

module attributes {stable_mosaic.version = 11 : i64} {
  func.func @lstm_bidir_kernel(%arg0: i32, %arg1: i32, %arg2: memref<16x32xbf16, #tpu.memory_space<vmem>>, %arg3: memref<1x32x64xbf16, #tpu.memory_space<vmem>>, %arg4: memref<1x16x64xbf16, #tpu.memory_space<vmem>>, %arg5: memref<1x1x64xf32, #tpu.memory_space<vmem>>, %arg6: memref<1x8x2x16xf32, #tpu.memory_space<vmem>>, %arg7: memref<1x2x16xf32, #tpu.memory_space<vmem>>, %arg8: memref<1x2x16xf32, #tpu.memory_space<vmem>>, %arg9: memref<2x16xf32, #tpu.memory_space<vmem>>, %arg10: memref<2x16xf32, #tpu.memory_space<vmem>>, %arg11: memref<8x2x64xf32, #tpu.memory_space<vmem>>) attributes {dimension_semantics = [#tpu.dimension_semantics<parallel>, #tpu.dimension_semantics<arbitrary>], iteration_bounds = array<i64: 2, 1>, scalar_prefetch = 0 : i64, scratch_operands = 3 : i64, tpu.core_type = #tpu.core_type<tc>, window_params = [{transform_indices = @transform_0, window_bounds = array<i64: 16, 32>}, {transform_indices = @transform_1, window_bounds = array<i64: 1, 32, 64>}, {transform_indices = @transform_2, window_bounds = array<i64: 1, 16, 64>}, {transform_indices = @transform_3, window_bounds = array<i64: 1, 1, 64>}, {transform_indices = @transform_4, window_bounds = array<i64: 1, 8, 2, 16>}, {transform_indices = @transform_5, window_bounds = array<i64: 1, 2, 16>}, {transform_indices = @transform_6, window_bounds = array<i64: 1, 2, 16>}]} {
    %c0_i32 = arith.constant 0 : i32
    %0 = arith.cmpi eq, %arg1, %c0_i32 : i32
    %1 = arith.extui %0 : i1 to i32
    %c0_i32_0 = arith.constant 0 : i32
    %2 = arith.cmpi ne, %1, %c0_i32_0 : i32
    scf.if %2 {
      %cst_151 = arith.constant 0.000000e+00 : f32
      %388 = vector.broadcast %cst_151 : f32 to vector<2x16xf32>
      %c0_152 = arith.constant 0 : index
      %c0_153 = arith.constant 0 : index
      %389 = vector.load %arg9[%c0_152, %c0_153] : memref<2x16xf32, #tpu.memory_space<vmem>>, vector<2x16xf32>
      tpu.vector_store %arg9[%c0_152, %c0_153], %388 {strides = array<i32>} : memref<2x16xf32, #tpu.memory_space<vmem>>, vector<2x16xf32>,
      %cst_154 = arith.constant 0.000000e+00 : f32
      %390 = vector.broadcast %cst_154 : f32 to vector<2x16xf32>
      %c0_155 = arith.constant 0 : index
      %c0_156 = arith.constant 0 : index
      %391 = vector.load %arg10[%c0_155, %c0_156] : memref<2x16xf32, #tpu.memory_space<vmem>>, vector<2x16xf32>
      tpu.vector_store %arg10[%c0_155, %c0_156], %390 {strides = array<i32>} : memref<2x16xf32, #tpu.memory_space<vmem>>, vector<2x16xf32>,
    } else {
    }
    %c0 = arith.constant 0 : index
    %c0_1 = arith.constant 0 : index
    %3 = vector.load %arg2[%c0, %c0_1] : memref<16x32xbf16, #tpu.memory_space<vmem>>, vector<16x32xbf16>
    %c0_2 = arith.constant 0 : index
    %c0_3 = arith.constant 0 : index
    %c0_4 = arith.constant 0 : index
    %4 = vector.load %arg3[%c0_2, %c0_3, %c0_4] : memref<1x32x64xbf16, #tpu.memory_space<vmem>>, vector<1x32x64xbf16>
    %5 = vector.shape_cast %4 : vector<1x32x64xbf16> to vector<32x64xbf16>
    %cst = arith.constant dense<0.000000e+00> : vector<16x64xf32>
    %6 = tpu.matmul %3, %5, %cst {dimension_numbers = #tpu.dot_dimension_numbers<[1], [0], [0], [1], [0, 0, 1, 1], [], []>} : vector<16x32xbf16>, vector<32x64xbf16>, vector<16x64xf32> -> vector<16x64xf32>
    %c0_5 = arith.constant 0 : index
    %c0_6 = arith.constant 0 : index
    %c0_7 = arith.constant 0 : index
    %7 = vector.load %arg5[%c0_5, %c0_6, %c0_7] : memref<1x1x64xf32, #tpu.memory_space<vmem>>, vector<1x1x64xf32>
    %8 = vector.shape_cast %7 : vector<1x1x64xf32> to vector<1x64xf32>
    %9 = vector.broadcast %8 : vector<1x64xf32> to vector<16x64xf32>
    %10 = arith.addf %6, %9 : vector<16x64xf32>
    %11 = vector.extract_strided_slice %10 {offsets = [0, 0], sizes = [2, 64], strides = [1, 1]} : vector<16x64xf32> to vector<2x64xf32>
    %c0_8 = arith.constant 0 : index
    %c0_9 = arith.constant 0 : index
    %c0_10 = arith.constant 0 : index
    %12 = vector.load %arg11[%c0_8, %c0_9, %c0_10] : memref<8x2x64xf32, #tpu.memory_space<vmem>>, vector<1x2x64xf32>
    %13 = vector.shape_cast %12 : vector<1x2x64xf32> to vector<2x64xf32>
    %14 = vector.shape_cast %11 : vector<2x64xf32> to vector<1x2x64xf32>
    tpu.vector_store %arg11[%c0_8, %c0_9, %c0_10], %14 {strides = array<i32>} : memref<8x2x64xf32, #tpu.memory_space<vmem>>, vector<1x2x64xf32>,
    %15 = vector.extract_strided_slice %10 {offsets = [2, 0], sizes = [2, 64], strides = [1, 1]} : vector<16x64xf32> to vector<2x64xf32>
    %c1 = arith.constant 1 : index
    %c0_11 = arith.constant 0 : index
    %c0_12 = arith.constant 0 : index
    %16 = vector.load %arg11[%c1, %c0_11, %c0_12] : memref<8x2x64xf32, #tpu.memory_space<vmem>>, vector<1x2x64xf32>
    %17 = vector.shape_cast %16 : vector<1x2x64xf32> to vector<2x64xf32>
    %18 = vector.shape_cast %15 : vector<2x64xf32> to vector<1x2x64xf32>
    tpu.vector_store %arg11[%c1, %c0_11, %c0_12], %18 {strides = array<i32>} : memref<8x2x64xf32, #tpu.memory_space<vmem>>, vector<1x2x64xf32>,
    %19 = vector.extract_strided_slice %10 {offsets = [4, 0], sizes = [2, 64], strides = [1, 1]} : vector<16x64xf32> to vector<2x64xf32>
    %c2 = arith.constant 2 : index
    %c0_13 = arith.constant 0 : index
    %c0_14 = arith.constant 0 : index
    %20 = vector.load %arg11[%c2, %c0_13, %c0_14] : memref<8x2x64xf32, #tpu.memory_space<vmem>>, vector<1x2x64xf32>
    %21 = vector.shape_cast %20 : vector<1x2x64xf32> to vector<2x64xf32>
    %22 = vector.shape_cast %19 : vector<2x64xf32> to vector<1x2x64xf32>
    tpu.vector_store %arg11[%c2, %c0_13, %c0_14], %22 {strides = array<i32>} : memref<8x2x64xf32, #tpu.memory_space<vmem>>, vector<1x2x64xf32>,
    %23 = vector.extract_strided_slice %10 {offsets = [6, 0], sizes = [2, 64], strides = [1, 1]} : vector<16x64xf32> to vector<2x64xf32>
    %c3 = arith.constant 3 : index
    %c0_15 = arith.constant 0 : index
    %c0_16 = arith.constant 0 : index
    %24 = vector.load %arg11[%c3, %c0_15, %c0_16] : memref<8x2x64xf32, #tpu.memory_space<vmem>>, vector<1x2x64xf32>
    %25 = vector.shape_cast %24 : vector<1x2x64xf32> to vector<2x64xf32>
    %26 = vector.shape_cast %23 : vector<2x64xf32> to vector<1x2x64xf32>
    tpu.vector_store %arg11[%c3, %c0_15, %c0_16], %26 {strides = array<i32>} : memref<8x2x64xf32, #tpu.memory_space<vmem>>, vector<1x2x64xf32>,
    %27 = vector.extract_strided_slice %10 {offsets = [8, 0], sizes = [2, 64], strides = [1, 1]} : vector<16x64xf32> to vector<2x64xf32>
    %c4 = arith.constant 4 : index
    %c0_17 = arith.constant 0 : index
    %c0_18 = arith.constant 0 : index
    %28 = vector.load %arg11[%c4, %c0_17, %c0_18] : memref<8x2x64xf32, #tpu.memory_space<vmem>>, vector<1x2x64xf32>
    %29 = vector.shape_cast %28 : vector<1x2x64xf32> to vector<2x64xf32>
    %30 = vector.shape_cast %27 : vector<2x64xf32> to vector<1x2x64xf32>
    tpu.vector_store %arg11[%c4, %c0_17, %c0_18], %30 {strides = array<i32>} : memref<8x2x64xf32, #tpu.memory_space<vmem>>, vector<1x2x64xf32>,
    %31 = vector.extract_strided_slice %10 {offsets = [10, 0], sizes = [2, 64], strides = [1, 1]} : vector<16x64xf32> to vector<2x64xf32>
    %c5 = arith.constant 5 : index
    %c0_19 = arith.constant 0 : index
    %c0_20 = arith.constant 0 : index
    %32 = vector.load %arg11[%c5, %c0_19, %c0_20] : memref<8x2x64xf32, #tpu.memory_space<vmem>>, vector<1x2x64xf32>
    %33 = vector.shape_cast %32 : vector<1x2x64xf32> to vector<2x64xf32>
    %34 = vector.shape_cast %31 : vector<2x64xf32> to vector<1x2x64xf32>
    tpu.vector_store %arg11[%c5, %c0_19, %c0_20], %34 {strides = array<i32>} : memref<8x2x64xf32, #tpu.memory_space<vmem>>, vector<1x2x64xf32>,
    %35 = vector.extract_strided_slice %10 {offsets = [12, 0], sizes = [2, 64], strides = [1, 1]} : vector<16x64xf32> to vector<2x64xf32>
    %c6 = arith.constant 6 : index
    %c0_21 = arith.constant 0 : index
    %c0_22 = arith.constant 0 : index
    %36 = vector.load %arg11[%c6, %c0_21, %c0_22] : memref<8x2x64xf32, #tpu.memory_space<vmem>>, vector<1x2x64xf32>
    %37 = vector.shape_cast %36 : vector<1x2x64xf32> to vector<2x64xf32>
    %38 = vector.shape_cast %35 : vector<2x64xf32> to vector<1x2x64xf32>
    tpu.vector_store %arg11[%c6, %c0_21, %c0_22], %38 {strides = array<i32>} : memref<8x2x64xf32, #tpu.memory_space<vmem>>, vector<1x2x64xf32>,
    %39 = vector.extract_strided_slice %10 {offsets = [14, 0], sizes = [2, 64], strides = [1, 1]} : vector<16x64xf32> to vector<2x64xf32>
    %c7 = arith.constant 7 : index
    %c0_23 = arith.constant 0 : index
    %c0_24 = arith.constant 0 : index
    %40 = vector.load %arg11[%c7, %c0_23, %c0_24] : memref<8x2x64xf32, #tpu.memory_space<vmem>>, vector<1x2x64xf32>
    %41 = vector.shape_cast %40 : vector<1x2x64xf32> to vector<2x64xf32>
    %42 = vector.shape_cast %39 : vector<2x64xf32> to vector<1x2x64xf32>
    tpu.vector_store %arg11[%c7, %c0_23, %c0_24], %42 {strides = array<i32>} : memref<8x2x64xf32, #tpu.memory_space<vmem>>, vector<1x2x64xf32>,
    %c0_25 = arith.constant 0 : index
    %c0_26 = arith.constant 0 : index
    %c0_27 = arith.constant 0 : index
    %43 = vector.load %arg4[%c0_25, %c0_26, %c0_27] : memref<1x16x64xbf16, #tpu.memory_space<vmem>>, vector<1x16x64xbf16>
    %44 = vector.shape_cast %43 : vector<1x16x64xbf16> to vector<16x64xbf16>
    %c0_28 = arith.constant 0 : index
    %c0_29 = arith.constant 0 : index
    %45 = vector.load %arg9[%c0_28, %c0_29] : memref<2x16xf32, #tpu.memory_space<vmem>>, vector<2x16xf32>
    %c0_30 = arith.constant 0 : index
    %c0_31 = arith.constant 0 : index
    %46 = vector.load %arg10[%c0_30, %c0_31] : memref<2x16xf32, #tpu.memory_space<vmem>>, vector<2x16xf32>
    %c0_i32_32 = arith.constant 0 : i32
    %c2_i32 = arith.constant 2 : i32
    %47 = arith.muli %c2_i32, %c0_i32_32 : i32
    %c7_i32 = arith.constant 7 : i32
    %48 = arith.subi %c7_i32, %47 : i32
    %49 = arith.muli %arg0, %48 : i32
    %50 = arith.addi %c0_i32_32, %49 : i32
    %51 = arith.index_cast %50 : i32 to index
    %c0_33 = arith.constant 0 : index
    %c0_34 = arith.constant 0 : index
    %52 = vector.load %arg11[%51, %c0_33, %c0_34] : memref<8x2x64xf32, #tpu.memory_space<vmem>>, vector<1x2x64xf32>
    %53 = vector.shape_cast %52 : vector<1x2x64xf32> to vector<2x64xf32>
    %54 = arith.truncf %45 : vector<2x16xf32> to vector<2x16xbf16>
    %cst_35 = arith.constant dense<0.000000e+00> : vector<2x64xf32>
    %55 = tpu.matmul %54, %44, %cst_35 {dimension_numbers = #tpu.dot_dimension_numbers<[1], [0], [0], [1], [0, 0, 1, 1], [], []>} : vector<2x16xbf16>, vector<16x64xbf16>, vector<2x64xf32> -> vector<2x64xf32>
    %56 = arith.addf %53, %55 : vector<2x64xf32>
    %57 = vector.extract_strided_slice %56 {offsets = [0, 0], sizes = [2, 16], strides = [1, 1]} : vector<2x64xf32> to vector<2x16xf32>
    %cst_36 = arith.constant 0.000000e+00 : f32
    %58 = vector.broadcast %cst_36 : f32 to vector<2x16xf32>
    %59 = arith.subf %58, %57 : vector<2x16xf32>
    %60 = math.exp %59 : vector<2x16xf32>
    %cst_37 = arith.constant 1.000000e+00 : f32
    %61 = vector.broadcast %cst_37 : f32 to vector<2x16xf32>
    %62 = arith.addf %61, %60 : vector<2x16xf32>
    %63 = tpu.reciprocal %62 {approx = true} : vector<2x16xf32> -> vector<2x16xf32>
    %64 = vector.extract_strided_slice %56 {offsets = [0, 16], sizes = [2, 16], strides = [1, 1]} : vector<2x64xf32> to vector<2x16xf32>
    %cst_38 = arith.constant 0.000000e+00 : f32
    %65 = vector.broadcast %cst_38 : f32 to vector<2x16xf32>
    %66 = arith.subf %65, %64 : vector<2x16xf32>
    %67 = math.exp %66 : vector<2x16xf32>
    %cst_39 = arith.constant 1.000000e+00 : f32
    %68 = vector.broadcast %cst_39 : f32 to vector<2x16xf32>
    %69 = arith.addf %68, %67 : vector<2x16xf32>
    %70 = tpu.reciprocal %69 {approx = true} : vector<2x16xf32> -> vector<2x16xf32>
    %71 = vector.extract_strided_slice %56 {offsets = [0, 32], sizes = [2, 16], strides = [1, 1]} : vector<2x64xf32> to vector<2x16xf32>
    %72 = math.tanh %71 : vector<2x16xf32>
    %73 = vector.extract_strided_slice %56 {offsets = [0, 48], sizes = [2, 16], strides = [1, 1]} : vector<2x64xf32> to vector<2x16xf32>
    %cst_40 = arith.constant 0.000000e+00 : f32
    %74 = vector.broadcast %cst_40 : f32 to vector<2x16xf32>
    %75 = arith.subf %74, %73 : vector<2x16xf32>
    %76 = math.exp %75 : vector<2x16xf32>
    %cst_41 = arith.constant 1.000000e+00 : f32
    %77 = vector.broadcast %cst_41 : f32 to vector<2x16xf32>
    %78 = arith.addf %77, %76 : vector<2x16xf32>
    %79 = tpu.reciprocal %78 {approx = true} : vector<2x16xf32> -> vector<2x16xf32>
    %80 = arith.mulf %70, %46 : vector<2x16xf32>
    %81 = arith.mulf %63, %72 : vector<2x16xf32>
    %82 = arith.addf %80, %81 : vector<2x16xf32>
    %83 = math.tanh %82 : vector<2x16xf32>
    %84 = arith.mulf %79, %83 : vector<2x16xf32>
    %c0_42 = arith.constant 0 : index
    %85 = arith.index_cast %50 : i32 to index
    %c0_43 = arith.constant 0 : index
    %c0_44 = arith.constant 0 : index
    %86 = vector.load %arg6[%c0_42, %85, %c0_43, %c0_44] : memref<1x8x2x16xf32, #tpu.memory_space<vmem>>, vector<1x1x2x16xf32>
    %87 = vector.shape_cast %86 : vector<1x1x2x16xf32> to vector<2x16xf32>
    %88 = vector.shape_cast %84 : vector<2x16xf32> to vector<1x1x2x16xf32>
    tpu.vector_store %arg6[%c0_42, %85, %c0_43, %c0_44], %88 {strides = array<i32>} : memref<1x8x2x16xf32, #tpu.memory_space<vmem>>, vector<1x1x2x16xf32>,
    %c1_i32 = arith.constant 1 : i32
    %c2_i32_45 = arith.constant 2 : i32
    %89 = arith.muli %c2_i32_45, %c1_i32 : i32
    %c7_i32_46 = arith.constant 7 : i32
    %90 = arith.subi %c7_i32_46, %89 : i32
    %91 = arith.muli %arg0, %90 : i32
    %92 = arith.addi %c1_i32, %91 : i32
    %93 = arith.index_cast %92 : i32 to index
    %c0_47 = arith.constant 0 : index
    %c0_48 = arith.constant 0 : index
    %94 = vector.load %arg11[%93, %c0_47, %c0_48] : memref<8x2x64xf32, #tpu.memory_space<vmem>>, vector<1x2x64xf32>
    %95 = vector.shape_cast %94 : vector<1x2x64xf32> to vector<2x64xf32>
    %96 = arith.truncf %84 : vector<2x16xf32> to vector<2x16xbf16>
    %cst_49 = arith.constant dense<0.000000e+00> : vector<2x64xf32>
    %97 = tpu.matmul %96, %44, %cst_49 {dimension_numbers = #tpu.dot_dimension_numbers<[1], [0], [0], [1], [0, 0, 1, 1], [], []>} : vector<2x16xbf16>, vector<16x64xbf16>, vector<2x64xf32> -> vector<2x64xf32>
    %98 = arith.addf %95, %97 : vector<2x64xf32>
    %99 = vector.extract_strided_slice %98 {offsets = [0, 0], sizes = [2, 16], strides = [1, 1]} : vector<2x64xf32> to vector<2x16xf32>
    %cst_50 = arith.constant 0.000000e+00 : f32
    %100 = vector.broadcast %cst_50 : f32 to vector<2x16xf32>
    %101 = arith.subf %100, %99 : vector<2x16xf32>
    %102 = math.exp %101 : vector<2x16xf32>
    %cst_51 = arith.constant 1.000000e+00 : f32
    %103 = vector.broadcast %cst_51 : f32 to vector<2x16xf32>
    %104 = arith.addf %103, %102 : vector<2x16xf32>
    %105 = tpu.reciprocal %104 {approx = true} : vector<2x16xf32> -> vector<2x16xf32>
    %106 = vector.extract_strided_slice %98 {offsets = [0, 16], sizes = [2, 16], strides = [1, 1]} : vector<2x64xf32> to vector<2x16xf32>
    %cst_52 = arith.constant 0.000000e+00 : f32
    %107 = vector.broadcast %cst_52 : f32 to vector<2x16xf32>
    %108 = arith.subf %107, %106 : vector<2x16xf32>
    %109 = math.exp %108 : vector<2x16xf32>
    %cst_53 = arith.constant 1.000000e+00 : f32
    %110 = vector.broadcast %cst_53 : f32 to vector<2x16xf32>
    %111 = arith.addf %110, %109 : vector<2x16xf32>
    %112 = tpu.reciprocal %111 {approx = true} : vector<2x16xf32> -> vector<2x16xf32>
    %113 = vector.extract_strided_slice %98 {offsets = [0, 32], sizes = [2, 16], strides = [1, 1]} : vector<2x64xf32> to vector<2x16xf32>
    %114 = math.tanh %113 : vector<2x16xf32>
    %115 = vector.extract_strided_slice %98 {offsets = [0, 48], sizes = [2, 16], strides = [1, 1]} : vector<2x64xf32> to vector<2x16xf32>
    %cst_54 = arith.constant 0.000000e+00 : f32
    %116 = vector.broadcast %cst_54 : f32 to vector<2x16xf32>
    %117 = arith.subf %116, %115 : vector<2x16xf32>
    %118 = math.exp %117 : vector<2x16xf32>
    %cst_55 = arith.constant 1.000000e+00 : f32
    %119 = vector.broadcast %cst_55 : f32 to vector<2x16xf32>
    %120 = arith.addf %119, %118 : vector<2x16xf32>
    %121 = tpu.reciprocal %120 {approx = true} : vector<2x16xf32> -> vector<2x16xf32>
    %122 = arith.mulf %112, %82 : vector<2x16xf32>
    %123 = arith.mulf %105, %114 : vector<2x16xf32>
    %124 = arith.addf %122, %123 : vector<2x16xf32>
    %125 = math.tanh %124 : vector<2x16xf32>
    %126 = arith.mulf %121, %125 : vector<2x16xf32>
    %c0_56 = arith.constant 0 : index
    %127 = arith.index_cast %92 : i32 to index
    %c0_57 = arith.constant 0 : index
    %c0_58 = arith.constant 0 : index
    %128 = vector.load %arg6[%c0_56, %127, %c0_57, %c0_58] : memref<1x8x2x16xf32, #tpu.memory_space<vmem>>, vector<1x1x2x16xf32>
    %129 = vector.shape_cast %128 : vector<1x1x2x16xf32> to vector<2x16xf32>
    %130 = vector.shape_cast %126 : vector<2x16xf32> to vector<1x1x2x16xf32>
    tpu.vector_store %arg6[%c0_56, %127, %c0_57, %c0_58], %130 {strides = array<i32>} : memref<1x8x2x16xf32, #tpu.memory_space<vmem>>, vector<1x1x2x16xf32>,
    %c2_i32_59 = arith.constant 2 : i32
    %c2_i32_60 = arith.constant 2 : i32
    %131 = arith.muli %c2_i32_60, %c2_i32_59 : i32
    %c7_i32_61 = arith.constant 7 : i32
    %132 = arith.subi %c7_i32_61, %131 : i32
    %133 = arith.muli %arg0, %132 : i32
    %134 = arith.addi %c2_i32_59, %133 : i32
    %135 = arith.index_cast %134 : i32 to index
    %c0_62 = arith.constant 0 : index
    %c0_63 = arith.constant 0 : index
    %136 = vector.load %arg11[%135, %c0_62, %c0_63] : memref<8x2x64xf32, #tpu.memory_space<vmem>>, vector<1x2x64xf32>
    %137 = vector.shape_cast %136 : vector<1x2x64xf32> to vector<2x64xf32>
    %138 = arith.truncf %126 : vector<2x16xf32> to vector<2x16xbf16>
    %cst_64 = arith.constant dense<0.000000e+00> : vector<2x64xf32>
    %139 = tpu.matmul %138, %44, %cst_64 {dimension_numbers = #tpu.dot_dimension_numbers<[1], [0], [0], [1], [0, 0, 1, 1], [], []>} : vector<2x16xbf16>, vector<16x64xbf16>, vector<2x64xf32> -> vector<2x64xf32>
    %140 = arith.addf %137, %139 : vector<2x64xf32>
    %141 = vector.extract_strided_slice %140 {offsets = [0, 0], sizes = [2, 16], strides = [1, 1]} : vector<2x64xf32> to vector<2x16xf32>
    %cst_65 = arith.constant 0.000000e+00 : f32
    %142 = vector.broadcast %cst_65 : f32 to vector<2x16xf32>
    %143 = arith.subf %142, %141 : vector<2x16xf32>
    %144 = math.exp %143 : vector<2x16xf32>
    %cst_66 = arith.constant 1.000000e+00 : f32
    %145 = vector.broadcast %cst_66 : f32 to vector<2x16xf32>
    %146 = arith.addf %145, %144 : vector<2x16xf32>
    %147 = tpu.reciprocal %146 {approx = true} : vector<2x16xf32> -> vector<2x16xf32>
    %148 = vector.extract_strided_slice %140 {offsets = [0, 16], sizes = [2, 16], strides = [1, 1]} : vector<2x64xf32> to vector<2x16xf32>
    %cst_67 = arith.constant 0.000000e+00 : f32
    %149 = vector.broadcast %cst_67 : f32 to vector<2x16xf32>
    %150 = arith.subf %149, %148 : vector<2x16xf32>
    %151 = math.exp %150 : vector<2x16xf32>
    %cst_68 = arith.constant 1.000000e+00 : f32
    %152 = vector.broadcast %cst_68 : f32 to vector<2x16xf32>
    %153 = arith.addf %152, %151 : vector<2x16xf32>
    %154 = tpu.reciprocal %153 {approx = true} : vector<2x16xf32> -> vector<2x16xf32>
    %155 = vector.extract_strided_slice %140 {offsets = [0, 32], sizes = [2, 16], strides = [1, 1]} : vector<2x64xf32> to vector<2x16xf32>
    %156 = math.tanh %155 : vector<2x16xf32>
    %157 = vector.extract_strided_slice %140 {offsets = [0, 48], sizes = [2, 16], strides = [1, 1]} : vector<2x64xf32> to vector<2x16xf32>
    %cst_69 = arith.constant 0.000000e+00 : f32
    %158 = vector.broadcast %cst_69 : f32 to vector<2x16xf32>
    %159 = arith.subf %158, %157 : vector<2x16xf32>
    %160 = math.exp %159 : vector<2x16xf32>
    %cst_70 = arith.constant 1.000000e+00 : f32
    %161 = vector.broadcast %cst_70 : f32 to vector<2x16xf32>
    %162 = arith.addf %161, %160 : vector<2x16xf32>
    %163 = tpu.reciprocal %162 {approx = true} : vector<2x16xf32> -> vector<2x16xf32>
    %164 = arith.mulf %154, %124 : vector<2x16xf32>
    %165 = arith.mulf %147, %156 : vector<2x16xf32>
    %166 = arith.addf %164, %165 : vector<2x16xf32>
    %167 = math.tanh %166 : vector<2x16xf32>
    %168 = arith.mulf %163, %167 : vector<2x16xf32>
    %c0_71 = arith.constant 0 : index
    %169 = arith.index_cast %134 : i32 to index
    %c0_72 = arith.constant 0 : index
    %c0_73 = arith.constant 0 : index
    %170 = vector.load %arg6[%c0_71, %169, %c0_72, %c0_73] : memref<1x8x2x16xf32, #tpu.memory_space<vmem>>, vector<1x1x2x16xf32>
    %171 = vector.shape_cast %170 : vector<1x1x2x16xf32> to vector<2x16xf32>
    %172 = vector.shape_cast %168 : vector<2x16xf32> to vector<1x1x2x16xf32>
    tpu.vector_store %arg6[%c0_71, %169, %c0_72, %c0_73], %172 {strides = array<i32>} : memref<1x8x2x16xf32, #tpu.memory_space<vmem>>, vector<1x1x2x16xf32>,
    %c3_i32 = arith.constant 3 : i32
    %c2_i32_74 = arith.constant 2 : i32
    %173 = arith.muli %c2_i32_74, %c3_i32 : i32
    %c7_i32_75 = arith.constant 7 : i32
    %174 = arith.subi %c7_i32_75, %173 : i32
    %175 = arith.muli %arg0, %174 : i32
    %176 = arith.addi %c3_i32, %175 : i32
    %177 = arith.index_cast %176 : i32 to index
    %c0_76 = arith.constant 0 : index
    %c0_77 = arith.constant 0 : index
    %178 = vector.load %arg11[%177, %c0_76, %c0_77] : memref<8x2x64xf32, #tpu.memory_space<vmem>>, vector<1x2x64xf32>
    %179 = vector.shape_cast %178 : vector<1x2x64xf32> to vector<2x64xf32>
    %180 = arith.truncf %168 : vector<2x16xf32> to vector<2x16xbf16>
    %cst_78 = arith.constant dense<0.000000e+00> : vector<2x64xf32>
    %181 = tpu.matmul %180, %44, %cst_78 {dimension_numbers = #tpu.dot_dimension_numbers<[1], [0], [0], [1], [0, 0, 1, 1], [], []>} : vector<2x16xbf16>, vector<16x64xbf16>, vector<2x64xf32> -> vector<2x64xf32>
    %182 = arith.addf %179, %181 : vector<2x64xf32>
    %183 = vector.extract_strided_slice %182 {offsets = [0, 0], sizes = [2, 16], strides = [1, 1]} : vector<2x64xf32> to vector<2x16xf32>
    %cst_79 = arith.constant 0.000000e+00 : f32
    %184 = vector.broadcast %cst_79 : f32 to vector<2x16xf32>
    %185 = arith.subf %184, %183 : vector<2x16xf32>
    %186 = math.exp %185 : vector<2x16xf32>
    %cst_80 = arith.constant 1.000000e+00 : f32
    %187 = vector.broadcast %cst_80 : f32 to vector<2x16xf32>
    %188 = arith.addf %187, %186 : vector<2x16xf32>
    %189 = tpu.reciprocal %188 {approx = true} : vector<2x16xf32> -> vector<2x16xf32>
    %190 = vector.extract_strided_slice %182 {offsets = [0, 16], sizes = [2, 16], strides = [1, 1]} : vector<2x64xf32> to vector<2x16xf32>
    %cst_81 = arith.constant 0.000000e+00 : f32
    %191 = vector.broadcast %cst_81 : f32 to vector<2x16xf32>
    %192 = arith.subf %191, %190 : vector<2x16xf32>
    %193 = math.exp %192 : vector<2x16xf32>
    %cst_82 = arith.constant 1.000000e+00 : f32
    %194 = vector.broadcast %cst_82 : f32 to vector<2x16xf32>
    %195 = arith.addf %194, %193 : vector<2x16xf32>
    %196 = tpu.reciprocal %195 {approx = true} : vector<2x16xf32> -> vector<2x16xf32>
    %197 = vector.extract_strided_slice %182 {offsets = [0, 32], sizes = [2, 16], strides = [1, 1]} : vector<2x64xf32> to vector<2x16xf32>
    %198 = math.tanh %197 : vector<2x16xf32>
    %199 = vector.extract_strided_slice %182 {offsets = [0, 48], sizes = [2, 16], strides = [1, 1]} : vector<2x64xf32> to vector<2x16xf32>
    %cst_83 = arith.constant 0.000000e+00 : f32
    %200 = vector.broadcast %cst_83 : f32 to vector<2x16xf32>
    %201 = arith.subf %200, %199 : vector<2x16xf32>
    %202 = math.exp %201 : vector<2x16xf32>
    %cst_84 = arith.constant 1.000000e+00 : f32
    %203 = vector.broadcast %cst_84 : f32 to vector<2x16xf32>
    %204 = arith.addf %203, %202 : vector<2x16xf32>
    %205 = tpu.reciprocal %204 {approx = true} : vector<2x16xf32> -> vector<2x16xf32>
    %206 = arith.mulf %196, %166 : vector<2x16xf32>
    %207 = arith.mulf %189, %198 : vector<2x16xf32>
    %208 = arith.addf %206, %207 : vector<2x16xf32>
    %209 = math.tanh %208 : vector<2x16xf32>
    %210 = arith.mulf %205, %209 : vector<2x16xf32>
    %c0_85 = arith.constant 0 : index
    %211 = arith.index_cast %176 : i32 to index
    %c0_86 = arith.constant 0 : index
    %c0_87 = arith.constant 0 : index
    %212 = vector.load %arg6[%c0_85, %211, %c0_86, %c0_87] : memref<1x8x2x16xf32, #tpu.memory_space<vmem>>, vector<1x1x2x16xf32>
    %213 = vector.shape_cast %212 : vector<1x1x2x16xf32> to vector<2x16xf32>
    %214 = vector.shape_cast %210 : vector<2x16xf32> to vector<1x1x2x16xf32>
    tpu.vector_store %arg6[%c0_85, %211, %c0_86, %c0_87], %214 {strides = array<i32>} : memref<1x8x2x16xf32, #tpu.memory_space<vmem>>, vector<1x1x2x16xf32>,
    %c4_i32 = arith.constant 4 : i32
    %c2_i32_88 = arith.constant 2 : i32
    %215 = arith.muli %c2_i32_88, %c4_i32 : i32
    %c7_i32_89 = arith.constant 7 : i32
    %216 = arith.subi %c7_i32_89, %215 : i32
    %217 = arith.muli %arg0, %216 : i32
    %218 = arith.addi %c4_i32, %217 : i32
    %219 = arith.index_cast %218 : i32 to index
    %c0_90 = arith.constant 0 : index
    %c0_91 = arith.constant 0 : index
    %220 = vector.load %arg11[%219, %c0_90, %c0_91] : memref<8x2x64xf32, #tpu.memory_space<vmem>>, vector<1x2x64xf32>
    %221 = vector.shape_cast %220 : vector<1x2x64xf32> to vector<2x64xf32>
    %222 = arith.truncf %210 : vector<2x16xf32> to vector<2x16xbf16>
    %cst_92 = arith.constant dense<0.000000e+00> : vector<2x64xf32>
    %223 = tpu.matmul %222, %44, %cst_92 {dimension_numbers = #tpu.dot_dimension_numbers<[1], [0], [0], [1], [0, 0, 1, 1], [], []>} : vector<2x16xbf16>, vector<16x64xbf16>, vector<2x64xf32> -> vector<2x64xf32>
    %224 = arith.addf %221, %223 : vector<2x64xf32>
    %225 = vector.extract_strided_slice %224 {offsets = [0, 0], sizes = [2, 16], strides = [1, 1]} : vector<2x64xf32> to vector<2x16xf32>
    %cst_93 = arith.constant 0.000000e+00 : f32
    %226 = vector.broadcast %cst_93 : f32 to vector<2x16xf32>
    %227 = arith.subf %226, %225 : vector<2x16xf32>
    %228 = math.exp %227 : vector<2x16xf32>
    %cst_94 = arith.constant 1.000000e+00 : f32
    %229 = vector.broadcast %cst_94 : f32 to vector<2x16xf32>
    %230 = arith.addf %229, %228 : vector<2x16xf32>
    %231 = tpu.reciprocal %230 {approx = true} : vector<2x16xf32> -> vector<2x16xf32>
    %232 = vector.extract_strided_slice %224 {offsets = [0, 16], sizes = [2, 16], strides = [1, 1]} : vector<2x64xf32> to vector<2x16xf32>
    %cst_95 = arith.constant 0.000000e+00 : f32
    %233 = vector.broadcast %cst_95 : f32 to vector<2x16xf32>
    %234 = arith.subf %233, %232 : vector<2x16xf32>
    %235 = math.exp %234 : vector<2x16xf32>
    %cst_96 = arith.constant 1.000000e+00 : f32
    %236 = vector.broadcast %cst_96 : f32 to vector<2x16xf32>
    %237 = arith.addf %236, %235 : vector<2x16xf32>
    %238 = tpu.reciprocal %237 {approx = true} : vector<2x16xf32> -> vector<2x16xf32>
    %239 = vector.extract_strided_slice %224 {offsets = [0, 32], sizes = [2, 16], strides = [1, 1]} : vector<2x64xf32> to vector<2x16xf32>
    %240 = math.tanh %239 : vector<2x16xf32>
    %241 = vector.extract_strided_slice %224 {offsets = [0, 48], sizes = [2, 16], strides = [1, 1]} : vector<2x64xf32> to vector<2x16xf32>
    %cst_97 = arith.constant 0.000000e+00 : f32
    %242 = vector.broadcast %cst_97 : f32 to vector<2x16xf32>
    %243 = arith.subf %242, %241 : vector<2x16xf32>
    %244 = math.exp %243 : vector<2x16xf32>
    %cst_98 = arith.constant 1.000000e+00 : f32
    %245 = vector.broadcast %cst_98 : f32 to vector<2x16xf32>
    %246 = arith.addf %245, %244 : vector<2x16xf32>
    %247 = tpu.reciprocal %246 {approx = true} : vector<2x16xf32> -> vector<2x16xf32>
    %248 = arith.mulf %238, %208 : vector<2x16xf32>
    %249 = arith.mulf %231, %240 : vector<2x16xf32>
    %250 = arith.addf %248, %249 : vector<2x16xf32>
    %251 = math.tanh %250 : vector<2x16xf32>
    %252 = arith.mulf %247, %251 : vector<2x16xf32>
    %c0_99 = arith.constant 0 : index
    %253 = arith.index_cast %218 : i32 to index
    %c0_100 = arith.constant 0 : index
    %c0_101 = arith.constant 0 : index
    %254 = vector.load %arg6[%c0_99, %253, %c0_100, %c0_101] : memref<1x8x2x16xf32, #tpu.memory_space<vmem>>, vector<1x1x2x16xf32>
    %255 = vector.shape_cast %254 : vector<1x1x2x16xf32> to vector<2x16xf32>
    %256 = vector.shape_cast %252 : vector<2x16xf32> to vector<1x1x2x16xf32>
    tpu.vector_store %arg6[%c0_99, %253, %c0_100, %c0_101], %256 {strides = array<i32>} : memref<1x8x2x16xf32, #tpu.memory_space<vmem>>, vector<1x1x2x16xf32>,
    %c5_i32 = arith.constant 5 : i32
    %c2_i32_102 = arith.constant 2 : i32
    %257 = arith.muli %c2_i32_102, %c5_i32 : i32
    %c7_i32_103 = arith.constant 7 : i32
    %258 = arith.subi %c7_i32_103, %257 : i32
    %259 = arith.muli %arg0, %258 : i32
    %260 = arith.addi %c5_i32, %259 : i32
    %261 = arith.index_cast %260 : i32 to index
    %c0_104 = arith.constant 0 : index
    %c0_105 = arith.constant 0 : index
    %262 = vector.load %arg11[%261, %c0_104, %c0_105] : memref<8x2x64xf32, #tpu.memory_space<vmem>>, vector<1x2x64xf32>
    %263 = vector.shape_cast %262 : vector<1x2x64xf32> to vector<2x64xf32>
    %264 = arith.truncf %252 : vector<2x16xf32> to vector<2x16xbf16>
    %cst_106 = arith.constant dense<0.000000e+00> : vector<2x64xf32>
    %265 = tpu.matmul %264, %44, %cst_106 {dimension_numbers = #tpu.dot_dimension_numbers<[1], [0], [0], [1], [0, 0, 1, 1], [], []>} : vector<2x16xbf16>, vector<16x64xbf16>, vector<2x64xf32> -> vector<2x64xf32>
    %266 = arith.addf %263, %265 : vector<2x64xf32>
    %267 = vector.extract_strided_slice %266 {offsets = [0, 0], sizes = [2, 16], strides = [1, 1]} : vector<2x64xf32> to vector<2x16xf32>
    %cst_107 = arith.constant 0.000000e+00 : f32
    %268 = vector.broadcast %cst_107 : f32 to vector<2x16xf32>
    %269 = arith.subf %268, %267 : vector<2x16xf32>
    %270 = math.exp %269 : vector<2x16xf32>
    %cst_108 = arith.constant 1.000000e+00 : f32
    %271 = vector.broadcast %cst_108 : f32 to vector<2x16xf32>
    %272 = arith.addf %271, %270 : vector<2x16xf32>
    %273 = tpu.reciprocal %272 {approx = true} : vector<2x16xf32> -> vector<2x16xf32>
    %274 = vector.extract_strided_slice %266 {offsets = [0, 16], sizes = [2, 16], strides = [1, 1]} : vector<2x64xf32> to vector<2x16xf32>
    %cst_109 = arith.constant 0.000000e+00 : f32
    %275 = vector.broadcast %cst_109 : f32 to vector<2x16xf32>
    %276 = arith.subf %275, %274 : vector<2x16xf32>
    %277 = math.exp %276 : vector<2x16xf32>
    %cst_110 = arith.constant 1.000000e+00 : f32
    %278 = vector.broadcast %cst_110 : f32 to vector<2x16xf32>
    %279 = arith.addf %278, %277 : vector<2x16xf32>
    %280 = tpu.reciprocal %279 {approx = true} : vector<2x16xf32> -> vector<2x16xf32>
    %281 = vector.extract_strided_slice %266 {offsets = [0, 32], sizes = [2, 16], strides = [1, 1]} : vector<2x64xf32> to vector<2x16xf32>
    %282 = math.tanh %281 : vector<2x16xf32>
    %283 = vector.extract_strided_slice %266 {offsets = [0, 48], sizes = [2, 16], strides = [1, 1]} : vector<2x64xf32> to vector<2x16xf32>
    %cst_111 = arith.constant 0.000000e+00 : f32
    %284 = vector.broadcast %cst_111 : f32 to vector<2x16xf32>
    %285 = arith.subf %284, %283 : vector<2x16xf32>
    %286 = math.exp %285 : vector<2x16xf32>
    %cst_112 = arith.constant 1.000000e+00 : f32
    %287 = vector.broadcast %cst_112 : f32 to vector<2x16xf32>
    %288 = arith.addf %287, %286 : vector<2x16xf32>
    %289 = tpu.reciprocal %288 {approx = true} : vector<2x16xf32> -> vector<2x16xf32>
    %290 = arith.mulf %280, %250 : vector<2x16xf32>
    %291 = arith.mulf %273, %282 : vector<2x16xf32>
    %292 = arith.addf %290, %291 : vector<2x16xf32>
    %293 = math.tanh %292 : vector<2x16xf32>
    %294 = arith.mulf %289, %293 : vector<2x16xf32>
    %c0_113 = arith.constant 0 : index
    %295 = arith.index_cast %260 : i32 to index
    %c0_114 = arith.constant 0 : index
    %c0_115 = arith.constant 0 : index
    %296 = vector.load %arg6[%c0_113, %295, %c0_114, %c0_115] : memref<1x8x2x16xf32, #tpu.memory_space<vmem>>, vector<1x1x2x16xf32>
    %297 = vector.shape_cast %296 : vector<1x1x2x16xf32> to vector<2x16xf32>
    %298 = vector.shape_cast %294 : vector<2x16xf32> to vector<1x1x2x16xf32>
    tpu.vector_store %arg6[%c0_113, %295, %c0_114, %c0_115], %298 {strides = array<i32>} : memref<1x8x2x16xf32, #tpu.memory_space<vmem>>, vector<1x1x2x16xf32>,
    %c6_i32 = arith.constant 6 : i32
    %c2_i32_116 = arith.constant 2 : i32
    %299 = arith.muli %c2_i32_116, %c6_i32 : i32
    %c7_i32_117 = arith.constant 7 : i32
    %300 = arith.subi %c7_i32_117, %299 : i32
    %301 = arith.muli %arg0, %300 : i32
    %302 = arith.addi %c6_i32, %301 : i32
    %303 = arith.index_cast %302 : i32 to index
    %c0_118 = arith.constant 0 : index
    %c0_119 = arith.constant 0 : index
    %304 = vector.load %arg11[%303, %c0_118, %c0_119] : memref<8x2x64xf32, #tpu.memory_space<vmem>>, vector<1x2x64xf32>
    %305 = vector.shape_cast %304 : vector<1x2x64xf32> to vector<2x64xf32>
    %306 = arith.truncf %294 : vector<2x16xf32> to vector<2x16xbf16>
    %cst_120 = arith.constant dense<0.000000e+00> : vector<2x64xf32>
    %307 = tpu.matmul %306, %44, %cst_120 {dimension_numbers = #tpu.dot_dimension_numbers<[1], [0], [0], [1], [0, 0, 1, 1], [], []>} : vector<2x16xbf16>, vector<16x64xbf16>, vector<2x64xf32> -> vector<2x64xf32>
    %308 = arith.addf %305, %307 : vector<2x64xf32>
    %309 = vector.extract_strided_slice %308 {offsets = [0, 0], sizes = [2, 16], strides = [1, 1]} : vector<2x64xf32> to vector<2x16xf32>
    %cst_121 = arith.constant 0.000000e+00 : f32
    %310 = vector.broadcast %cst_121 : f32 to vector<2x16xf32>
    %311 = arith.subf %310, %309 : vector<2x16xf32>
    %312 = math.exp %311 : vector<2x16xf32>
    %cst_122 = arith.constant 1.000000e+00 : f32
    %313 = vector.broadcast %cst_122 : f32 to vector<2x16xf32>
    %314 = arith.addf %313, %312 : vector<2x16xf32>
    %315 = tpu.reciprocal %314 {approx = true} : vector<2x16xf32> -> vector<2x16xf32>
    %316 = vector.extract_strided_slice %308 {offsets = [0, 16], sizes = [2, 16], strides = [1, 1]} : vector<2x64xf32> to vector<2x16xf32>
    %cst_123 = arith.constant 0.000000e+00 : f32
    %317 = vector.broadcast %cst_123 : f32 to vector<2x16xf32>
    %318 = arith.subf %317, %316 : vector<2x16xf32>
    %319 = math.exp %318 : vector<2x16xf32>
    %cst_124 = arith.constant 1.000000e+00 : f32
    %320 = vector.broadcast %cst_124 : f32 to vector<2x16xf32>
    %321 = arith.addf %320, %319 : vector<2x16xf32>
    %322 = tpu.reciprocal %321 {approx = true} : vector<2x16xf32> -> vector<2x16xf32>
    %323 = vector.extract_strided_slice %308 {offsets = [0, 32], sizes = [2, 16], strides = [1, 1]} : vector<2x64xf32> to vector<2x16xf32>
    %324 = math.tanh %323 : vector<2x16xf32>
    %325 = vector.extract_strided_slice %308 {offsets = [0, 48], sizes = [2, 16], strides = [1, 1]} : vector<2x64xf32> to vector<2x16xf32>
    %cst_125 = arith.constant 0.000000e+00 : f32
    %326 = vector.broadcast %cst_125 : f32 to vector<2x16xf32>
    %327 = arith.subf %326, %325 : vector<2x16xf32>
    %328 = math.exp %327 : vector<2x16xf32>
    %cst_126 = arith.constant 1.000000e+00 : f32
    %329 = vector.broadcast %cst_126 : f32 to vector<2x16xf32>
    %330 = arith.addf %329, %328 : vector<2x16xf32>
    %331 = tpu.reciprocal %330 {approx = true} : vector<2x16xf32> -> vector<2x16xf32>
    %332 = arith.mulf %322, %292 : vector<2x16xf32>
    %333 = arith.mulf %315, %324 : vector<2x16xf32>
    %334 = arith.addf %332, %333 : vector<2x16xf32>
    %335 = math.tanh %334 : vector<2x16xf32>
    %336 = arith.mulf %331, %335 : vector<2x16xf32>
    %c0_127 = arith.constant 0 : index
    %337 = arith.index_cast %302 : i32 to index
    %c0_128 = arith.constant 0 : index
    %c0_129 = arith.constant 0 : index
    %338 = vector.load %arg6[%c0_127, %337, %c0_128, %c0_129] : memref<1x8x2x16xf32, #tpu.memory_space<vmem>>, vector<1x1x2x16xf32>
    %339 = vector.shape_cast %338 : vector<1x1x2x16xf32> to vector<2x16xf32>
    %340 = vector.shape_cast %336 : vector<2x16xf32> to vector<1x1x2x16xf32>
    tpu.vector_store %arg6[%c0_127, %337, %c0_128, %c0_129], %340 {strides = array<i32>} : memref<1x8x2x16xf32, #tpu.memory_space<vmem>>, vector<1x1x2x16xf32>,
    %c7_i32_130 = arith.constant 7 : i32
    %c2_i32_131 = arith.constant 2 : i32
    %341 = arith.muli %c2_i32_131, %c7_i32_130 : i32
    %c7_i32_132 = arith.constant 7 : i32
    %342 = arith.subi %c7_i32_132, %341 : i32
    %343 = arith.muli %arg0, %342 : i32
    %344 = arith.addi %c7_i32_130, %343 : i32
    %345 = arith.index_cast %344 : i32 to index
    %c0_133 = arith.constant 0 : index
    %c0_134 = arith.constant 0 : index
    %346 = vector.load %arg11[%345, %c0_133, %c0_134] : memref<8x2x64xf32, #tpu.memory_space<vmem>>, vector<1x2x64xf32>
    %347 = vector.shape_cast %346 : vector<1x2x64xf32> to vector<2x64xf32>
    %348 = arith.truncf %336 : vector<2x16xf32> to vector<2x16xbf16>
    %cst_135 = arith.constant dense<0.000000e+00> : vector<2x64xf32>
    %349 = tpu.matmul %348, %44, %cst_135 {dimension_numbers = #tpu.dot_dimension_numbers<[1], [0], [0], [1], [0, 0, 1, 1], [], []>} : vector<2x16xbf16>, vector<16x64xbf16>, vector<2x64xf32> -> vector<2x64xf32>
    %350 = arith.addf %347, %349 : vector<2x64xf32>
    %351 = vector.extract_strided_slice %350 {offsets = [0, 0], sizes = [2, 16], strides = [1, 1]} : vector<2x64xf32> to vector<2x16xf32>
    %cst_136 = arith.constant 0.000000e+00 : f32
    %352 = vector.broadcast %cst_136 : f32 to vector<2x16xf32>
    %353 = arith.subf %352, %351 : vector<2x16xf32>
    %354 = math.exp %353 : vector<2x16xf32>
    %cst_137 = arith.constant 1.000000e+00 : f32
    %355 = vector.broadcast %cst_137 : f32 to vector<2x16xf32>
    %356 = arith.addf %355, %354 : vector<2x16xf32>
    %357 = tpu.reciprocal %356 {approx = true} : vector<2x16xf32> -> vector<2x16xf32>
    %358 = vector.extract_strided_slice %350 {offsets = [0, 16], sizes = [2, 16], strides = [1, 1]} : vector<2x64xf32> to vector<2x16xf32>
    %cst_138 = arith.constant 0.000000e+00 : f32
    %359 = vector.broadcast %cst_138 : f32 to vector<2x16xf32>
    %360 = arith.subf %359, %358 : vector<2x16xf32>
    %361 = math.exp %360 : vector<2x16xf32>
    %cst_139 = arith.constant 1.000000e+00 : f32
    %362 = vector.broadcast %cst_139 : f32 to vector<2x16xf32>
    %363 = arith.addf %362, %361 : vector<2x16xf32>
    %364 = tpu.reciprocal %363 {approx = true} : vector<2x16xf32> -> vector<2x16xf32>
    %365 = vector.extract_strided_slice %350 {offsets = [0, 32], sizes = [2, 16], strides = [1, 1]} : vector<2x64xf32> to vector<2x16xf32>
    %366 = math.tanh %365 : vector<2x16xf32>
    %367 = vector.extract_strided_slice %350 {offsets = [0, 48], sizes = [2, 16], strides = [1, 1]} : vector<2x64xf32> to vector<2x16xf32>
    %cst_140 = arith.constant 0.000000e+00 : f32
    %368 = vector.broadcast %cst_140 : f32 to vector<2x16xf32>
    %369 = arith.subf %368, %367 : vector<2x16xf32>
    %370 = math.exp %369 : vector<2x16xf32>
    %cst_141 = arith.constant 1.000000e+00 : f32
    %371 = vector.broadcast %cst_141 : f32 to vector<2x16xf32>
    %372 = arith.addf %371, %370 : vector<2x16xf32>
    %373 = tpu.reciprocal %372 {approx = true} : vector<2x16xf32> -> vector<2x16xf32>
    %374 = arith.mulf %364, %334 : vector<2x16xf32>
    %375 = arith.mulf %357, %366 : vector<2x16xf32>
    %376 = arith.addf %374, %375 : vector<2x16xf32>
    %377 = math.tanh %376 : vector<2x16xf32>
    %378 = arith.mulf %373, %377 : vector<2x16xf32>
    %c0_142 = arith.constant 0 : index
    %379 = arith.index_cast %344 : i32 to index
    %c0_143 = arith.constant 0 : index
    %c0_144 = arith.constant 0 : index
    %380 = vector.load %arg6[%c0_142, %379, %c0_143, %c0_144] : memref<1x8x2x16xf32, #tpu.memory_space<vmem>>, vector<1x1x2x16xf32>
    %381 = vector.shape_cast %380 : vector<1x1x2x16xf32> to vector<2x16xf32>
    %382 = vector.shape_cast %378 : vector<2x16xf32> to vector<1x1x2x16xf32>
    tpu.vector_store %arg6[%c0_142, %379, %c0_143, %c0_144], %382 {strides = array<i32>} : memref<1x8x2x16xf32, #tpu.memory_space<vmem>>, vector<1x1x2x16xf32>,
    %c8_i32 = arith.constant 8 : i32
    %c0_145 = arith.constant 0 : index
    %c0_146 = arith.constant 0 : index
    %383 = vector.load %arg9[%c0_145, %c0_146] : memref<2x16xf32, #tpu.memory_space<vmem>>, vector<2x16xf32>
    tpu.vector_store %arg9[%c0_145, %c0_146], %378 {strides = array<i32>} : memref<2x16xf32, #tpu.memory_space<vmem>>, vector<2x16xf32>,
    %c0_147 = arith.constant 0 : index
    %c0_148 = arith.constant 0 : index
    %384 = vector.load %arg10[%c0_147, %c0_148] : memref<2x16xf32, #tpu.memory_space<vmem>>, vector<2x16xf32>
    tpu.vector_store %arg10[%c0_147, %c0_148], %376 {strides = array<i32>} : memref<2x16xf32, #tpu.memory_space<vmem>>, vector<2x16xf32>,
    %c0_i32_149 = arith.constant 0 : i32
    %385 = arith.cmpi eq, %arg1, %c0_i32_149 : i32
    %386 = arith.extui %385 : i1 to i32
    %c0_i32_150 = arith.constant 0 : i32
    %387 = arith.cmpi ne, %386, %c0_i32_150 : i32
    scf.if %387 {
      %c0_151 = arith.constant 0 : index
      %c0_152 = arith.constant 0 : index
      %c0_153 = arith.constant 0 : index
      %388 = vector.load %arg7[%c0_151, %c0_152, %c0_153] : memref<1x2x16xf32, #tpu.memory_space<vmem>>, vector<1x2x16xf32>
      %389 = vector.shape_cast %388 : vector<1x2x16xf32> to vector<2x16xf32>
      %390 = vector.shape_cast %378 : vector<2x16xf32> to vector<1x2x16xf32>
      tpu.vector_store %arg7[%c0_151, %c0_152, %c0_153], %390 {strides = array<i32>} : memref<1x2x16xf32, #tpu.memory_space<vmem>>, vector<1x2x16xf32>,
      %c0_154 = arith.constant 0 : index
      %c0_155 = arith.constant 0 : index
      %c0_156 = arith.constant 0 : index
      %391 = vector.load %arg8[%c0_154, %c0_155, %c0_156] : memref<1x2x16xf32, #tpu.memory_space<vmem>>, vector<1x2x16xf32>
      %392 = vector.shape_cast %391 : vector<1x2x16xf32> to vector<2x16xf32>
      %393 = vector.shape_cast %376 : vector<2x16xf32> to vector<1x2x16xf32>
      tpu.vector_store %arg8[%c0_154, %c0_155, %c0_156], %393 {strides = array<i32>} : memref<1x2x16xf32, #tpu.memory_space<vmem>>, vector<1x2x16xf32>,
    } else {
    }
    return
  }
  func.func @transform_0(%arg0: i32, %arg1: i32) -> (i32, i32) {
    %c2_i32 = arith.constant 2 : i32
    %0 = arith.muli %c2_i32, %arg1 : i32
    %c0_i32 = arith.constant 0 : i32
    %1 = arith.subi %c0_i32, %0 : i32
    %2 = arith.muli %arg0, %1 : i32
    %3 = arith.addi %arg1, %2 : i32
    %c0_i32_0 = arith.constant 0 : i32
    %c0_i32_1 = arith.constant 0 : i32
    return %3, %c0_i32_0 : i32, i32
  }
  func.func @transform_1(%arg0: i32, %arg1: i32) -> (i32, i32, i32) {
    %c0_i32 = arith.constant 0 : i32
    %c0_i32_0 = arith.constant 0 : i32
    %c0_i32_1 = arith.constant 0 : i32
    return %arg0, %c0_i32, %c0_i32_0 : i32, i32, i32
  }
  func.func @transform_2(%arg0: i32, %arg1: i32) -> (i32, i32, i32) {
    %c0_i32 = arith.constant 0 : i32
    %c0_i32_0 = arith.constant 0 : i32
    %c0_i32_1 = arith.constant 0 : i32
    return %arg0, %c0_i32, %c0_i32_0 : i32, i32, i32
  }
  func.func @transform_3(%arg0: i32, %arg1: i32) -> (i32, i32, i32) {
    %c0_i32 = arith.constant 0 : i32
    %c0_i32_0 = arith.constant 0 : i32
    %c0_i32_1 = arith.constant 0 : i32
    return %arg0, %c0_i32, %c0_i32_0 : i32, i32, i32
  }
  func.func @transform_4(%arg0: i32, %arg1: i32) -> (i32, i32, i32, i32) {
    %c2_i32 = arith.constant 2 : i32
    %0 = arith.muli %c2_i32, %arg1 : i32
    %c0_i32 = arith.constant 0 : i32
    %1 = arith.subi %c0_i32, %0 : i32
    %2 = arith.muli %arg0, %1 : i32
    %3 = arith.addi %arg1, %2 : i32
    %c0_i32_0 = arith.constant 0 : i32
    %c0_i32_1 = arith.constant 0 : i32
    %c0_i32_2 = arith.constant 0 : i32
    return %arg0, %3, %c0_i32_0, %c0_i32_1 : i32, i32, i32, i32
  }
  func.func @transform_5(%arg0: i32, %arg1: i32) -> (i32, i32, i32) {
    %c0_i32 = arith.constant 0 : i32
    %c0_i32_0 = arith.constant 0 : i32
    %c0_i32_1 = arith.constant 0 : i32
    return %arg0, %c0_i32, %c0_i32_0 : i32, i32, i32
  }
  func.func @transform_6(%arg0: i32, %arg1: i32) -> (i32, i32, i32) {
    %c0_i32 = arith.constant 0 : i32
    %c0_i32_0 = arith.constant 0 : i32
    %c0_i32_1 = arith.constant 0 : i32
    return %arg0, %c0_i32, %c0_i32_0 : i32, i32, i32
  }
}

</mosaic_0001>

<llo_original>
// kernel: rnn_forward.3
$region0: #{rnn_forward.3}
  #allocation0 [shape = 'u32[]', space=smem, size = 0x4, offset = 0x4, fixed_abs, tag = 'smem constant byte address 0x4 - core index']
  #allocation1 [shape = 'u32[144,128]{1,0:T(1,128)}', space=vmem, size = 0x12000, scoped, tag = 'internal scratch']
  #allocation2 [shape = 'f32[2,16]{1,0:T(2,128)}', space=vmem, size = 0x400, scoped, tag = 'scratch operand']
  #allocation3 [shape = 'f32[2,16]{1,0:T(2,128)}', space=vmem, size = 0x400, scoped, tag = 'scratch operand']
  #allocation4 [shape = 'f32[8,2,64]{2,1,0:T(2,128)}', space=vmem, size = 0x2000, scoped, tag = 'scratch operand']
  %s0 = inlined_call_operand.vmem [shape: bf16[16,32], index: 0, kind: input, shape index: {}]
  %s1 = inlined_call_operand.vmem [shape: bf16[2,32,64], index: 1, kind: input, shape index: {}]
  %s2 = inlined_call_operand.vmem [shape: bf16[2,16,64], index: 2, kind: input, shape index: {}]
  %s3 = inlined_call_operand.vmem [shape: f32[2,1,64], index: 3, kind: input, shape index: {}]
  %s4 = inlined_call_operand.vmem [shape: f32[2,8,2,16], index: 4, kind: output, shape index: {0}]
  %s5 = inlined_call_operand.vmem [shape: f32[2,2,16], index: 5, kind: output, shape index: {1}]
  %s6 = inlined_call_operand.vmem [shape: f32[2,2,16], index: 6, kind: output, shape index: {2}]
  %7 = xla_tuple %s4, %s5, %s6
  %s8 = sld [smem:[#allocation0]]
  $region73: #{rnn_forward.3} parent=0
    _
  %s10 = ssub.s32 1, %s8
  %s11 = scalar_select 0, %s10, %s8
  loop: start=0, step=1, limit=4
  $region2: #{rnn_forward.3} parent=0 // loop_pre_header
    _
  $region3: #{rnn_forward.3} parent=0 // loop_header
    %s13 = sphi 0, %s17
    %p14 = scmp.ge.s32.totalorder %s13, 4
    %s20 = sphi 0, %s32
    %s21 = sphi 0, %s28
    %s22 = sphi 0, %s20
    %s23 = sphi 0, %s21
    %s24 = sphi 0, %s22
    %s25 = sphi 0, %s23
    %s43 = sphi 0, %s45
    %s46 = sphi 0, %s43
    %s47 = sphi 0, %s46
    %s63 = sphi 0, %s47
    %s69 = sphi 0, %s71
    %s72 = sphi 0, %s69
    %s73 = sphi 0, %s72
    %s89 = sphi 0, %s73
    %s95 = sphi 0, %s97
    %s98 = sphi 0, %s95
    %s99 = sphi 0, %s98
    %s115 = sphi 0, %s99
    %s121 = sphi 0, %s123
    %s124 = sphi 0, %s121
    %s125 = sphi 0, %s124
    %s141 = sphi 0, %s125
    %s157 = sphi 0, %s159
    %s160 = sphi 0, %s157
    %s161 = sphi 0, %s160
    %s177 = sphi 0, %s161
    %s183 = sphi 0, %s185
    %s186 = sphi 0, %s183
    %s187 = sphi 0, %s186
    %s203 = sphi 0, %s187
    %s209 = sphi 0, %s211
    %s212 = sphi 0, %s209
    %s213 = sphi 0, %s212
    %s229 = sphi 0, %s213
  $region4: #{rnn_forward.3} parent=0 // loop_header_branch
    %16 = sbr.rel (%p14) target = $region8
  $region5: #{rnn_forward.3} parent=0 // loop_body
    %s18 = ssub.s32 %s13, 1
    %s19 = ssub.s32 %s13, 2
    %s26 = sadd.s32 1, %s21
    %p27 = scmp.ge.s32.totalorder %s26, 1
    %s28 = scalar_select %p27, 0, %s26
    %s29 = sadd.s32 1, %s20
    %s30 = scalar_select %p27, %s29, %s20
    %p31 = scmp.ge.s32.totalorder %s30, 2
    %s32 = scalar_select %p31, 0, %s30
    %s33 = smul.u32 %s21, 2
    %s34 = ssub.s32 0, %s33
    %s35 = smul.u32 %s20, %s34
    %s36 = sadd.s32 %s21, %s35
    %s37 = smul.u32 %s28, 2
    %s38 = ssub.s32 0, %s37
    %s39 = smul.u32 %s32, %s38
    %s40 = sadd.s32 %s28, %s39
    %s41 = ssub.s32 %s36, %s40
    %p42 = scmp.eq.s32.totalorder %s41, 0
    %s44 = sadd.s32 %s43, 1
    %s45 = scalar_select %p42, %s43, %s44
    %p48 = pneg %p42
    %p49 = scmp.eq.s32.totalorder %s13, 1
    %p50 = por %p48, %p49
    %p51 = scmp.ne.s32.totalorder %s43, %s46
    %p52 = scmp.eq.s32.totalorder %s13, 0
    %p53 = por %p51, %p52
    %p54 = scmp.ne.s32.totalorder %s43, %s46
    %p55 = scmp.eq.s32.totalorder %s18, 1
    %p56 = por %p54, %p55
    %p57 = scmp.ne.s32.totalorder %s46, %s47
    %p58 = scmp.eq.s32.totalorder %s18, 0
    %p59 = por %p57, %p58
    %p60 = scmp.ne.s32.totalorder %s46, %s47
    %p61 = scmp.eq.s32.totalorder %s19, 1
    %p62 = por %p60, %p61
    %p64 = scmp.ne.s32.totalorder %s47, %s63
    %p65 = scmp.eq.s32.totalorder %s19, 0
    %p66 = por %p64, %p65
    %s67 = ssub.s32 %s20, %s32
    %p68 = scmp.eq.s32.totalorder %s67, 0
    %s70 = sadd.s32 %s69, 1
    %s71 = scalar_select %p68, %s69, %s70
    %p74 = pneg %p68
    %p75 = scmp.eq.s32.totalorder %s13, 1
    %p76 = por %p74, %p75
    %p77 = scmp.ne.s32.totalorder %s69, %s72
    %p78 = scmp.eq.s32.totalorder %s13, 0
    %p79 = por %p77, %p78
    %p80 = scmp.ne.s32.totalorder %s69, %s72
    %p81 = scmp.eq.s32.totalorder %s18, 1
    %p82 = por %p80, %p81
    %p83 = scmp.ne.s32.totalorder %s72, %s73
    %p84 = scmp.eq.s32.totalorder %s18, 0
    %p85 = por %p83, %p84
    %p86 = scmp.ne.s32.totalorder %s72, %s73
    %p87 = scmp.eq.s32.totalorder %s19, 1
    %p88 = por %p86, %p87
    %p90 = scmp.ne.s32.totalorder %s73, %s89
    %p91 = scmp.eq.s32.totalorder %s19, 0
    %p92 = por %p90, %p91
    %s93 = ssub.s32 %s20, %s32
    %p94 = scmp.eq.s32.totalorder %s93, 0
    %s96 = sadd.s32 %s95, 1
    %s97 = scalar_select %p94, %s95, %s96
    %p100 = pneg %p94
    %p101 = scmp.eq.s32.totalorder %s13, 1
    %p102 = por %p100, %p101
    %p103 = scmp.ne.s32.totalorder %s95, %s98
    %p104 = scmp.eq.s32.totalorder %s13, 0
    %p105 = por %p103, %p104
    %p106 = scmp.ne.s32.totalorder %s95, %s98
    %p107 = scmp.eq.s32.totalorder %s18, 1
    %p108 = por %p106, %p107
    %p109 = scmp.ne.s32.totalorder %s98, %s99
    %p110 = scmp.eq.s32.totalorder %s18, 0
    %p111 = por %p109, %p110
    %p112 = scmp.ne.s32.totalorder %s98, %s99
    %p113 = scmp.eq.s32.totalorder %s19, 1
    %p114 = por %p112, %p113
    %p116 = scmp.ne.s32.totalorder %s99, %s115
    %p117 = scmp.eq.s32.totalorder %s19, 0
    %p118 = por %p116, %p117
    %s119 = ssub.s32 %s20, %s32
    %p120 = scmp.eq.s32.totalorder %s119, 0
    %s122 = sadd.s32 %s121, 1
    %s123 = scalar_select %p120, %s121, %s122
    %p126 = pneg %p120
    %p127 = scmp.eq.s32.totalorder %s13, 1
    %p128 = por %p126, %p127
    %p129 = scmp.ne.s32.totalorder %s121, %s124
    %p130 = scmp.eq.s32.totalorder %s13, 0
    %p131 = por %p129, %p130
    %p132 = scmp.ne.s32.totalorder %s121, %s124
    %p133 = scmp.eq.s32.totalorder %s18, 1
    %p134 = por %p132, %p133
    %p135 = scmp.ne.s32.totalorder %s124, %s125
    %p136 = scmp.eq.s32.totalorder %s18, 0
    %p137 = por %p135, %p136
    %p138 = scmp.ne.s32.totalorder %s124, %s125
    %p139 = scmp.eq.s32.totalorder %s19, 1
    %p140 = por %p138, %p139
    %p142 = scmp.ne.s32.totalorder %s125, %s141
    %p143 = scmp.eq.s32.totalorder %s19, 0
    %p144 = por %p142, %p143
    %s145 = smul.u32 %s21, 2
    %s146 = ssub.s32 0, %s145
    %s147 = smul.u32 %s20, %s146
    %s148 = sadd.s32 %s21, %s147
    %s149 = smul.u32 %s28, 2
    %s150 = ssub.s32 0, %s149
    %s151 = smul.u32 %s32, %s150
    %s152 = sadd.s32 %s28, %s151
    %s153 = ssub.s32 %s20, %s32
    %s154 = ssub.s32 %s148, %s152
    %s155 = sor.u32 %s153, %s154
    %p156 = scmp.eq.s32.totalorder %s155, 0
    %s158 = sadd.s32 %s157, 1
    %s159 = scalar_select %p156, %s157, %s158
    %p162 = pneg %p156
    %p163 = scmp.eq.s32.totalorder %s13, 1
    %p164 = por %p162, %p163
    %p165 = scmp.ne.s32.totalorder %s157, %s160
    %p166 = scmp.eq.s32.totalorder %s13, 0
    %p167 = por %p165, %p166
    %p168 = scmp.ne.s32.totalorder %s157, %s160
    %p169 = scmp.eq.s32.totalorder %s18, 1
    %p170 = por %p168, %p169
    %p171 = scmp.ne.s32.totalorder %s160, %s161
    %p172 = scmp.eq.s32.totalorder %s18, 0
    %p173 = por %p171, %p172
    %p174 = scmp.ne.s32.totalorder %s160, %s161
    %p175 = scmp.eq.s32.totalorder %s19, 1
    %p176 = por %p174, %p175
    %p178 = scmp.ne.s32.totalorder %s161, %s177
    %p179 = scmp.eq.s32.totalorder %s19, 0
    %p180 = por %p178, %p179
    %s181 = ssub.s32 %s20, %s32
    %p182 = scmp.eq.s32.totalorder %s181, 0
    %s184 = sadd.s32 %s183, 1
    %s185 = scalar_select %p182, %s183, %s184
    %p188 = pneg %p182
    %p189 = scmp.eq.s32.totalorder %s13, 1
    %p190 = por %p188, %p189
    %p191 = scmp.ne.s32.totalorder %s183, %s186
    %p192 = scmp.eq.s32.totalorder %s13, 0
    %p193 = por %p191, %p192
    %p194 = scmp.ne.s32.totalorder %s183, %s186
    %p195 = scmp.eq.s32.totalorder %s18, 1
    %p196 = por %p194, %p195
    %p197 = scmp.ne.s32.totalorder %s186, %s187
    %p198 = scmp.eq.s32.totalorder %s18, 0
    %p199 = por %p197, %p198
    %p200 = scmp.ne.s32.totalorder %s186, %s187
    %p201 = scmp.eq.s32.totalorder %s19, 1
    %p202 = por %p200, %p201
    %p204 = scmp.ne.s32.totalorder %s187, %s203
    %p205 = scmp.eq.s32.totalorder %s19, 0
    %p206 = por %p204, %p205
    %s207 = ssub.s32 %s20, %s32
    %p208 = scmp.eq.s32.totalorder %s207, 0
    %s210 = sadd.s32 %s209, 1
    %s211 = scalar_select %p208, %s209, %s210
    %p214 = pneg %p208
    %p215 = scmp.eq.s32.totalorder %s13, 1
    %p216 = por %p214, %p215
    %p217 = scmp.ne.s32.totalorder %s209, %s212
    %p218 = scmp.eq.s32.totalorder %s13, 0
    %p219 = por %p217, %p218
    %p220 = scmp.ne.s32.totalorder %s209, %s212
    %p221 = scmp.eq.s32.totalorder %s18, 1
    %p222 = por %p220, %p221
    %p223 = scmp.ne.s32.totalorder %s212, %s213
    %p224 = scmp.eq.s32.totalorder %s18, 0
    %p225 = por %p223, %p224
    %p226 = scmp.ne.s32.totalorder %s212, %s213
    %p227 = scmp.eq.s32.totalorder %s19, 1
    %p228 = por %p226, %p227
    %p230 = scmp.ne.s32.totalorder %s213, %s229
    %p231 = scmp.eq.s32.totalorder %s19, 0
    %p232 = por %p230, %p231
    %p233 = scmp.le.s32.totalorder 1, %s13
    %p234 = scmp.lt.s32.totalorder %s13, 3
    %p235 = pnand %p233, %p234
    %p236 = pneg %p235
    // Predicated region
    $region9: #{rnn_forward.3} parent=5 // pred_check
      _
    $region10: #{rnn_forward.3} parent=5 // pred_check_branch
      %238 = sbr.rel (%p235) target = $region12
    $region11: #{rnn_forward.3} parent=5 // pred_region
      %s239 = ssub.s32 %s13, 1
    $region12: #{rnn_forward.3} parent=5 // pred_fallthru
      _
    %p240 = scmp.lt.s32.totalorder %s13, 2
    // Predicated region
    $region13: #{rnn_forward.3} parent=5 // pred_check
      %p241 = pneg %p240
    $region14: #{rnn_forward.3} parent=5 // pred_check_branch
      %243 = sbr.rel (%p241) target = $region16
    $region15: #{rnn_forward.3} parent=5 // pred_region
      // Predicated region
      $region17: #{rnn_forward.3} parent=15 // pred_check
        %p244 = pneg %p53
      $region18: #{rnn_forward.3} parent=15 // pred_check_branch
        %246 = sbr.rel (%p244) target = $region20
      $region19: #{rnn_forward.3} parent=15 // pred_region
        %s247 = smul.u32 %s21, 2
        %s248 = ssub.s32 0, %s247
        %s249 = smul.u32 %s20, %s248
        %s250 = sadd.s32 %s21, %s249
        %s251 = smul.u32 2, %s250
        %p252 = scmp.lt.s32.totalorder %s251, 1
        %s253 = scalar_select %p252, %s251, 1
        %s254 = smul.addr %s253, 4
        %s255 = scalar_lea.vmem %s0, %s254
        %s256 = smul.u32 %s21, 2
        %s257 = ssub.s32 0, %s256
        %s258 = smul.u32 %s20, %s257
        %s259 = sadd.s32 %s21, %s258
        %s260 = smul.u32 2, %s259
      $region20: #{rnn_forward.3} parent=15 // pred_fallthru
        _
      // Predicated region
      $region21: #{rnn_forward.3} parent=15 // pred_check
        %p261 = pneg %p79
      $region22: #{rnn_forward.3} parent=15 // pred_check_branch
        %263 = sbr.rel (%p261) target = $region24
      $region23: #{rnn_forward.3} parent=15 // pred_region
        %p264 = scmp.lt.s32.totalorder %s20, 1
        %s265 = scalar_select %p264, %s20, 1
        %s266 = smul.addr %s265, 4
        %s267 = smul.addr %s266, 4
        %s268 = scalar_lea.vmem %s1, %s267
      $region24: #{rnn_forward.3} parent=15 // pred_fallthru
        _
      // Predicated region
      $region25: #{rnn_forward.3} parent=15 // pred_check
        %p269 = pneg %p105
      $region26: #{rnn_forward.3} parent=15 // pred_check_branch
        %271 = sbr.rel (%p269) target = $region28
      $region27: #{rnn_forward.3} parent=15 // pred_region
        %p272 = scmp.lt.s32.totalorder %s20, 1
        %s273 = scalar_select %p272, %s20, 1
        %s274 = smul.addr %s273, 2
        %s275 = smul.addr %s274, 4
        %s276 = scalar_lea.vmem %s2, %s275
      $region28: #{rnn_forward.3} parent=15 // pred_fallthru
        _
      // Predicated region
      $region29: #{rnn_forward.3} parent=15 // pred_check
        %p277 = pneg %p131
      $region30: #{rnn_forward.3} parent=15 // pred_check_branch
        %279 = sbr.rel (%p277) target = $region32
      $region31: #{rnn_forward.3} parent=15 // pred_region
        %p280 = scmp.lt.s32.totalorder %s20, 1
        %s281 = scalar_select %p280, %s20, 1
        %s282 = scalar_lea.vmem %s3, %s281
      $region32: #{rnn_forward.3} parent=15 // pred_fallthru
        _
    $region16: #{rnn_forward.3} parent=5 // pred_fallthru
      _
    %p283 = scmp.le.s32.totalorder 1, %s13
    %p284 = scmp.lt.s32.totalorder %s13, 3
    %p285 = pnand %p283, %p284
    %p286 = pneg %p285
    // Predicated region
    $region33: #{rnn_forward.3} parent=5 // pred_check
      _
    $region34: #{rnn_forward.3} parent=5 // pred_check_branch
      %288 = sbr.rel (%p285) target = $region36
    $region35: #{rnn_forward.3} parent=5 // pred_region
      %s289 = ssub.s32 %s13, 1
      %s290 = smul.u32 %s23, 2
      %s291 = ssub.s32 0, %s290
      %s292 = smul.u32 %s22, %s291
      %s293 = sadd.s32 %s23, %s292
      %s294 = smul.u32 2, %s293
      %p295 = scmp.lt.s32.totalorder %s294, 1
      %s296 = scalar_select %p295, %s294, 1
      %s297 = smul.addr %s296, 4
      %s298 = scalar_lea.vmem %s0, %s297
      %p299 = pneg %p59
      %p300 = pneg %p56
      %p301 = scmp.lt.s32.totalorder %s22, 1
      %s302 = scalar_select %p301, %s22, 1
      %s303 = smul.addr %s302, 4
      %s304 = smul.addr %s303, 4
      %s305 = scalar_lea.vmem %s1, %s304
      %p306 = pneg %p85
      %p307 = pneg %p82
      %p308 = scmp.lt.s32.totalorder %s22, 1
      %s309 = scalar_select %p308, %s22, 1
      %s310 = smul.addr %s309, 2
      %s311 = smul.addr %s310, 4
      %s312 = scalar_lea.vmem %s2, %s311
      %p313 = pneg %p111
      %p314 = pneg %p108
      %p315 = scmp.lt.s32.totalorder %s22, 1
      %s316 = scalar_select %p315, %s22, 1
      %s317 = scalar_lea.vmem %s3, %s316
      %p318 = pneg %p137
      %p319 = pneg %p134
      %p320 = pneg %p173
      %p321 = pneg %p170
      %s322 = smul.u32 %s23, 2
      %s323 = ssub.s32 0, %s322
      %s324 = smul.u32 %s22, %s323
      %s325 = sadd.s32 %s23, %s324
      %s326 = smul.u32 8, %s325
      %p327 = scmp.lt.s32.totalorder %s22, 1
      %s328 = scalar_select %p327, %s22, 1
      %p329 = scmp.lt.s32.totalorder %s326, 7
      %s330 = scalar_select %p329, %s326, 7
      %s331 = smul.addr %s328, 8
      %s332 = sadd.s32 %s330, %s331
      %s333 = smul.addr %s332, 2
      %s334 = scalar_lea.vmem %s4, %s333
      %p335 = pneg %p199
      %p336 = pneg %p196
      %p337 = scmp.lt.s32.totalorder %s22, 1
      %s338 = scalar_select %p337, %s22, 1
      %s339 = smul.addr %s338, 2
      %s340 = scalar_lea.vmem %s5, %s339
      %p341 = pneg %p225
      %p342 = pneg %p222
      %p343 = scmp.lt.s32.totalorder %s22, 1
      %s344 = scalar_select %p343, %s22, 1
      %s345 = smul.addr %s344, 2
      %s346 = scalar_lea.vmem %s6, %s345
      %s347 = smul.u32 %s23, 2
      %s348 = ssub.s32 0, %s347
      %s349 = smul.u32 %s22, %s348
      %s350 = sadd.s32 %s23, %s349
      %s351 = smul.u32 2, %s350
      %p352 = scmp.lt.s32.totalorder %s351, 1
      %s353 = scalar_select %p352, %s351, 1
      %s354 = smul.addr %s353, 4
      %s355 = scalar_lea.vmem %s0, %s354
      %s356 = smul.u32 %s23, 2
      %s357 = ssub.s32 0, %s356
      %s358 = smul.u32 %s22, %s357
      %s359 = sadd.s32 %s23, %s358
      %s360 = smul.u32 2, %s359
      %p361 = scmp.lt.s32.totalorder %s22, 1
      %s362 = scalar_select %p361, %s22, 1
      %s363 = smul.addr %s362, 4
      %s364 = smul.addr %s363, 4
      %s365 = scalar_lea.vmem %s1, %s364
      %p366 = scmp.lt.s32.totalorder %s22, 1
      %s367 = scalar_select %p366, %s22, 1
      %s368 = smul.addr %s367, 2
      %s369 = smul.addr %s368, 4
      %s370 = scalar_lea.vmem %s2, %s369
      %p371 = scmp.lt.s32.totalorder %s22, 1
      %s372 = scalar_select %p371, %s22, 1
      %s373 = scalar_lea.vmem %s3, %s372
      %s374 = smul.u32 %s23, 2
      %s375 = ssub.s32 0, %s374
      %s376 = smul.u32 %s22, %s375
      %s377 = sadd.s32 %s23, %s376
      %s378 = smul.u32 8, %s377
      %p379 = scmp.lt.s32.totalorder %s22, 1
      %s380 = scalar_select %p379, %s22, 1
      %p381 = scmp.lt.s32.totalorder %s378, 7
      %s382 = scalar_select %p381, %s378, 7
      %s383 = smul.addr %s380, 8
      %s384 = sadd.s32 %s382, %s383
      %s385 = smul.addr %s384, 2
      %s386 = scalar_lea.vmem %s4, %s385
      %s387 = smul.u32 %s23, 2
      %s388 = ssub.s32 0, %s387
      %s389 = smul.u32 %s22, %s388
      %s390 = sadd.s32 %s23, %s389
      %s391 = smul.u32 8, %s390
      %p392 = scmp.lt.s32.totalorder %s22, 1
      %s393 = scalar_select %p392, %s22, 1
      %s394 = smul.addr %s393, 2
      %s395 = scalar_lea.vmem %s5, %s394
      %p396 = scmp.lt.s32.totalorder %s22, 1
      %s397 = scalar_select %p396, %s22, 1
      %s398 = smul.addr %s397, 2
      %s399 = scalar_lea.vmem %s6, %s398
      %p401 = scmp.eq.s32.totalorder %s23, 0
      // Predicated region
      $region37: #{rnn_forward.3} parent=35 // pred_check
        %p402 = pneg %p401
      $region38: #{rnn_forward.3} parent=35 // pred_check_branch
        %404 = sbr.rel (%p402) target = $region40
      $region39: #{rnn_forward.3} parent=35 // pred_region
        %vm405 = vcmask 123904
        %406 = vst.msk [vmem:[#allocation2] sm:$0x3] %vm405, 0.0
        %407 = vst.msk [vmem:[#allocation3] sm:$0x3] %vm405, 0.0
      $region40: #{rnn_forward.3} parent=35 // pred_fallthru
        _
      %v408 = vld [vmem:[%s355] sm:$0xf]
      %v409 = vld [vmem:[%s355 + $0x4] sm:$0xf]
      %v410 = vld [vmem:[%s365] sm:$0xf]
      %v411 = vld [vmem:[%s365 + $0x4] sm:$0xf]
      %v412 = vld [vmem:[%s365 + $0x8] sm:$0xf]
      %v413 = vld [vmem:[%s365 + $0xc] sm:$0xf]
      %v414 = vld [vmem:[%s373] sm:$0x1]
      %v416 = vlaneseq
      %v417 = vshrl.u32 %v416, 7
      %v418 = vsub.s32 0, %v417
      %v419 = vrot.slane %v414, %v418
      %v423 = vunpack.c.l.b16 %v408
      %v424 = vunpack.c.l.b16 %v409
      %v425 = vpack.c.b16 %v424, %v423
      %v430 = vunpack.c.l.b16 %v410
      %v431 = vunpack.c.l.b16 %v411
      %v432 = vunpack.c.l.b16 %v412
      %v433 = vunpack.c.l.b16 %v413
      %v434 = vpack.c.b16 %v431, %v430
      %v435 = vpack.c.b16 %v433, %v432
      %vm438 = vcmask 261120
      %v440 = vsel %vm438, %v425, 0
      %442 = vmatprep.subr.bf16.mxu0 0
      %443 = vmatpush1.bf16.msra.mxu0 %v434
      %444 = vmatprep.subr.bf16.mxu0 0
      %445 = vmatpush1.bf16.msra.mxu0 %v435
      %446 = vmatprep.subr.bf16.mxu0 0
      %447 = vmatpush1.bf16.msra.mxu0 0
      %448 = vmatprep.subr.bf16.mxu0 0
      %449 = vmatpush1.bf16.msra.mxu0 0
      %450 = vmatprep.subr.bf16.mxu0 0
      %451 = vmatpush1.bf16.msra.mxu0 0
      %452 = vmatprep.subr.bf16.mxu0 0
      %453 = vmatpush1.bf16.msra.mxu0 0
      %454 = vmatprep.subr.bf16.mxu0 0
      %455 = vmatpush1.bf16.msra.mxu0 0
      %456 = vmatprep.subr.bf16.mxu0 0
      %457 = vmatpush1.bf16.msra.mxu0 0
      %458 = vmatprep.subr.bf16.mxu0 0
      %459 = vmatpush1.bf16.msra.mxu0 0
      %460 = vmatprep.subr.bf16.mxu0 0
      %461 = vmatpush1.bf16.msra.mxu0 0
      %462 = vmatprep.subr.bf16.mxu0 0
      %463 = vmatpush1.bf16.msra.mxu0 0
      %464 = vmatprep.subr.bf16.mxu0 0
      %465 = vmatpush1.bf16.msra.mxu0 0
      %466 = vmatprep.subr.bf16.mxu0 0
      %467 = vmatpush1.bf16.msra.mxu0 0
      %468 = vmatprep.subr.bf16.mxu0 0
      %469 = vmatpush1.bf16.msra.mxu0 0
      %470 = vmatprep.subr.bf16.mxu0 0
      %471 = vmatpush1.bf16.msra.mxu0 0
      %472 = vmatprep.subr.bf16.mxu0 0
      %473 = vmatpush1.bf16.msra.mxu0 0
      %474 = vmatprep.mubr.bf16.mxu0 0
      %475 = vmatmul.mubr.bf16.gmra.mrb[0].mxu0 %v440
      %v476 = vpop.f32.mrb[0].mxu0
      %v477 = vadd.f32 %v419, %v476
      %v478 = vpop.f32.mrb[0].mxu0
      %v479 = vpop.f32.mrb[0].mxu0
      %v480 = vadd.f32 %v419, %v479
      %v481 = vpop.f32.mrb[0].mxu0
      %482 = vdwg.mxu0
      %vm483 = vcmask 517120
      %484 = vst.msk [vmem:[#allocation4] sm:$0x3] %vm483, %v477
      %s485 = scalar_lea.vmem [#allocation4], 2
      %vm486 = vcmask 519170
      %487 = vst.msk [vmem:[%s485 - $0x2] sm:$0xc] %vm486, %v477
      %s488 = scalar_lea.vmem [#allocation4], 4
      %vm489 = vcmask 521220
      %490 = vst.msk [vmem:[%s488 - $0x4] sm:$0x30] %vm489, %v477
      %s491 = scalar_lea.vmem [#allocation4], 6
      %vm492 = vcmask 523270
      %493 = vst.msk [vmem:[%s491 - $0x6] sm:$0xc0] %vm492, %v477
      %s494 = scalar_lea.vmem [#allocation4], 8
      %495 = vst.msk [vmem:[%s494] sm:$0x3] %vm483, %v480
      %s496 = scalar_lea.vmem [#allocation4], 10
      %497 = vst.msk [vmem:[%s496 - $0x2] sm:$0xc] %vm486, %v480
      %s498 = scalar_lea.vmem [#allocation4], 12
      %499 = vst.msk [vmem:[%s498 - $0x4] sm:$0x30] %vm489, %v480
      %s500 = scalar_lea.vmem [#allocation4], 14
      %501 = vst.msk [vmem:[%s500 - $0x6] sm:$0xc0] %vm492, %v480
      %v502 = vld [vmem:[%s370] sm:$0xf]
      %v503 = vld [vmem:[%s370 + $0x4] sm:$0xf]
      %v504 = vld [vmem:[#allocation2] sm:$0x3]
      %v505 = vld [vmem:[#allocation3] sm:$0x3]
      %s506 = smul.u32 %s22, 7
      %s507 = smul.u32 %s506, 2
      %s508 = scalar_lea.vmem [#allocation4], %s507
      %v509 = vld [vmem:[%s508] sm:$0x3]
      %v510 = vpack.c.bf16 %v504, %v504
      %v513 = vunpack.c.l.b16 %v502
      %v514 = vunpack.c.l.b16 %v503
      %v515 = vpack.c.b16 %v514, %v513
      %vm517 = vcmask 130048
      %v519 = vsel %vm517, %v510, 0
      %521 = vmatprep.subr.bf16.mxu0 0
      %522 = vmatpush1.bf16.msra.mxu0 %v515
      %523 = vmatprep.subr.bf16.mxu0 0
      %524 = vmatpush1.bf16.msra.mxu0 0
      %525 = vmatprep.subr.bf16.mxu0 0
      %526 = vmatpush1.bf16.msra.mxu0 0
      %527 = vmatprep.subr.bf16.mxu0 0
      %528 = vmatpush1.bf16.msra.mxu0 0
      %529 = vmatprep.subr.bf16.mxu0 0
      %530 = vmatpush1.bf16.msra.mxu0 0
      %531 = vmatprep.subr.bf16.mxu0 0
      %532 = vmatpush1.bf16.msra.mxu0 0
      %533 = vmatprep.subr.bf16.mxu0 0
      %534 = vmatpush1.bf16.msra.mxu0 0
      %535 = vmatprep.subr.bf16.mxu0 0
      %536 = vmatpush1.bf16.msra.mxu0 0
      %537 = vmatprep.subr.bf16.mxu0 0
      %538 = vmatpush1.bf16.msra.mxu0 0
      %539 = vmatprep.subr.bf16.mxu0 0
      %540 = vmatpush1.bf16.msra.mxu0 0
      %541 = vmatprep.subr.bf16.mxu0 0
      %542 = vmatpush1.bf16.msra.mxu0 0
      %543 = vmatprep.subr.bf16.mxu0 0
      %544 = vmatpush1.bf16.msra.mxu0 0
      %545 = vmatprep.subr.bf16.mxu0 0
      %546 = vmatpush1.bf16.msra.mxu0 0
      %547 = vmatprep.subr.bf16.mxu0 0
      %548 = vmatpush1.bf16.msra.mxu0 0
      %549 = vmatprep.subr.bf16.mxu0 0
      %550 = vmatpush1.bf16.msra.mxu0 0
      %551 = vmatprep.subr.bf16.mxu0 0
      %552 = vmatpush1.bf16.msra.mxu0 0
      %553 = vmatprep.mubr.bf16.mxu0 0
      %554 = vmatmul.mubr.bf16.gmra.mrb[0].mxu0 %v519
      %v555 = vpop.f32.mrb[0].mxu0
      %v556 = vadd.f32 0.0, %v555
      %v557 = vpop.f32.mrb[0].mxu0
      %v558 = vpop.f32.mrb[0].mxu0
      %v559 = vpop.f32.mrb[0].mxu0
      %560 = vdwg.mxu0
      %v561 = vadd.f32 %v509, %v556
      %v562 = vsub.f32 0.0, %v561
      %v563 = vmul.f32 %v562, 1.442695
      %v564 = vpow.pop %v563
      %v565 = vadd.f32 %v564, 1.0
      %v566 = vrcp.pop %v565
      %v567 = vtanh.pop %v561
      %569 = vrot.lane.b32.xlu0 %v505, 16
      %v570 = vpop.permute.xlu0 %569
      %v572 = vmul.f32 %v566, %v570
      %574 = vrot.lane.b32.xlu0 %v567, 96
      %v575 = vpop.permute.xlu0 %574
      %v577 = vmul.f32 %v566, %v575
      %579 = vrot.lane.b32.xlu0 %v577, 16
      %v580 = vpop.permute.xlu0 %579
      %v582 = vadd.f32 %v572, %v580
      %v583 = vtanh.pop %v582
      %585 = vrot.lane.b32.xlu0 %v583, 32
      %v586 = vpop.permute.xlu0 %585
      %v588 = vmul.f32 %v566, %v586
      %590 = vrot.lane.b32.xlu0 %v588, 80
      %v591 = vpop.permute.xlu0 %590
      %s593 = scalar_lea.vmem %s386, %s507
      %vm594 = vcmask 123904
      %595 = vst.msk [vmem:[%s593] sm:$0x3] %vm594, %v591
      %s596 = smul.u32 %s22, 5
      %s597 = sadd.s32 %s596, 1
      %s598 = smul.u32 %s597, 2
      %s599 = scalar_lea.vmem [#allocation4], %s598
      %v600 = vld [vmem:[%s599] sm:$0x3]
      %v601 = vpack.c.bf16 %v588, %v588
      %603 = vrot.lane.b32.xlu0 %v601, 80
      %v604 = vpop.permute.xlu0 %603
      %v606 = vsel %vm517, %v604, 0
      %608 = vmatprep.subr.bf16.mxu0 0
      %609 = vmatpush1.bf16.msra.mxu0 %v515
      %610 = vmatprep.subr.bf16.mxu0 0
      %611 = vmatpush1.bf16.msra.mxu0 0
      %612 = vmatprep.subr.bf16.mxu0 0
      %613 = vmatpush1.bf16.msra.mxu0 0
      %614 = vmatprep.subr.bf16.mxu0 0
      %615 = vmatpush1.bf16.msra.mxu0 0
      %616 = vmatprep.subr.bf16.mxu0 0
      %617 = vmatpush1.bf16.msra.mxu0 0
      %618 = vmatprep.subr.bf16.mxu0 0
      %619 = vmatpush1.bf16.msra.mxu0 0
      %620 = vmatprep.subr.bf16.mxu0 0
      %621 = vmatpush1.bf16.msra.mxu0 0
      %622 = vmatprep.subr.bf16.mxu0 0
      %623 = vmatpush1.bf16.msra.mxu0 0
      %624 = vmatprep.subr.bf16.mxu0 0
      %625 = vmatpush1.bf16.msra.mxu0 0
      %626 = vmatprep.subr.bf16.mxu0 0
      %627 = vmatpush1.bf16.msra.mxu0 0
      %628 = vmatprep.subr.bf16.mxu0 0
      %629 = vmatpush1.bf16.msra.mxu0 0
      %630 = vmatprep.subr.bf16.mxu0 0
      %631 = vmatpush1.bf16.msra.mxu0 0
      %632 = vmatprep.subr.bf16.mxu0 0
      %633 = vmatpush1.bf16.msra.mxu0 0
      %634 = vmatprep.subr.bf16.mxu0 0
      %635 = vmatpush1.bf16.msra.mxu0 0
      %636 = vmatprep.subr.bf16.mxu0 0
      %637 = vmatpush1.bf16.msra.mxu0 0
      %638 = vmatprep.subr.bf16.mxu0 0
      %639 = vmatpush1.bf16.msra.mxu0 0
      %640 = vmatprep.mubr.bf16.mxu0 0
      %641 = vmatmul.mubr.bf16.gmra.mrb[0].mxu0 %v606
      %v642 = vpop.f32.mrb[0].mxu0
      %v643 = vadd.f32 0.0, %v642
      %v644 = vpop.f32.mrb[0].mxu0
      %v645 = vpop.f32.mrb[0].mxu0
      %v646 = vpop.f32.mrb[0].mxu0
      %647 = vdwg.mxu0
      %v648 = vadd.f32 %v600, %v643
      %v649 = vsub.f32 0.0, %v648
      %v650 = vmul.f32 %v649, 1.442695
      %v651 = vpow.pop %v650
      %v652 = vadd.f32 %v651, 1.0
      %v653 = vrcp.pop %v652
      %v654 = vtanh.pop %v648
      %v655 = vmul.f32 %v653, %v582
      %657 = vrot.lane.b32.xlu0 %v654, 96
      %v658 = vpop.permute.xlu0 %657
      %v660 = vmul.f32 %v653, %v658
      %662 = vrot.lane.b32.xlu0 %v660, 16
      %v663 = vpop.permute.xlu0 %662
      %v665 = vadd.f32 %v655, %v663
      %v666 = vtanh.pop %v665
      %668 = vrot.lane.b32.xlu0 %v666, 32
      %v669 = vpop.permute.xlu0 %668
      %v671 = vmul.f32 %v653, %v669
      %673 = vrot.lane.b32.xlu0 %v671, 80
      %v674 = vpop.permute.xlu0 %673
      %s676 = scalar_lea.vmem %s386, %s598
      %677 = vst.msk [vmem:[%s676] sm:$0x3] %vm594, %v674
      %s678 = smul.u32 %s22, 3
      %s679 = sadd.s32 %s678, 2
      %s680 = smul.u32 %s679, 2
      %s681 = scalar_lea.vmem [#allocation4], %s680
      %v682 = vld [vmem:[%s681] sm:$0x3]
      %v683 = vpack.c.bf16 %v671, %v671
      %685 = vrot.lane.b32.xlu0 %v683, 80
      %v686 = vpop.permute.xlu0 %685
      %v688 = vsel %vm517, %v686, 0
      %690 = vmatprep.subr.bf16.mxu0 0
      %691 = vmatpush1.bf16.msra.mxu0 %v515
      %692 = vmatprep.subr.bf16.mxu0 0
      %693 = vmatpush1.bf16.msra.mxu0 0
      %694 = vmatprep.subr.bf16.mxu0 0
      %695 = vmatpush1.bf16.msra.mxu0 0
      %696 = vmatprep.subr.bf16.mxu0 0
      %697 = vmatpush1.bf16.msra.mxu0 0
      %698 = vmatprep.subr.bf16.mxu0 0
      %699 = vmatpush1.bf16.msra.mxu0 0
      %700 = vmatprep.subr.bf16.mxu0 0
      %701 = vmatpush1.bf16.msra.mxu0 0
      %702 = vmatprep.subr.bf16.mxu0 0
      %703 = vmatpush1.bf16.msra.mxu0 0
      %704 = vmatprep.subr.bf16.mxu0 0
      %705 = vmatpush1.bf16.msra.mxu0 0
      %706 = vmatprep.subr.bf16.mxu0 0
      %707 = vmatpush1.bf16.msra.mxu0 0
      %708 = vmatprep.subr.bf16.mxu0 0
      %709 = vmatpush1.bf16.msra.mxu0 0
      %710 = vmatprep.subr.bf16.mxu0 0
      %711 = vmatpush1.bf16.msra.mxu0 0
      %712 = vmatprep.subr.bf16.mxu0 0
      %713 = vmatpush1.bf16.msra.mxu0 0
      %714 = vmatprep.subr.bf16.mxu0 0
      %715 = vmatpush1.bf16.msra.mxu0 0
      %716 = vmatprep.subr.bf16.mxu0 0
      %717 = vmatpush1.bf16.msra.mxu0 0
      %718 = vmatprep.subr.bf16.mxu0 0
      %719 = vmatpush1.bf16.msra.mxu0 0
      %720 = vmatprep.subr.bf16.mxu0 0
      %721 = vmatpush1.bf16.msra.mxu0 0
      %722 = vmatprep.mubr.bf16.mxu0 0
      %723 = vmatmul.mubr.bf16.gmra.mrb[0].mxu0 %v688
      %v724 = vpop.f32.mrb[0].mxu0
      %v725 = vadd.f32 0.0, %v724
      %v726 = vpop.f32.mrb[0].mxu0
      %v727 = vpop.f32.mrb[0].mxu0
      %v728 = vpop.f32.mrb[0].mxu0
      %729 = vdwg.mxu0
      %v730 = vadd.f32 %v682, %v725
      %v731 = vsub.f32 0.0, %v730
      %v732 = vmul.f32 %v731, 1.442695
      %v733 = vpow.pop %v732
      %v734 = vadd.f32 %v733, 1.0
      %v735 = vrcp.pop %v734
      %v736 = vtanh.pop %v730
      %v737 = vmul.f32 %v735, %v665
      %739 = vrot.lane.b32.xlu0 %v736, 96
      %v740 = vpop.permute.xlu0 %739
      %v742 = vmul.f32 %v735, %v740
      %744 = vrot.lane.b32.xlu0 %v742, 16
      %v745 = vpop.permute.xlu0 %744
      %v747 = vadd.f32 %v737, %v745
      %v748 = vtanh.pop %v747
      %750 = vrot.lane.b32.xlu0 %v748, 32
      %v751 = vpop.permute.xlu0 %750
      %v753 = vmul.f32 %v735, %v751
      %755 = vrot.lane.b32.xlu0 %v753, 80
      %v756 = vpop.permute.xlu0 %755
      %s758 = scalar_lea.vmem %s386, %s680
      %759 = vst.msk [vmem:[%s758] sm:$0x3] %vm594, %v756
      %s760 = sadd.s32 %s22, 3
      %s761 = smul.u32 %s760, 2
      %s762 = scalar_lea.vmem [#allocation4], %s761
      %v763 = vld [vmem:[%s762] sm:$0x3]
      %v764 = vpack.c.bf16 %v753, %v753
      %766 = vrot.lane.b32.xlu0 %v764, 80
      %v767 = vpop.permute.xlu0 %766
      %v769 = vsel %vm517, %v767, 0
      %771 = vmatprep.subr.bf16.mxu0 0
      %772 = vmatpush1.bf16.msra.mxu0 %v515
      %773 = vmatprep.subr.bf16.mxu0 0
      %774 = vmatpush1.bf16.msra.mxu0 0
      %775 = vmatprep.subr.bf16.mxu0 0
      %776 = vmatpush1.bf16.msra.mxu0 0
      %777 = vmatprep.subr.bf16.mxu0 0
      %778 = vmatpush1.bf16.msra.mxu0 0
      %779 = vmatprep.subr.bf16.mxu0 0
      %780 = vmatpush1.bf16.msra.mxu0 0
      %781 = vmatprep.subr.bf16.mxu0 0
      %782 = vmatpush1.bf16.msra.mxu0 0
      %783 = vmatprep.subr.bf16.mxu0 0
      %784 = vmatpush1.bf16.msra.mxu0 0
      %785 = vmatprep.subr.bf16.mxu0 0
      %786 = vmatpush1.bf16.msra.mxu0 0
      %787 = vmatprep.subr.bf16.mxu0 0
      %788 = vmatpush1.bf16.msra.mxu0 0
      %789 = vmatprep.subr.bf16.mxu0 0
      %790 = vmatpush1.bf16.msra.mxu0 0
      %791 = vmatprep.subr.bf16.mxu0 0
      %792 = vmatpush1.bf16.msra.mxu0 0
      %793 = vmatprep.subr.bf16.mxu0 0
      %794 = vmatpush1.bf16.msra.mxu0 0
      %795 = vmatprep.subr.bf16.mxu0 0
      %796 = vmatpush1.bf16.msra.mxu0 0
      %797 = vmatprep.subr.bf16.mxu0 0
      %798 = vmatpush1.bf16.msra.mxu0 0
      %799 = vmatprep.subr.bf16.mxu0 0
      %800 = vmatpush1.bf16.msra.mxu0 0
      %801 = vmatprep.subr.bf16.mxu0 0
      %802 = vmatpush1.bf16.msra.mxu0 0
      %803 = vmatprep.mubr.bf16.mxu0 0
      %804 = vmatmul.mubr.bf16.gmra.mrb[0].mxu0 %v769
      %v805 = vpop.f32.mrb[0].mxu0
      %v806 = vadd.f32 0.0, %v805
      %v807 = vpop.f32.mrb[0].mxu0
      %v808 = vpop.f32.mrb[0].mxu0
      %v809 = vpop.f32.mrb[0].mxu0
      %810 = vdwg.mxu0
      %v811 = vadd.f32 %v763, %v806
      %v812 = vsub.f32 0.0, %v811
      %v813 = vmul.f32 %v812, 1.442695
      %v814 = vpow.pop %v813
      %v815 = vadd.f32 %v814, 1.0
      %v816 = vrcp.pop %v815
      %v817 = vtanh.pop %v811
      %v818 = vmul.f32 %v816, %v747
      %820 = vrot.lane.b32.xlu0 %v817, 96
      %v821 = vpop.permute.xlu0 %820
      %v823 = vmul.f32 %v816, %v821
      %825 = vrot.lane.b32.xlu0 %v823, 16
      %v826 = vpop.permute.xlu0 %825
      %v828 = vadd.f32 %v818, %v826
      %v829 = vtanh.pop %v828
      %831 = vrot.lane.b32.xlu0 %v829, 32
      %v832 = vpop.permute.xlu0 %831
      %v834 = vmul.f32 %v816, %v832
      %836 = vrot.lane.b32.xlu0 %v834, 80
      %v837 = vpop.permute.xlu0 %836
      %s839 = scalar_lea.vmem %s386, %s761
      %840 = vst.msk [vmem:[%s839] sm:$0x3] %vm594, %v837
      %s841 = ssub.s32 4, %s22
      %s842 = smul.u32 %s841, 2
      %s843 = scalar_lea.vmem [#allocation4], %s842
      %v844 = vld [vmem:[%s843] sm:$0x3]
      %v845 = vpack.c.bf16 %v834, %v834
      %847 = vrot.lane.b32.xlu0 %v845, 80
      %v848 = vpop.permute.xlu0 %847
      %v850 = vsel %vm517, %v848, 0
      %852 = vmatprep.subr.bf16.mxu0 0
      %853 = vmatpush1.bf16.msra.mxu0 %v515
      %854 = vmatprep.subr.bf16.mxu0 0
      %855 = vmatpush1.bf16.msra.mxu0 0
      %856 = vmatprep.subr.bf16.mxu0 0
      %857 = vmatpush1.bf16.msra.mxu0 0
      %858 = vmatprep.subr.bf16.mxu0 0
      %859 = vmatpush1.bf16.msra.mxu0 0
      %860 = vmatprep.subr.bf16.mxu0 0
      %861 = vmatpush1.bf16.msra.mxu0 0
      %862 = vmatprep.subr.bf16.mxu0 0
      %863 = vmatpush1.bf16.msra.mxu0 0
      %864 = vmatprep.subr.bf16.mxu0 0
      %865 = vmatpush1.bf16.msra.mxu0 0
      %866 = vmatprep.subr.bf16.mxu0 0
      %867 = vmatpush1.bf16.msra.mxu0 0
      %868 = vmatprep.subr.bf16.mxu0 0
      %869 = vmatpush1.bf16.msra.mxu0 0
      %870 = vmatprep.subr.bf16.mxu0 0
      %871 = vmatpush1.bf16.msra.mxu0 0
      %872 = vmatprep.subr.bf16.mxu0 0
      %873 = vmatpush1.bf16.msra.mxu0 0
      %874 = vmatprep.subr.bf16.mxu0 0
      %875 = vmatpush1.bf16.msra.mxu0 0
      %876 = vmatprep.subr.bf16.mxu0 0
      %877 = vmatpush1.bf16.msra.mxu0 0
      %878 = vmatprep.subr.bf16.mxu0 0
      %879 = vmatpush1.bf16.msra.mxu0 0
      %880 = vmatprep.subr.bf16.mxu0 0
      %881 = vmatpush1.bf16.msra.mxu0 0
      %882 = vmatprep.subr.bf16.mxu0 0
      %883 = vmatpush1.bf16.msra.mxu0 0
      %884 = vmatprep.mubr.bf16.mxu0 0
      %885 = vmatmul.mubr.bf16.gmra.mrb[0].mxu0 %v850
      %v886 = vpop.f32.mrb[0].mxu0
      %v887 = vadd.f32 0.0, %v886
      %v888 = vpop.f32.mrb[0].mxu0
      %v889 = vpop.f32.mrb[0].mxu0
      %v890 = vpop.f32.mrb[0].mxu0
      %891 = vdwg.mxu0
      %v892 = vadd.f32 %v844, %v887
      %v893 = vsub.f32 0.0, %v892
      %v894 = vmul.f32 %v893, 1.442695
      %v895 = vpow.pop %v894
      %v896 = vadd.f32 %v895, 1.0
      %v897 = vrcp.pop %v896
      %v898 = vtanh.pop %v892
      %v899 = vmul.f32 %v897, %v828
      %901 = vrot.lane.b32.xlu0 %v898, 96
      %v902 = vpop.permute.xlu0 %901
      %v904 = vmul.f32 %v897, %v902
      %906 = vrot.lane.b32.xlu0 %v904, 16
      %v907 = vpop.permute.xlu0 %906
      %v909 = vadd.f32 %v899, %v907
      %v910 = vtanh.pop %v909
      %912 = vrot.lane.b32.xlu0 %v910, 32
      %v913 = vpop.permute.xlu0 %912
      %v915 = vmul.f32 %v897, %v913
      %917 = vrot.lane.b32.xlu0 %v915, 80
      %v918 = vpop.permute.xlu0 %917
      %s920 = scalar_lea.vmem %s386, %s842
      %921 = vst.msk [vmem:[%s920] sm:$0x3] %vm594, %v918
      %s922 = smul.u32 %s22, 4294967293
      %s923 = sadd.s32 %s922, 5
      %s924 = smul.u32 %s923, 2
      %s925 = scalar_lea.vmem [#allocation4], %s924
      %v926 = vld [vmem:[%s925] sm:$0x3]
      %v927 = vpack.c.bf16 %v915, %v915
      %929 = vrot.lane.b32.xlu0 %v927, 80
      %v930 = vpop.permute.xlu0 %929
      %v932 = vsel %vm517, %v930, 0
      %934 = vmatprep.subr.bf16.mxu0 0
      %935 = vmatpush1.bf16.msra.mxu0 %v515
      %936 = vmatprep.subr.bf16.mxu0 0
      %937 = vmatpush1.bf16.msra.mxu0 0
      %938 = vmatprep.subr.bf16.mxu0 0
      %939 = vmatpush1.bf16.msra.mxu0 0
      %940 = vmatprep.subr.bf16.mxu0 0
      %941 = vmatpush1.bf16.msra.mxu0 0
      %942 = vmatprep.subr.bf16.mxu0 0
      %943 = vmatpush1.bf16.msra.mxu0 0
      %944 = vmatprep.subr.bf16.mxu0 0
      %945 = vmatpush1.bf16.msra.mxu0 0
      %946 = vmatprep.subr.bf16.mxu0 0
      %947 = vmatpush1.bf16.msra.mxu0 0
      %948 = vmatprep.subr.bf16.mxu0 0
      %949 = vmatpush1.bf16.msra.mxu0 0
      %950 = vmatprep.subr.bf16.mxu0 0
      %951 = vmatpush1.bf16.msra.mxu0 0
      %952 = vmatprep.subr.bf16.mxu0 0
      %953 = vmatpush1.bf16.msra.mxu0 0
      %954 = vmatprep.subr.bf16.mxu0 0
      %955 = vmatpush1.bf16.msra.mxu0 0
      %956 = vmatprep.subr.bf16.mxu0 0
      %957 = vmatpush1.bf16.msra.mxu0 0
      %958 = vmatprep.subr.bf16.mxu0 0
      %959 = vmatpush1.bf16.msra.mxu0 0
      %960 = vmatprep.subr.bf16.mxu0 0
      %961 = vmatpush1.bf16.msra.mxu0 0
      %962 = vmatprep.subr.bf16.mxu0 0
      %963 = vmatpush1.bf16.msra.mxu0 0
      %964 = vmatprep.subr.bf16.mxu0 0
      %965 = vmatpush1.bf16.msra.mxu0 0
      %966 = vmatprep.mubr.bf16.mxu0 0
      %967 = vmatmul.mubr.bf16.gmra.mrb[0].mxu0 %v932
      %v968 = vpop.f32.mrb[0].mxu0
      %v969 = vadd.f32 0.0, %v968
      %v970 = vpop.f32.mrb[0].mxu0
      %v971 = vpop.f32.mrb[0].mxu0
      %v972 = vpop.f32.mrb[0].mxu0
      %973 = vdwg.mxu0
      %v974 = vadd.f32 %v926, %v969
      %v975 = vsub.f32 0.0, %v974
      %v976 = vmul.f32 %v975, 1.442695
      %v977 = vpow.pop %v976
      %v978 = vadd.f32 %v977, 1.0
      %v979 = vrcp.pop %v978
      %v980 = vtanh.pop %v974
      %v981 = vmul.f32 %v979, %v909
      %983 = vrot.lane.b32.xlu0 %v980, 96
      %v984 = vpop.permute.xlu0 %983
      %v986 = vmul.f32 %v979, %v984
      %988 = vrot.lane.b32.xlu0 %v986, 16
      %v989 = vpop.permute.xlu0 %988
      %v991 = vadd.f32 %v981, %v989
      %v992 = vtanh.pop %v991
      %994 = vrot.lane.b32.xlu0 %v992, 32
      %v995 = vpop.permute.xlu0 %994
      %v997 = vmul.f32 %v979, %v995
      %999 = vrot.lane.b32.xlu0 %v997, 80
      %v1000 = vpop.permute.xlu0 %999
      %s1002 = scalar_lea.vmem %s386, %s924
      %1003 = vst.msk [vmem:[%s1002] sm:$0x3] %vm594, %v1000
      %s1004 = smul.u32 %s22, 4294967291
      %s1005 = sadd.s32 %s1004, 6
      %s1006 = smul.u32 %s1005, 2
      %s1007 = scalar_lea.vmem [#allocation4], %s1006
      %v1008 = vld [vmem:[%s1007] sm:$0x3]
      %v1009 = vpack.c.bf16 %v997, %v997
      %1011 = vrot.lane.b32.xlu0 %v1009, 80
      %v1012 = vpop.permute.xlu0 %1011
      %v1014 = vsel %vm517, %v1012, 0
      %1016 = vmatprep.subr.bf16.mxu0 0
      %1017 = vmatpush1.bf16.msra.mxu0 %v515
      %1018 = vmatprep.subr.bf16.mxu0 0
      %1019 = vmatpush1.bf16.msra.mxu0 0
      %1020 = vmatprep.subr.bf16.mxu0 0
      %1021 = vmatpush1.bf16.msra.mxu0 0
      %1022 = vmatprep.subr.bf16.mxu0 0
      %1023 = vmatpush1.bf16.msra.mxu0 0
      %1024 = vmatprep.subr.bf16.mxu0 0
      %1025 = vmatpush1.bf16.msra.mxu0 0
      %1026 = vmatprep.subr.bf16.mxu0 0
      %1027 = vmatpush1.bf16.msra.mxu0 0
      %1028 = vmatprep.subr.bf16.mxu0 0
      %1029 = vmatpush1.bf16.msra.mxu0 0
      %1030 = vmatprep.subr.bf16.mxu0 0
      %1031 = vmatpush1.bf16.msra.mxu0 0
      %1032 = vmatprep.subr.bf16.mxu0 0
      %1033 = vmatpush1.bf16.msra.mxu0 0
      %1034 = vmatprep.subr.bf16.mxu0 0
      %1035 = vmatpush1.bf16.msra.mxu0 0
      %1036 = vmatprep.subr.bf16.mxu0 0
      %1037 = vmatpush1.bf16.msra.mxu0 0
      %1038 = vmatprep.subr.bf16.mxu0 0
      %1039 = vmatpush1.bf16.msra.mxu0 0
      %1040 = vmatprep.subr.bf16.mxu0 0
      %1041 = vmatpush1.bf16.msra.mxu0 0
      %1042 = vmatprep.subr.bf16.mxu0 0
      %1043 = vmatpush1.bf16.msra.mxu0 0
      %1044 = vmatprep.subr.bf16.mxu0 0
      %1045 = vmatpush1.bf16.msra.mxu0 0
      %1046 = vmatprep.subr.bf16.mxu0 0
      %1047 = vmatpush1.bf16.msra.mxu0 0
      %1048 = vmatprep.mubr.bf16.mxu0 0
      %1049 = vmatmul.mubr.bf16.gmra.mrb[0].mxu0 %v1014
      %v1050 = vpop.f32.mrb[0].mxu0
      %v1051 = vadd.f32 0.0, %v1050
      %v1052 = vpop.f32.mrb[0].mxu0
      %v1053 = vpop.f32.mrb[0].mxu0
      %v1054 = vpop.f32.mrb[0].mxu0
      %1055 = vdwg.mxu0
      %v1056 = vadd.f32 %v1008, %v1051
      %v1057 = vsub.f32 0.0, %v1056
      %v1058 = vmul.f32 %v1057, 1.442695
      %v1059 = vpow.pop %v1058
      %v1060 = vadd.f32 %v1059, 1.0
      %v1061 = vrcp.pop %v1060
      %v1062 = vtanh.pop %v1056
      %v1063 = vmul.f32 %v1061, %v991
      %1065 = vrot.lane.b32.xlu0 %v1062, 96
      %v1066 = vpop.permute.xlu0 %1065
      %v1068 = vmul.f32 %v1061, %v1066
      %1070 = vrot.lane.b32.xlu0 %v1068, 16
      %v1071 = vpop.permute.xlu0 %1070
      %v1073 = vadd.f32 %v1063, %v1071
      %v1074 = vtanh.pop %v1073
      %1076 = vrot.lane.b32.xlu0 %v1074, 32
      %v1077 = vpop.permute.xlu0 %1076
      %v1079 = vmul.f32 %v1061, %v1077
      %1081 = vrot.lane.b32.xlu0 %v1079, 80
      %v1082 = vpop.permute.xlu0 %1081
      %s1084 = scalar_lea.vmem %s386, %s1006
      %1085 = vst.msk [vmem:[%s1084] sm:$0x3] %vm594, %v1082
      %s1086 = smul.u32 %s22, 4294967289
      %s1087 = sadd.s32 %s1086, 7
      %s1088 = smul.u32 %s1087, 2
      %s1089 = scalar_lea.vmem [#allocation4], %s1088
      %v1090 = vld [vmem:[%s1089] sm:$0x3]
      %v1091 = vpack.c.bf16 %v1079, %v1079
      %1093 = vrot.lane.b32.xlu0 %v1091, 80
      %v1094 = vpop.permute.xlu0 %1093
      %v1096 = vsel %vm517, %v1094, 0
      %1098 = vmatprep.subr.bf16.mxu0 0
      %1099 = vmatpush1.bf16.msra.mxu0 %v515
      %1100 = vmatprep.subr.bf16.mxu0 0
      %1101 = vmatpush1.bf16.msra.mxu0 0
      %1102 = vmatprep.subr.bf16.mxu0 0
      %1103 = vmatpush1.bf16.msra.mxu0 0
      %1104 = vmatprep.subr.bf16.mxu0 0
      %1105 = vmatpush1.bf16.msra.mxu0 0
      %1106 = vmatprep.subr.bf16.mxu0 0
      %1107 = vmatpush1.bf16.msra.mxu0 0
      %1108 = vmatprep.subr.bf16.mxu0 0
      %1109 = vmatpush1.bf16.msra.mxu0 0
      %1110 = vmatprep.subr.bf16.mxu0 0
      %1111 = vmatpush1.bf16.msra.mxu0 0
      %1112 = vmatprep.subr.bf16.mxu0 0
      %1113 = vmatpush1.bf16.msra.mxu0 0
      %1114 = vmatprep.subr.bf16.mxu0 0
      %1115 = vmatpush1.bf16.msra.mxu0 0
      %1116 = vmatprep.subr.bf16.mxu0 0
      %1117 = vmatpush1.bf16.msra.mxu0 0
      %1118 = vmatprep.subr.bf16.mxu0 0
      %1119 = vmatpush1.bf16.msra.mxu0 0
      %1120 = vmatprep.subr.bf16.mxu0 0
      %1121 = vmatpush1.bf16.msra.mxu0 0
      %1122 = vmatprep.subr.bf16.mxu0 0
      %1123 = vmatpush1.bf16.msra.mxu0 0
      %1124 = vmatprep.subr.bf16.mxu0 0
      %1125 = vmatpush1.bf16.msra.mxu0 0
      %1126 = vmatprep.subr.bf16.mxu0 0
      %1127 = vmatpush1.bf16.msra.mxu0 0
      %1128 = vmatprep.subr.bf16.mxu0 0
      %1129 = vmatpush1.bf16.msra.mxu0 0
      %1130 = vmatprep.mubr.bf16.mxu0 0
      %1131 = vmatmul.mubr.bf16.gmra.mrb[0].mxu0 %v1096
      %v1132 = vpop.f32.mrb[0].mxu0
      %v1133 = vadd.f32 0.0, %v1132
      %v1134 = vpop.f32.mrb[0].mxu0
      %v1135 = vpop.f32.mrb[0].mxu0
      %v1136 = vpop.f32.mrb[0].mxu0
      %1137 = vdwg.mxu0
      %v1138 = vadd.f32 %v1090, %v1133
      %v1139 = vsub.f32 0.0, %v1138
      %v1140 = vmul.f32 %v1139, 1.442695
      %v1141 = vpow.pop %v1140
      %v1142 = vadd.f32 %v1141, 1.0
      %v1143 = vrcp.pop %v1142
      %v1144 = vtanh.pop %v1138
      %v1145 = vmul.f32 %v1143, %v1073
      %1147 = vrot.lane.b32.xlu0 %v1144, 96
      %v1148 = vpop.permute.xlu0 %1147
      %v1150 = vmul.f32 %v1143, %v1148
      %1152 = vrot.lane.b32.xlu0 %v1150, 16
      %v1153 = vpop.permute.xlu0 %1152
      %v1155 = vadd.f32 %v1145, %v1153
      %v1156 = vtanh.pop %v1155
      %1158 = vrot.lane.b32.xlu0 %v1156, 32
      %v1159 = vpop.permute.xlu0 %1158
      %v1161 = vmul.f32 %v1143, %v1159
      %1163 = vrot.lane.b32.xlu0 %v1161, 80
      %v1164 = vpop.permute.xlu0 %1163
      %s1166 = scalar_lea.vmem %s386, %s1088
      %1167 = vst.msk [vmem:[%s1166] sm:$0x3] %vm594, %v1164
      %1168 = vst.msk [vmem:[#allocation2] sm:$0x3] %vm594, %v1164
      %1170 = vrot.lane.b32.xlu0 %v1155, 112
      %v1171 = vpop.permute.xlu0 %1170
      %1173 = vst.msk [vmem:[#allocation3] sm:$0x3] %vm594, %v1171
      // Predicated region
      $region41: #{rnn_forward.3} parent=35 // pred_check
        %p1174 = pneg %p401
      $region42: #{rnn_forward.3} parent=35 // pred_check_branch
        %1176 = sbr.rel (%p1174) target = $region44
      $region43: #{rnn_forward.3} parent=35 // pred_region
        %1177 = vst.msk [vmem:[%s395] sm:$0x3] %vm594, %v1164
        %1178 = vst.msk [vmem:[%s399] sm:$0x3] %vm594, %v1171
      $region44: #{rnn_forward.3} parent=35 // pred_fallthru
        _
      %s1179 = smul.u32 %s23, 2
      %s1180 = ssub.s32 0, %s1179
      %s1181 = smul.u32 %s22, %s1180
      %s1182 = sadd.s32 %s23, %s1181
      %s1183 = smul.u32 8, %s1182
      %p1184 = scmp.lt.s32.totalorder %s22, 1
      %s1185 = scalar_select %p1184, %s22, 1
      %p1186 = scmp.lt.s32.totalorder %s1183, 7
      %s1187 = scalar_select %p1186, %s1183, 7
      %s1188 = smul.addr %s1185, 8
      %s1189 = sadd.s32 %s1187, %s1188
      %s1190 = smul.addr %s1189, 2
      %s1191 = scalar_lea.vmem %s4, %s1190
      %p1192 = scmp.lt.s32.totalorder %s22, 1
      %s1193 = scalar_select %p1192, %s22, 1
      %s1194 = smul.addr %s1193, 2
      %s1195 = scalar_lea.vmem %s5, %s1194
      %p1196 = scmp.lt.s32.totalorder %s22, 1
      %s1197 = scalar_select %p1196, %s22, 1
      %s1198 = smul.addr %s1197, 2
      %s1199 = scalar_lea.vmem %s6, %s1198
      // Predicated region
      $region45: #{rnn_forward.3} parent=35 // pred_check
        %p1200 = pneg %p170
      $region46: #{rnn_forward.3} parent=35 // pred_check_branch
        %1202 = sbr.rel (%p1200) target = $region48
      $region47: #{rnn_forward.3} parent=35 // pred_region
        %s1203 = smul.u32 %s23, 2
        %s1204 = ssub.s32 0, %s1203
        %s1205 = smul.u32 %s22, %s1204
        %s1206 = sadd.s32 %s23, %s1205
        %s1207 = smul.u32 8, %s1206
      $region48: #{rnn_forward.3} parent=35 // pred_fallthru
        _
      // Predicated region
      $region49: #{rnn_forward.3} parent=35 // pred_check
        %p1208 = pneg %p196
      $region50: #{rnn_forward.3} parent=35 // pred_check_branch
        %1210 = sbr.rel (%p1208) target = $region52
      $region51: #{rnn_forward.3} parent=35 // pred_region
        _
      $region52: #{rnn_forward.3} parent=35 // pred_fallthru
        _
      // Predicated region
      $region53: #{rnn_forward.3} parent=35 // pred_check
        %p1211 = pneg %p222
      $region54: #{rnn_forward.3} parent=35 // pred_check_branch
        %1213 = sbr.rel (%p1211) target = $region56
      $region55: #{rnn_forward.3} parent=35 // pred_region
        _
      $region56: #{rnn_forward.3} parent=35 // pred_fallthru
        _
    $region36: #{rnn_forward.3} parent=5 // pred_fallthru
      _
    %p1214 = scmp.le.s32.totalorder 2, %s13
    // Predicated region
    $region57: #{rnn_forward.3} parent=5 // pred_check
      %p1215 = pneg %p1214
    $region58: #{rnn_forward.3} parent=5 // pred_check_branch
      %1217 = sbr.rel (%p1215) target = $region60
    $region59: #{rnn_forward.3} parent=5 // pred_region
      %s1218 = ssub.s32 %s13, 2
      // Predicated region
      $region61: #{rnn_forward.3} parent=59 // pred_check
        %p1219 = pneg %p176
      $region62: #{rnn_forward.3} parent=59 // pred_check_branch
        %1221 = sbr.rel (%p1219) target = $region64
      $region63: #{rnn_forward.3} parent=59 // pred_region
        %s1222 = smul.u32 %s25, 2
        %s1223 = ssub.s32 0, %s1222
        %s1224 = smul.u32 %s24, %s1223
        %s1225 = sadd.s32 %s25, %s1224
        %s1226 = smul.u32 8, %s1225
        %p1227 = scmp.lt.s32.totalorder %s24, 1
        %s1228 = scalar_select %p1227, %s24, 1
        %p1229 = scmp.lt.s32.totalorder %s1226, 7
        %s1230 = scalar_select %p1229, %s1226, 7
        %s1231 = smul.addr %s1228, 8
        %s1232 = sadd.s32 %s1230, %s1231
        %s1233 = smul.addr %s1232, 2
        %s1234 = scalar_lea.vmem %s4, %s1233
      $region64: #{rnn_forward.3} parent=59 // pred_fallthru
        _
      // Predicated region
      $region65: #{rnn_forward.3} parent=59 // pred_check
        %p1235 = pneg %p202
      $region66: #{rnn_forward.3} parent=59 // pred_check_branch
        %1237 = sbr.rel (%p1235) target = $region68
      $region67: #{rnn_forward.3} parent=59 // pred_region
        %p1238 = scmp.lt.s32.totalorder %s24, 1
        %s1239 = scalar_select %p1238, %s24, 1
        %s1240 = smul.addr %s1239, 2
        %s1241 = scalar_lea.vmem %s5, %s1240
      $region68: #{rnn_forward.3} parent=59 // pred_fallthru
        _
      // Predicated region
      $region69: #{rnn_forward.3} parent=59 // pred_check
        %p1242 = pneg %p228
      $region70: #{rnn_forward.3} parent=59 // pred_check_branch
        %1244 = sbr.rel (%p1242) target = $region72
      $region71: #{rnn_forward.3} parent=59 // pred_region
        %p1245 = scmp.lt.s32.totalorder %s24, 1
        %s1246 = scalar_select %p1245, %s24, 1
        %s1247 = smul.addr %s1246, 2
        %s1248 = scalar_lea.vmem %s6, %s1247
      $region72: #{rnn_forward.3} parent=59 // pred_fallthru
        _
    $region60: #{rnn_forward.3} parent=5 // pred_fallthru
      _
  $region6: #{rnn_forward.3} parent=0 // loop_footer
    %s17 = sadd.s32 1, %s13
  $region7: #{rnn_forward.3} parent=0 // loop_footer_branch
    %12 = sbr.rel target = $region3
  $region8: #{rnn_forward.3} parent=0 // loop_exit
    _

// kernel: rnn_forward.2
$region0: #{rnn_forward.2}
  #allocation0 [shape = 'u32[]', space=smem, size = 0x4, offset = 0x4, fixed_abs, tag = 'smem constant byte address 0x4 - core index']
  #allocation1 [shape = 'u32[144,128]{1,0:T(1,128)}', space=vmem, size = 0x12000, scoped, tag = 'internal scratch']
  #allocation2 [shape = 'f32[2,16]{1,0:T(2,128)}', space=vmem, size = 0x400, scoped, tag = 'scratch operand']
  #allocation3 [shape = 'f32[2,16]{1,0:T(2,128)}', space=vmem, size = 0x400, scoped, tag = 'scratch operand']
  #allocation4 [shape = 'f32[8,2,64]{2,1,0:T(2,128)}', space=vmem, size = 0x2000, scoped, tag = 'scratch operand']
  %s0 = inlined_call_operand.vmem [shape: bf16[16,32], index: 0, kind: input, shape index: {}]
  %s1 = inlined_call_operand.vmem [shape: bf16[2,32,64], index: 1, kind: input, shape index: {}]
  %s2 = inlined_call_operand.vmem [shape: bf16[2,16,64], index: 2, kind: input, shape index: {}]
  %s3 = inlined_call_operand.vmem [shape: f32[2,1,64], index: 3, kind: input, shape index: {}]
  %s4 = inlined_call_operand.vmem [shape: bf16[2,8,2,16], index: 4, kind: output, shape index: {0}]
  %s5 = inlined_call_operand.vmem [shape: f32[2,2,16], index: 5, kind: output, shape index: {1}]
  %s6 = inlined_call_operand.vmem [shape: f32[2,2,16], index: 6, kind: output, shape index: {2}]
  %7 = xla_tuple %s4, %s5, %s6
  %s8 = sld [smem:[#allocation0]]
  $region73: #{rnn_forward.2} parent=0
    _
  %s10 = ssub.s32 1, %s8
  %s11 = scalar_select 0, %s10, %s8
  loop: start=0, step=1, limit=4
  $region2: #{rnn_forward.2} parent=0 // loop_pre_header
    _
  $region3: #{rnn_forward.2} parent=0 // loop_header
    %s13 = sphi 0, %s17
    %p14 = scmp.ge.s32.totalorder %s13, 4
    %s20 = sphi 0, %s32
    %s21 = sphi 0, %s28
    %s22 = sphi 0, %s20
    %s23 = sphi 0, %s21
    %s24 = sphi 0, %s22
    %s25 = sphi 0, %s23
    %s43 = sphi 0, %s45
    %s46 = sphi 0, %s43
    %s47 = sphi 0, %s46
    %s63 = sphi 0, %s47
    %s69 = sphi 0, %s71
    %s72 = sphi 0, %s69
    %s73 = sphi 0, %s72
    %s89 = sphi 0, %s73
    %s95 = sphi 0, %s97
    %s98 = sphi 0, %s95
    %s99 = sphi 0, %s98
    %s115 = sphi 0, %s99
    %s121 = sphi 0, %s123
    %s124 = sphi 0, %s121
    %s125 = sphi 0, %s124
    %s141 = sphi 0, %s125
    %s157 = sphi 0, %s159
    %s160 = sphi 0, %s157
    %s161 = sphi 0, %s160
    %s177 = sphi 0, %s161
    %s183 = sphi 0, %s185
    %s186 = sphi 0, %s183
    %s187 = sphi 0, %s186
    %s203 = sphi 0, %s187
    %s209 = sphi 0, %s211
    %s212 = sphi 0, %s209
    %s213 = sphi 0, %s212
    %s229 = sphi 0, %s213
  $region4: #{rnn_forward.2} parent=0 // loop_header_branch
    %16 = sbr.rel (%p14) target = $region8
  $region5: #{rnn_forward.2} parent=0 // loop_body
    %s18 = ssub.s32 %s13, 1
    %s19 = ssub.s32 %s13, 2
    %s26 = sadd.s32 1, %s21
    %p27 = scmp.ge.s32.totalorder %s26, 1
    %s28 = scalar_select %p27, 0, %s26
    %s29 = sadd.s32 1, %s20
    %s30 = scalar_select %p27, %s29, %s20
    %p31 = scmp.ge.s32.totalorder %s30, 2
    %s32 = scalar_select %p31, 0, %s30
    %s33 = smul.u32 %s21, 2
    %s34 = ssub.s32 0, %s33
    %s35 = smul.u32 %s20, %s34
    %s36 = sadd.s32 %s21, %s35
    %s37 = smul.u32 %s28, 2
    %s38 = ssub.s32 0, %s37
    %s39 = smul.u32 %s32, %s38
    %s40 = sadd.s32 %s28, %s39
    %s41 = ssub.s32 %s36, %s40
    %p42 = scmp.eq.s32.totalorder %s41, 0
    %s44 = sadd.s32 %s43, 1
    %s45 = scalar_select %p42, %s43, %s44
    %p48 = pneg %p42
    %p49 = scmp.eq.s32.totalorder %s13, 1
    %p50 = por %p48, %p49
    %p51 = scmp.ne.s32.totalorder %s43, %s46
    %p52 = scmp.eq.s32.totalorder %s13, 0
    %p53 = por %p51, %p52
    %p54 = scmp.ne.s32.totalorder %s43, %s46
    %p55 = scmp.eq.s32.totalorder %s18, 1
    %p56 = por %p54, %p55
    %p57 = scmp.ne.s32.totalorder %s46, %s47
    %p58 = scmp.eq.s32.totalorder %s18, 0
    %p59 = por %p57, %p58
    %p60 = scmp.ne.s32.totalorder %s46, %s47
    %p61 = scmp.eq.s32.totalorder %s19, 1
    %p62 = por %p60, %p61
    %p64 = scmp.ne.s32.totalorder %s47, %s63
    %p65 = scmp.eq.s32.totalorder %s19, 0
    %p66 = por %p64, %p65
    %s67 = ssub.s32 %s20, %s32
    %p68 = scmp.eq.s32.totalorder %s67, 0
    %s70 = sadd.s32 %s69, 1
    %s71 = scalar_select %p68, %s69, %s70
    %p74 = pneg %p68
    %p75 = scmp.eq.s32.totalorder %s13, 1
    %p76 = por %p74, %p75
    %p77 = scmp.ne.s32.totalorder %s69, %s72
    %p78 = scmp.eq.s32.totalorder %s13, 0
    %p79 = por %p77, %p78
    %p80 = scmp.ne.s32.totalorder %s69, %s72
    %p81 = scmp.eq.s32.totalorder %s18, 1
    %p82 = por %p80, %p81
    %p83 = scmp.ne.s32.totalorder %s72, %s73
    %p84 = scmp.eq.s32.totalorder %s18, 0
    %p85 = por %p83, %p84
    %p86 = scmp.ne.s32.totalorder %s72, %s73
    %p87 = scmp.eq.s32.totalorder %s19, 1
    %p88 = por %p86, %p87
    %p90 = scmp.ne.s32.totalorder %s73, %s89
    %p91 = scmp.eq.s32.totalorder %s19, 0
    %p92 = por %p90, %p91
    %s93 = ssub.s32 %s20, %s32
    %p94 = scmp.eq.s32.totalorder %s93, 0
    %s96 = sadd.s32 %s95, 1
    %s97 = scalar_select %p94, %s95, %s96
    %p100 = pneg %p94
    %p101 = scmp.eq.s32.totalorder %s13, 1
    %p102 = por %p100, %p101
    %p103 = scmp.ne.s32.totalorder %s95, %s98
    %p104 = scmp.eq.s32.totalorder %s13, 0
    %p105 = por %p103, %p104
    %p106 = scmp.ne.s32.totalorder %s95, %s98
    %p107 = scmp.eq.s32.totalorder %s18, 1
    %p108 = por %p106, %p107
    %p109 = scmp.ne.s32.totalorder %s98, %s99
    %p110 = scmp.eq.s32.totalorder %s18, 0
    %p111 = por %p109, %p110
    %p112 = scmp.ne.s32.totalorder %s98, %s99
    %p113 = scmp.eq.s32.totalorder %s19, 1
    %p114 = por %p112, %p113
    %p116 = scmp.ne.s32.totalorder %s99, %s115
    %p117 = scmp.eq.s32.totalorder %s19, 0
    %p118 = por %p116, %p117
    %s119 = ssub.s32 %s20, %s32
    %p120 = scmp.eq.s32.totalorder %s119, 0
    %s122 = sadd.s32 %s121, 1
    %s123 = scalar_select %p120, %s121, %s122
    %p126 = pneg %p120
    %p127 = scmp.eq.s32.totalorder %s13, 1
    %p128 = por %p126, %p127
    %p129 = scmp.ne.s32.totalorder %s121, %s124
    %p130 = scmp.eq.s32.totalorder %s13, 0
    %p131 = por %p129, %p130
    %p132 = scmp.ne.s32.totalorder %s121, %s124
    %p133 = scmp.eq.s32.totalorder %s18, 1
    %p134 = por %p132, %p133
    %p135 = scmp.ne.s32.totalorder %s124, %s125
    %p136 = scmp.eq.s32.totalorder %s18, 0
    %p137 = por %p135, %p136
    %p138 = scmp.ne.s32.totalorder %s124, %s125
    %p139 = scmp.eq.s32.totalorder %s19, 1
    %p140 = por %p138, %p139
    %p142 = scmp.ne.s32.totalorder %s125, %s141
    %p143 = scmp.eq.s32.totalorder %s19, 0
    %p144 = por %p142, %p143
    %s145 = smul.u32 %s21, 2
    %s146 = ssub.s32 0, %s145
    %s147 = smul.u32 %s20, %s146
    %s148 = sadd.s32 %s21, %s147
    %s149 = smul.u32 %s28, 2
    %s150 = ssub.s32 0, %s149
    %s151 = smul.u32 %s32, %s150
    %s152 = sadd.s32 %s28, %s151
    %s153 = ssub.s32 %s20, %s32
    %s154 = ssub.s32 %s148, %s152
    %s155 = sor.u32 %s153, %s154
    %p156 = scmp.eq.s32.totalorder %s155, 0
    %s158 = sadd.s32 %s157, 1
    %s159 = scalar_select %p156, %s157, %s158
    %p162 = pneg %p156
    %p163 = scmp.eq.s32.totalorder %s13, 1
    %p164 = por %p162, %p163
    %p165 = scmp.ne.s32.totalorder %s157, %s160
    %p166 = scmp.eq.s32.totalorder %s13, 0
    %p167 = por %p165, %p166
    %p168 = scmp.ne.s32.totalorder %s157, %s160
    %p169 = scmp.eq.s32.totalorder %s18, 1
    %p170 = por %p168, %p169
    %p171 = scmp.ne.s32.totalorder %s160, %s161
    %p172 = scmp.eq.s32.totalorder %s18, 0
    %p173 = por %p171, %p172
    %p174 = scmp.ne.s32.totalorder %s160, %s161
    %p175 = scmp.eq.s32.totalorder %s19, 1
    %p176 = por %p174, %p175
    %p178 = scmp.ne.s32.totalorder %s161, %s177
    %p179 = scmp.eq.s32.totalorder %s19, 0
    %p180 = por %p178, %p179
    %s181 = ssub.s32 %s20, %s32
    %p182 = scmp.eq.s32.totalorder %s181, 0
    %s184 = sadd.s32 %s183, 1
    %s185 = scalar_select %p182, %s183, %s184
    %p188 = pneg %p182
    %p189 = scmp.eq.s32.totalorder %s13, 1
    %p190 = por %p188, %p189
    %p191 = scmp.ne.s32.totalorder %s183, %s186
    %p192 = scmp.eq.s32.totalorder %s13, 0
    %p193 = por %p191, %p192
    %p194 = scmp.ne.s32.totalorder %s183, %s186
    %p195 = scmp.eq.s32.totalorder %s18, 1
    %p196 = por %p194, %p195
    %p197 = scmp.ne.s32.totalorder %s186, %s187
    %p198 = scmp.eq.s32.totalorder %s18, 0
    %p199 = por %p197, %p198
    %p200 = scmp.ne.s32.totalorder %s186, %s187
    %p201 = scmp.eq.s32.totalorder %s19, 1
    %p202 = por %p200, %p201
    %p204 = scmp.ne.s32.totalorder %s187, %s203
    %p205 = scmp.eq.s32.totalorder %s19, 0
    %p206 = por %p204, %p205
    %s207 = ssub.s32 %s20, %s32
    %p208 = scmp.eq.s32.totalorder %s207, 0
    %s210 = sadd.s32 %s209, 1
    %s211 = scalar_select %p208, %s209, %s210
    %p214 = pneg %p208
    %p215 = scmp.eq.s32.totalorder %s13, 1
    %p216 = por %p214, %p215
    %p217 = scmp.ne.s32.totalorder %s209, %s212
    %p218 = scmp.eq.s32.totalorder %s13, 0
    %p219 = por %p217, %p218
    %p220 = scmp.ne.s32.totalorder %s209, %s212
    %p221 = scmp.eq.s32.totalorder %s18, 1
    %p222 = por %p220, %p221
    %p223 = scmp.ne.s32.totalorder %s212, %s213
    %p224 = scmp.eq.s32.totalorder %s18, 0
    %p225 = por %p223, %p224
    %p226 = scmp.ne.s32.totalorder %s212, %s213
    %p227 = scmp.eq.s32.totalorder %s19, 1
    %p228 = por %p226, %p227
    %p230 = scmp.ne.s32.totalorder %s213, %s229
    %p231 = scmp.eq.s32.totalorder %s19, 0
    %p232 = por %p230, %p231
    %p233 = scmp.le.s32.totalorder 1, %s13
    %p234 = scmp.lt.s32.totalorder %s13, 3
    %p235 = pnand %p233, %p234
    %p236 = pneg %p235
    // Predicated region
    $region9: #{rnn_forward.2} parent=5 // pred_check
      _
    $region10: #{rnn_forward.2} parent=5 // pred_check_branch
      %238 = sbr.rel (%p235) target = $region12
    $region11: #{rnn_forward.2} parent=5 // pred_region
      %s239 = ssub.s32 %s13, 1
    $region12: #{rnn_forward.2} parent=5 // pred_fallthru
      _
    %p240 = scmp.lt.s32.totalorder %s13, 2
    // Predicated region
    $region13: #{rnn_forward.2} parent=5 // pred_check
      %p241 = pneg %p240
    $region14: #{rnn_forward.2} parent=5 // pred_check_branch
      %243 = sbr.rel (%p241) target = $region16
    $region15: #{rnn_forward.2} parent=5 // pred_region
      // Predicated region
      $region17: #{rnn_forward.2} parent=15 // pred_check
        %p244 = pneg %p53
      $region18: #{rnn_forward.2} parent=15 // pred_check_branch
        %246 = sbr.rel (%p244) target = $region20
      $region19: #{rnn_forward.2} parent=15 // pred_region
        %s247 = smul.u32 %s21, 2
        %s248 = ssub.s32 0, %s247
        %s249 = smul.u32 %s20, %s248
        %s250 = sadd.s32 %s21, %s249
        %s251 = smul.u32 2, %s250
        %p252 = scmp.lt.s32.totalorder %s251, 1
        %s253 = scalar_select %p252, %s251, 1
        %s254 = smul.addr %s253, 4
        %s255 = scalar_lea.vmem %s0, %s254
        %s256 = smul.u32 %s21, 2
        %s257 = ssub.s32 0, %s256
        %s258 = smul.u32 %s20, %s257
        %s259 = sadd.s32 %s21, %s258
        %s260 = smul.u32 2, %s259
      $region20: #{rnn_forward.2} parent=15 // pred_fallthru
        _
      // Predicated region
      $region21: #{rnn_forward.2} parent=15 // pred_check
        %p261 = pneg %p79
      $region22: #{rnn_forward.2} parent=15 // pred_check_branch
        %263 = sbr.rel (%p261) target = $region24
      $region23: #{rnn_forward.2} parent=15 // pred_region
        %p264 = scmp.lt.s32.totalorder %s20, 1
        %s265 = scalar_select %p264, %s20, 1
        %s266 = smul.addr %s265, 4
        %s267 = smul.addr %s266, 4
        %s268 = scalar_lea.vmem %s1, %s267
      $region24: #{rnn_forward.2} parent=15 // pred_fallthru
        _
      // Predicated region
      $region25: #{rnn_forward.2} parent=15 // pred_check
        %p269 = pneg %p105
      $region26: #{rnn_forward.2} parent=15 // pred_check_branch
        %271 = sbr.rel (%p269) target = $region28
      $region27: #{rnn_forward.2} parent=15 // pred_region
        %p272 = scmp.lt.s32.totalorder %s20, 1
        %s273 = scalar_select %p272, %s20, 1
        %s274 = smul.addr %s273, 2
        %s275 = smul.addr %s274, 4
        %s276 = scalar_lea.vmem %s2, %s275
      $region28: #{rnn_forward.2} parent=15 // pred_fallthru
        _
      // Predicated region
      $region29: #{rnn_forward.2} parent=15 // pred_check
        %p277 = pneg %p131
      $region30: #{rnn_forward.2} parent=15 // pred_check_branch
        %279 = sbr.rel (%p277) target = $region32
      $region31: #{rnn_forward.2} parent=15 // pred_region
        %p280 = scmp.lt.s32.totalorder %s20, 1
        %s281 = scalar_select %p280, %s20, 1
        %s282 = scalar_lea.vmem %s3, %s281
      $region32: #{rnn_forward.2} parent=15 // pred_fallthru
        _
    $region16: #{rnn_forward.2} parent=5 // pred_fallthru
      _
    %p283 = scmp.le.s32.totalorder 1, %s13
    %p284 = scmp.lt.s32.totalorder %s13, 3
    %p285 = pnand %p283, %p284
    %p286 = pneg %p285
    // Predicated region
    $region33: #{rnn_forward.2} parent=5 // pred_check
      _
    $region34: #{rnn_forward.2} parent=5 // pred_check_branch
      %288 = sbr.rel (%p285) target = $region36
    $region35: #{rnn_forward.2} parent=5 // pred_region
      %s289 = ssub.s32 %s13, 1
      %s290 = smul.u32 %s23, 2
      %s291 = ssub.s32 0, %s290
      %s292 = smul.u32 %s22, %s291
      %s293 = sadd.s32 %s23, %s292
      %s294 = smul.u32 2, %s293
      %p295 = scmp.lt.s32.totalorder %s294, 1
      %s296 = scalar_select %p295, %s294, 1
      %s297 = smul.addr %s296, 4
      %s298 = scalar_lea.vmem %s0, %s297
      %p299 = pneg %p59
      %p300 = pneg %p56
      %p301 = scmp.lt.s32.totalorder %s22, 1
      %s302 = scalar_select %p301, %s22, 1
      %s303 = smul.addr %s302, 4
      %s304 = smul.addr %s303, 4
      %s305 = scalar_lea.vmem %s1, %s304
      %p306 = pneg %p85
      %p307 = pneg %p82
      %p308 = scmp.lt.s32.totalorder %s22, 1
      %s309 = scalar_select %p308, %s22, 1
      %s310 = smul.addr %s309, 2
      %s311 = smul.addr %s310, 4
      %s312 = scalar_lea.vmem %s2, %s311
      %p313 = pneg %p111
      %p314 = pneg %p108
      %p315 = scmp.lt.s32.totalorder %s22, 1
      %s316 = scalar_select %p315, %s22, 1
      %s317 = scalar_lea.vmem %s3, %s316
      %p318 = pneg %p137
      %p319 = pneg %p134
      %p320 = pneg %p173
      %p321 = pneg %p170
      %s322 = smul.u32 %s23, 2
      %s323 = ssub.s32 0, %s322
      %s324 = smul.u32 %s22, %s323
      %s325 = sadd.s32 %s23, %s324
      %s326 = smul.u32 8, %s325
      %p327 = scmp.lt.s32.totalorder %s22, 1
      %s328 = scalar_select %p327, %s22, 1
      %p329 = scmp.lt.s32.totalorder %s326, 7
      %s330 = scalar_select %p329, %s326, 7
      %s331 = smul.addr %s328, 8
      %s332 = sadd.s32 %s330, %s331
      %s333 = scalar_lea.vmem %s4, %s332
      %p334 = pneg %p199
      %p335 = pneg %p196
      %p336 = scmp.lt.s32.totalorder %s22, 1
      %s337 = scalar_select %p336, %s22, 1
      %s338 = smul.addr %s337, 2
      %s339 = scalar_lea.vmem %s5, %s338
      %p340 = pneg %p225
      %p341 = pneg %p222
      %p342 = scmp.lt.s32.totalorder %s22, 1
      %s343 = scalar_select %p342, %s22, 1
      %s344 = smul.addr %s343, 2
      %s345 = scalar_lea.vmem %s6, %s344
      %s346 = smul.u32 %s23, 2
      %s347 = ssub.s32 0, %s346
      %s348 = smul.u32 %s22, %s347
      %s349 = sadd.s32 %s23, %s348
      %s350 = smul.u32 2, %s349
      %p351 = scmp.lt.s32.totalorder %s350, 1
      %s352 = scalar_select %p351, %s350, 1
      %s353 = smul.addr %s352, 4
      %s354 = scalar_lea.vmem %s0, %s353
      %s355 = smul.u32 %s23, 2
      %s356 = ssub.s32 0, %s355
      %s357 = smul.u32 %s22, %s356
      %s358 = sadd.s32 %s23, %s357
      %s359 = smul.u32 2, %s358
      %p360 = scmp.lt.s32.totalorder %s22, 1
      %s361 = scalar_select %p360, %s22, 1
      %s362 = smul.addr %s361, 4
      %s363 = smul.addr %s362, 4
      %s364 = scalar_lea.vmem %s1, %s363
      %p365 = scmp.lt.s32.totalorder %s22, 1
      %s366 = scalar_select %p365, %s22, 1
      %s367 = smul.addr %s366, 2
      %s368 = smul.addr %s367, 4
      %s369 = scalar_lea.vmem %s2, %s368
      %p370 = scmp.lt.s32.totalorder %s22, 1
      %s371 = scalar_select %p370, %s22, 1
      %s372 = scalar_lea.vmem %s3, %s371
      %s373 = smul.u32 %s23, 2
      %s374 = ssub.s32 0, %s373
      %s375 = smul.u32 %s22, %s374
      %s376 = sadd.s32 %s23, %s375
      %s377 = smul.u32 8, %s376
      %p378 = scmp.lt.s32.totalorder %s22, 1
      %s379 = scalar_select %p378, %s22, 1
      %p380 = scmp.lt.s32.totalorder %s377, 7
      %s381 = scalar_select %p380, %s377, 7
      %s382 = smul.addr %s379, 8
      %s383 = sadd.s32 %s381, %s382
      %s384 = scalar_lea.vmem %s4, %s383
      %s385 = smul.u32 %s23, 2
      %s386 = ssub.s32 0, %s385
      %s387 = smul.u32 %s22, %s386
      %s388 = sadd.s32 %s23, %s387
      %s389 = smul.u32 8, %s388
      %p390 = scmp.lt.s32.totalorder %s22, 1
      %s391 = scalar_select %p390, %s22, 1
      %s392 = smul.addr %s391, 2
      %s393 = scalar_lea.vmem %s5, %s392
      %p394 = scmp.lt.s32.totalorder %s22, 1
      %s395 = scalar_select %p394, %s22, 1
      %s396 = smul.addr %s395, 2
      %s397 = scalar_lea.vmem %s6, %s396
      %p399 = scmp.eq.s32.totalorder %s23, 0
      // Predicated region
      $region37: #{rnn_forward.2} parent=35 // pred_check
        %p400 = pneg %p399
      $region38: #{rnn_forward.2} parent=35 // pred_check_branch
        %402 = sbr.rel (%p400) target = $region40
      $region39: #{rnn_forward.2} parent=35 // pred_region
        %vm403 = vcmask 123904
        %404 = vst.msk [vmem:[#allocation2] sm:$0x3] %vm403, 0.0
        %405 = vst.msk [vmem:[#allocation3] sm:$0x3] %vm403, 0.0
      $region40: #{rnn_forward.2} parent=35 // pred_fallthru
        _
      %v406 = vld [vmem:[%s354] sm:$0xf]
      %v407 = vld [vmem:[%s354 + $0x4] sm:$0xf]
      %v408 = vld [vmem:[%s364] sm:$0xf]
      %v409 = vld [vmem:[%s364 + $0x4] sm:$0xf]
      %v410 = vld [vmem:[%s364 + $0x8] sm:$0xf]
      %v411 = vld [vmem:[%s364 + $0xc] sm:$0xf]
      %v412 = vld [vmem:[%s372] sm:$0x1]
      %v414 = vlaneseq
      %v415 = vshrl.u32 %v414, 7
      %v416 = vsub.s32 0, %v415
      %v417 = vrot.slane %v412, %v416
      %v421 = vunpack.c.l.b16 %v406
      %v422 = vunpack.c.l.b16 %v407
      %v423 = vpack.c.b16 %v422, %v421
      %v428 = vunpack.c.l.b16 %v408
      %v429 = vunpack.c.l.b16 %v409
      %v430 = vunpack.c.l.b16 %v410
      %v431 = vunpack.c.l.b16 %v411
      %v432 = vpack.c.b16 %v429, %v428
      %v433 = vpack.c.b16 %v431, %v430
      %vm436 = vcmask 261120
      %v438 = vsel %vm436, %v423, 0
      %440 = vmatprep.subr.bf16.mxu0 0
      %441 = vmatpush1.bf16.msra.mxu0 %v432
      %442 = vmatprep.subr.bf16.mxu0 0
      %443 = vmatpush1.bf16.msra.mxu0 %v433
      %444 = vmatprep.subr.bf16.mxu0 0
      %445 = vmatpush1.bf16.msra.mxu0 0
      %446 = vmatprep.subr.bf16.mxu0 0
      %447 = vmatpush1.bf16.msra.mxu0 0
      %448 = vmatprep.subr.bf16.mxu0 0
      %449 = vmatpush1.bf16.msra.mxu0 0
      %450 = vmatprep.subr.bf16.mxu0 0
      %451 = vmatpush1.bf16.msra.mxu0 0
      %452 = vmatprep.subr.bf16.mxu0 0
      %453 = vmatpush1.bf16.msra.mxu0 0
      %454 = vmatprep.subr.bf16.mxu0 0
      %455 = vmatpush1.bf16.msra.mxu0 0
      %456 = vmatprep.subr.bf16.mxu0 0
      %457 = vmatpush1.bf16.msra.mxu0 0
      %458 = vmatprep.subr.bf16.mxu0 0
      %459 = vmatpush1.bf16.msra.mxu0 0
      %460 = vmatprep.subr.bf16.mxu0 0
      %461 = vmatpush1.bf16.msra.mxu0 0
      %462 = vmatprep.subr.bf16.mxu0 0
      %463 = vmatpush1.bf16.msra.mxu0 0
      %464 = vmatprep.subr.bf16.mxu0 0
      %465 = vmatpush1.bf16.msra.mxu0 0
      %466 = vmatprep.subr.bf16.mxu0 0
      %467 = vmatpush1.bf16.msra.mxu0 0
      %468 = vmatprep.subr.bf16.mxu0 0
      %469 = vmatpush1.bf16.msra.mxu0 0
      %470 = vmatprep.subr.bf16.mxu0 0
      %471 = vmatpush1.bf16.msra.mxu0 0
      %472 = vmatprep.mubr.bf16.mxu0 0
      %473 = vmatmul.mubr.bf16.gmra.mrb[0].mxu0 %v438
      %v474 = vpop.f32.mrb[0].mxu0
      %v475 = vadd.f32 %v417, %v474
      %v476 = vpop.f32.mrb[0].mxu0
      %v477 = vpop.f32.mrb[0].mxu0
      %v478 = vadd.f32 %v417, %v477
      %v479 = vpop.f32.mrb[0].mxu0
      %480 = vdwg.mxu0
      %vm481 = vcmask 517120
      %482 = vst.msk [vmem:[#allocation4] sm:$0x3] %vm481, %v475
      %s483 = scalar_lea.vmem [#allocation4], 2
      %vm484 = vcmask 519170
      %485 = vst.msk [vmem:[%s483 - $0x2] sm:$0xc] %vm484, %v475
      %s486 = scalar_lea.vmem [#allocation4], 4
      %vm487 = vcmask 521220
      %488 = vst.msk [vmem:[%s486 - $0x4] sm:$0x30] %vm487, %v475
      %s489 = scalar_lea.vmem [#allocation4], 6
      %vm490 = vcmask 523270
      %491 = vst.msk [vmem:[%s489 - $0x6] sm:$0xc0] %vm490, %v475
      %s492 = scalar_lea.vmem [#allocation4], 8
      %493 = vst.msk [vmem:[%s492] sm:$0x3] %vm481, %v478
      %s494 = scalar_lea.vmem [#allocation4], 10
      %495 = vst.msk [vmem:[%s494 - $0x2] sm:$0xc] %vm484, %v478
      %s496 = scalar_lea.vmem [#allocation4], 12
      %497 = vst.msk [vmem:[%s496 - $0x4] sm:$0x30] %vm487, %v478
      %s498 = scalar_lea.vmem [#allocation4], 14
      %499 = vst.msk [vmem:[%s498 - $0x6] sm:$0xc0] %vm490, %v478
      %v500 = vld [vmem:[%s369] sm:$0xf]
      %v501 = vld [vmem:[%s369 + $0x4] sm:$0xf]
      %v502 = vld [vmem:[#allocation2] sm:$0x3]
      %v503 = vld [vmem:[#allocation3] sm:$0x3]
      %s504 = smul.u32 %s22, 7
      %s505 = smul.u32 %s504, 2
      %s506 = scalar_lea.vmem [#allocation4], %s505
      %v507 = vld [vmem:[%s506] sm:$0x3]
      %v508 = vpack.c.bf16 %v502, %v502
      %v511 = vunpack.c.l.b16 %v500
      %v512 = vunpack.c.l.b16 %v501
      %v513 = vpack.c.b16 %v512, %v511
      %vm515 = vcmask 130048
      %v517 = vsel %vm515, %v508, 0
      %519 = vmatprep.subr.bf16.mxu0 0
      %520 = vmatpush1.bf16.msra.mxu0 %v513
      %521 = vmatprep.subr.bf16.mxu0 0
      %522 = vmatpush1.bf16.msra.mxu0 0
      %523 = vmatprep.subr.bf16.mxu0 0
      %524 = vmatpush1.bf16.msra.mxu0 0
      %525 = vmatprep.subr.bf16.mxu0 0
      %526 = vmatpush1.bf16.msra.mxu0 0
      %527 = vmatprep.subr.bf16.mxu0 0
      %528 = vmatpush1.bf16.msra.mxu0 0
      %529 = vmatprep.subr.bf16.mxu0 0
      %530 = vmatpush1.bf16.msra.mxu0 0
      %531 = vmatprep.subr.bf16.mxu0 0
      %532 = vmatpush1.bf16.msra.mxu0 0
      %533 = vmatprep.subr.bf16.mxu0 0
      %534 = vmatpush1.bf16.msra.mxu0 0
      %535 = vmatprep.subr.bf16.mxu0 0
      %536 = vmatpush1.bf16.msra.mxu0 0
      %537 = vmatprep.subr.bf16.mxu0 0
      %538 = vmatpush1.bf16.msra.mxu0 0
      %539 = vmatprep.subr.bf16.mxu0 0
      %540 = vmatpush1.bf16.msra.mxu0 0
      %541 = vmatprep.subr.bf16.mxu0 0
      %542 = vmatpush1.bf16.msra.mxu0 0
      %543 = vmatprep.subr.bf16.mxu0 0
      %544 = vmatpush1.bf16.msra.mxu0 0
      %545 = vmatprep.subr.bf16.mxu0 0
      %546 = vmatpush1.bf16.msra.mxu0 0
      %547 = vmatprep.subr.bf16.mxu0 0
      %548 = vmatpush1.bf16.msra.mxu0 0
      %549 = vmatprep.subr.bf16.mxu0 0
      %550 = vmatpush1.bf16.msra.mxu0 0
      %551 = vmatprep.mubr.bf16.mxu0 0
      %552 = vmatmul.mubr.bf16.gmra.mrb[0].mxu0 %v517
      %v553 = vpop.f32.mrb[0].mxu0
      %v554 = vadd.f32 0.0, %v553
      %v555 = vpop.f32.mrb[0].mxu0
      %v556 = vpop.f32.mrb[0].mxu0
      %v557 = vpop.f32.mrb[0].mxu0
      %558 = vdwg.mxu0
      %v559 = vadd.f32 %v507, %v554
      %v560 = vsub.f32 0.0, %v559
      %v561 = vmul.f32 %v560, 1.442695
      %v562 = vpow.pop %v561
      %v563 = vadd.f32 %v562, 1.0
      %v564 = vrcp.pop %v563
      %v565 = vtanh.pop %v559
      %567 = vrot.lane.b32.xlu0 %v503, 16
      %v568 = vpop.permute.xlu0 %567
      %v570 = vmul.f32 %v564, %v568
      %572 = vrot.lane.b32.xlu0 %v565, 96
      %v573 = vpop.permute.xlu0 %572
      %v575 = vmul.f32 %v564, %v573
      %577 = vrot.lane.b32.xlu0 %v575, 16
      %v578 = vpop.permute.xlu0 %577
      %v580 = vadd.f32 %v570, %v578
      %v581 = vtanh.pop %v580
      %583 = vrot.lane.b32.xlu0 %v581, 32
      %v584 = vpop.permute.xlu0 %583
      %v586 = vmul.f32 %v564, %v584
      %v587 = vpack.c.bf16 %v586, %v586
      %v590 = vunpack.c.l.s4 1966171168
      %v591 = vunpack.c.0.s8 %v590
      %v592 = vlaneseq
      %v593 = vshrl.u32 %v592, 7
      %v594 = vsub.s32 %v591, %v593
      %v595 = vrot.slane %v587, %v594
      %v597 = vunpack.c.l.s4 1966171168
      %v598 = vunpack.c.0.s8 %v597
      %v599 = vlaneseq
      %v600 = vshrl.u32 %v599, 7
      %v601 = vsub.s32 %v598, %v600
      %v602 = vrot.slane %v595, %v601
      %603 = vrot.lane.b32.xlu0 %v602, 80
      %v604 = vpop.permute.xlu0 %603
      %s606 = scalar_lea.vmem %s384, %s504
      %vm607 = vcmask 122880
      %608 = vst.msk [vmem:[%s606] sm:$0x1] %vm607, %v604
      %s609 = smul.u32 %s22, 5
      %s610 = sadd.s32 %s609, 1
      %s611 = smul.u32 %s610, 2
      %s612 = scalar_lea.vmem [#allocation4], %s611
      %v613 = vld [vmem:[%s612] sm:$0x3]
      %614 = vrot.lane.b32.xlu0 %v587, 80
      %v615 = vpop.permute.xlu0 %614
      %v617 = vsel %vm515, %v615, 0
      %619 = vmatprep.subr.bf16.mxu0 0
      %620 = vmatpush1.bf16.msra.mxu0 %v513
      %621 = vmatprep.subr.bf16.mxu0 0
      %622 = vmatpush1.bf16.msra.mxu0 0
      %623 = vmatprep.subr.bf16.mxu0 0
      %624 = vmatpush1.bf16.msra.mxu0 0
      %625 = vmatprep.subr.bf16.mxu0 0
      %626 = vmatpush1.bf16.msra.mxu0 0
      %627 = vmatprep.subr.bf16.mxu0 0
      %628 = vmatpush1.bf16.msra.mxu0 0
      %629 = vmatprep.subr.bf16.mxu0 0
      %630 = vmatpush1.bf16.msra.mxu0 0
      %631 = vmatprep.subr.bf16.mxu0 0
      %632 = vmatpush1.bf16.msra.mxu0 0
      %633 = vmatprep.subr.bf16.mxu0 0
      %634 = vmatpush1.bf16.msra.mxu0 0
      %635 = vmatprep.subr.bf16.mxu0 0
      %636 = vmatpush1.bf16.msra.mxu0 0
      %637 = vmatprep.subr.bf16.mxu0 0
      %638 = vmatpush1.bf16.msra.mxu0 0
      %639 = vmatprep.subr.bf16.mxu0 0
      %640 = vmatpush1.bf16.msra.mxu0 0
      %641 = vmatprep.subr.bf16.mxu0 0
      %642 = vmatpush1.bf16.msra.mxu0 0
      %643 = vmatprep.subr.bf16.mxu0 0
      %644 = vmatpush1.bf16.msra.mxu0 0
      %645 = vmatprep.subr.bf16.mxu0 0
      %646 = vmatpush1.bf16.msra.mxu0 0
      %647 = vmatprep.subr.bf16.mxu0 0
      %648 = vmatpush1.bf16.msra.mxu0 0
      %649 = vmatprep.subr.bf16.mxu0 0
      %650 = vmatpush1.bf16.msra.mxu0 0
      %651 = vmatprep.mubr.bf16.mxu0 0
      %652 = vmatmul.mubr.bf16.gmra.mrb[0].mxu0 %v617
      %v653 = vpop.f32.mrb[0].mxu0
      %v654 = vadd.f32 0.0, %v653
      %v655 = vpop.f32.mrb[0].mxu0
      %v656 = vpop.f32.mrb[0].mxu0
      %v657 = vpop.f32.mrb[0].mxu0
      %658 = vdwg.mxu0
      %v659 = vadd.f32 %v613, %v654
      %v660 = vsub.f32 0.0, %v659
      %v661 = vmul.f32 %v660, 1.442695
      %v662 = vpow.pop %v661
      %v663 = vadd.f32 %v662, 1.0
      %v664 = vrcp.pop %v663
      %v665 = vtanh.pop %v659
      %v666 = vmul.f32 %v664, %v580
      %668 = vrot.lane.b32.xlu0 %v665, 96
      %v669 = vpop.permute.xlu0 %668
      %v671 = vmul.f32 %v664, %v669
      %673 = vrot.lane.b32.xlu0 %v671, 16
      %v674 = vpop.permute.xlu0 %673
      %v676 = vadd.f32 %v666, %v674
      %v677 = vtanh.pop %v676
      %679 = vrot.lane.b32.xlu0 %v677, 32
      %v680 = vpop.permute.xlu0 %679
      %v682 = vmul.f32 %v664, %v680
      %v683 = vpack.c.bf16 %v682, %v682
      %v686 = vunpack.c.l.s4 1966171168
      %v687 = vunpack.c.0.s8 %v686
      %v688 = vlaneseq
      %v689 = vshrl.u32 %v688, 7
      %v690 = vsub.s32 %v687, %v689
      %v691 = vrot.slane %v683, %v690
      %v693 = vunpack.c.l.s4 1966171168
      %v694 = vunpack.c.0.s8 %v693
      %v695 = vlaneseq
      %v696 = vshrl.u32 %v695, 7
      %v697 = vsub.s32 %v694, %v696
      %v698 = vrot.slane %v691, %v697
      %699 = vrot.lane.b32.xlu0 %v698, 80
      %v700 = vpop.permute.xlu0 %699
      %s702 = scalar_lea.vmem %s384, %s610
      %703 = vst.msk [vmem:[%s702] sm:$0x1] %vm607, %v700
      %s704 = smul.u32 %s22, 3
      %s705 = sadd.s32 %s704, 2
      %s706 = smul.u32 %s705, 2
      %s707 = scalar_lea.vmem [#allocation4], %s706
      %v708 = vld [vmem:[%s707] sm:$0x3]
      %709 = vrot.lane.b32.xlu0 %v683, 80
      %v710 = vpop.permute.xlu0 %709
      %v712 = vsel %vm515, %v710, 0
      %714 = vmatprep.subr.bf16.mxu0 0
      %715 = vmatpush1.bf16.msra.mxu0 %v513
      %716 = vmatprep.subr.bf16.mxu0 0
      %717 = vmatpush1.bf16.msra.mxu0 0
      %718 = vmatprep.subr.bf16.mxu0 0
      %719 = vmatpush1.bf16.msra.mxu0 0
      %720 = vmatprep.subr.bf16.mxu0 0
      %721 = vmatpush1.bf16.msra.mxu0 0
      %722 = vmatprep.subr.bf16.mxu0 0
      %723 = vmatpush1.bf16.msra.mxu0 0
      %724 = vmatprep.subr.bf16.mxu0 0
      %725 = vmatpush1.bf16.msra.mxu0 0
      %726 = vmatprep.subr.bf16.mxu0 0
      %727 = vmatpush1.bf16.msra.mxu0 0
      %728 = vmatprep.subr.bf16.mxu0 0
      %729 = vmatpush1.bf16.msra.mxu0 0
      %730 = vmatprep.subr.bf16.mxu0 0
      %731 = vmatpush1.bf16.msra.mxu0 0
      %732 = vmatprep.subr.bf16.mxu0 0
      %733 = vmatpush1.bf16.msra.mxu0 0
      %734 = vmatprep.subr.bf16.mxu0 0
      %735 = vmatpush1.bf16.msra.mxu0 0
      %736 = vmatprep.subr.bf16.mxu0 0
      %737 = vmatpush1.bf16.msra.mxu0 0
      %738 = vmatprep.subr.bf16.mxu0 0
      %739 = vmatpush1.bf16.msra.mxu0 0
      %740 = vmatprep.subr.bf16.mxu0 0
      %741 = vmatpush1.bf16.msra.mxu0 0
      %742 = vmatprep.subr.bf16.mxu0 0
      %743 = vmatpush1.bf16.msra.mxu0 0
      %744 = vmatprep.subr.bf16.mxu0 0
      %745 = vmatpush1.bf16.msra.mxu0 0
      %746 = vmatprep.mubr.bf16.mxu0 0
      %747 = vmatmul.mubr.bf16.gmra.mrb[0].mxu0 %v712
      %v748 = vpop.f32.mrb[0].mxu0
      %v749 = vadd.f32 0.0, %v748
      %v750 = vpop.f32.mrb[0].mxu0
      %v751 = vpop.f32.mrb[0].mxu0
      %v752 = vpop.f32.mrb[0].mxu0
      %753 = vdwg.mxu0
      %v754 = vadd.f32 %v708, %v749
      %v755 = vsub.f32 0.0, %v754
      %v756 = vmul.f32 %v755, 1.442695
      %v757 = vpow.pop %v756
      %v758 = vadd.f32 %v757, 1.0
      %v759 = vrcp.pop %v758
      %v760 = vtanh.pop %v754
      %v761 = vmul.f32 %v759, %v676
      %763 = vrot.lane.b32.xlu0 %v760, 96
      %v764 = vpop.permute.xlu0 %763
      %v766 = vmul.f32 %v759, %v764
      %768 = vrot.lane.b32.xlu0 %v766, 16
      %v769 = vpop.permute.xlu0 %768
      %v771 = vadd.f32 %v761, %v769
      %v772 = vtanh.pop %v771
      %774 = vrot.lane.b32.xlu0 %v772, 32
      %v775 = vpop.permute.xlu0 %774
      %v777 = vmul.f32 %v759, %v775
      %v778 = vpack.c.bf16 %v777, %v777
      %v781 = vunpack.c.l.s4 1966171168
      %v782 = vunpack.c.0.s8 %v781
      %v783 = vlaneseq
      %v784 = vshrl.u32 %v783, 7
      %v785 = vsub.s32 %v782, %v784
      %v786 = vrot.slane %v778, %v785
      %v788 = vunpack.c.l.s4 1966171168
      %v789 = vunpack.c.0.s8 %v788
      %v790 = vlaneseq
      %v791 = vshrl.u32 %v790, 7
      %v792 = vsub.s32 %v789, %v791
      %v793 = vrot.slane %v786, %v792
      %794 = vrot.lane.b32.xlu0 %v793, 80
      %v795 = vpop.permute.xlu0 %794
      %s797 = scalar_lea.vmem %s384, %s705
      %798 = vst.msk [vmem:[%s797] sm:$0x1] %vm607, %v795
      %s799 = sadd.s32 %s22, 3
      %s800 = smul.u32 %s799, 2
      %s801 = scalar_lea.vmem [#allocation4], %s800
      %v802 = vld [vmem:[%s801] sm:$0x3]
      %803 = vrot.lane.b32.xlu0 %v778, 80
      %v804 = vpop.permute.xlu0 %803
      %v806 = vsel %vm515, %v804, 0
      %808 = vmatprep.subr.bf16.mxu0 0
      %809 = vmatpush1.bf16.msra.mxu0 %v513
      %810 = vmatprep.subr.bf16.mxu0 0
      %811 = vmatpush1.bf16.msra.mxu0 0
      %812 = vmatprep.subr.bf16.mxu0 0
      %813 = vmatpush1.bf16.msra.mxu0 0
      %814 = vmatprep.subr.bf16.mxu0 0
      %815 = vmatpush1.bf16.msra.mxu0 0
      %816 = vmatprep.subr.bf16.mxu0 0
      %817 = vmatpush1.bf16.msra.mxu0 0
      %818 = vmatprep.subr.bf16.mxu0 0
      %819 = vmatpush1.bf16.msra.mxu0 0
      %820 = vmatprep.subr.bf16.mxu0 0
      %821 = vmatpush1.bf16.msra.mxu0 0
      %822 = vmatprep.subr.bf16.mxu0 0
      %823 = vmatpush1.bf16.msra.mxu0 0
      %824 = vmatprep.subr.bf16.mxu0 0
      %825 = vmatpush1.bf16.msra.mxu0 0
      %826 = vmatprep.subr.bf16.mxu0 0
      %827 = vmatpush1.bf16.msra.mxu0 0
      %828 = vmatprep.subr.bf16.mxu0 0
      %829 = vmatpush1.bf16.msra.mxu0 0
      %830 = vmatprep.subr.bf16.mxu0 0
      %831 = vmatpush1.bf16.msra.mxu0 0
      %832 = vmatprep.subr.bf16.mxu0 0
      %833 = vmatpush1.bf16.msra.mxu0 0
      %834 = vmatprep.subr.bf16.mxu0 0
      %835 = vmatpush1.bf16.msra.mxu0 0
      %836 = vmatprep.subr.bf16.mxu0 0
      %837 = vmatpush1.bf16.msra.mxu0 0
      %838 = vmatprep.subr.bf16.mxu0 0
      %839 = vmatpush1.bf16.msra.mxu0 0
      %840 = vmatprep.mubr.bf16.mxu0 0
      %841 = vmatmul.mubr.bf16.gmra.mrb[0].mxu0 %v806
      %v842 = vpop.f32.mrb[0].mxu0
      %v843 = vadd.f32 0.0, %v842
      %v844 = vpop.f32.mrb[0].mxu0
      %v845 = vpop.f32.mrb[0].mxu0
      %v846 = vpop.f32.mrb[0].mxu0
      %847 = vdwg.mxu0
      %v848 = vadd.f32 %v802, %v843
      %v849 = vsub.f32 0.0, %v848
      %v850 = vmul.f32 %v849, 1.442695
      %v851 = vpow.pop %v850
      %v852 = vadd.f32 %v851, 1.0
      %v853 = vrcp.pop %v852
      %v854 = vtanh.pop %v848
      %v855 = vmul.f32 %v853, %v771
      %857 = vrot.lane.b32.xlu0 %v854, 96
      %v858 = vpop.permute.xlu0 %857
      %v860 = vmul.f32 %v853, %v858
      %862 = vrot.lane.b32.xlu0 %v860, 16
      %v863 = vpop.permute.xlu0 %862
      %v865 = vadd.f32 %v855, %v863
      %v866 = vtanh.pop %v865
      %868 = vrot.lane.b32.xlu0 %v866, 32
      %v869 = vpop.permute.xlu0 %868
      %v871 = vmul.f32 %v853, %v869
      %v872 = vpack.c.bf16 %v871, %v871
      %v875 = vunpack.c.l.s4 1966171168
      %v876 = vunpack.c.0.s8 %v875
      %v877 = vlaneseq
      %v878 = vshrl.u32 %v877, 7
      %v879 = vsub.s32 %v876, %v878
      %v880 = vrot.slane %v872, %v879
      %v882 = vunpack.c.l.s4 1966171168
      %v883 = vunpack.c.0.s8 %v882
      %v884 = vlaneseq
      %v885 = vshrl.u32 %v884, 7
      %v886 = vsub.s32 %v883, %v885
      %v887 = vrot.slane %v880, %v886
      %888 = vrot.lane.b32.xlu0 %v887, 80
      %v889 = vpop.permute.xlu0 %888
      %s891 = scalar_lea.vmem %s384, %s799
      %892 = vst.msk [vmem:[%s891] sm:$0x1] %vm607, %v889
      %s893 = ssub.s32 4, %s22
      %s894 = smul.u32 %s893, 2
      %s895 = scalar_lea.vmem [#allocation4], %s894
      %v896 = vld [vmem:[%s895] sm:$0x3]
      %897 = vrot.lane.b32.xlu0 %v872, 80
      %v898 = vpop.permute.xlu0 %897
      %v900 = vsel %vm515, %v898, 0
      %902 = vmatprep.subr.bf16.mxu0 0
      %903 = vmatpush1.bf16.msra.mxu0 %v513
      %904 = vmatprep.subr.bf16.mxu0 0
      %905 = vmatpush1.bf16.msra.mxu0 0
      %906 = vmatprep.subr.bf16.mxu0 0
      %907 = vmatpush1.bf16.msra.mxu0 0
      %908 = vmatprep.subr.bf16.mxu0 0
      %909 = vmatpush1.bf16.msra.mxu0 0
      %910 = vmatprep.subr.bf16.mxu0 0
      %911 = vmatpush1.bf16.msra.mxu0 0
      %912 = vmatprep.subr.bf16.mxu0 0
      %913 = vmatpush1.bf16.msra.mxu0 0
      %914 = vmatprep.subr.bf16.mxu0 0
      %915 = vmatpush1.bf16.msra.mxu0 0
      %916 = vmatprep.subr.bf16.mxu0 0
      %917 = vmatpush1.bf16.msra.mxu0 0
      %918 = vmatprep.subr.bf16.mxu0 0
      %919 = vmatpush1.bf16.msra.mxu0 0
      %920 = vmatprep.subr.bf16.mxu0 0
      %921 = vmatpush1.bf16.msra.mxu0 0
      %922 = vmatprep.subr.bf16.mxu0 0
      %923 = vmatpush1.bf16.msra.mxu0 0
      %924 = vmatprep.subr.bf16.mxu0 0
      %925 = vmatpush1.bf16.msra.mxu0 0
      %926 = vmatprep.subr.bf16.mxu0 0
      %927 = vmatpush1.bf16.msra.mxu0 0
      %928 = vmatprep.subr.bf16.mxu0 0
      %929 = vmatpush1.bf16.msra.mxu0 0
      %930 = vmatprep.subr.bf16.mxu0 0
      %931 = vmatpush1.bf16.msra.mxu0 0
      %932 = vmatprep.subr.bf16.mxu0 0
      %933 = vmatpush1.bf16.msra.mxu0 0
      %934 = vmatprep.mubr.bf16.mxu0 0
      %935 = vmatmul.mubr.bf16.gmra.mrb[0].mxu0 %v900
      %v936 = vpop.f32.mrb[0].mxu0
      %v937 = vadd.f32 0.0, %v936
      %v938 = vpop.f32.mrb[0].mxu0
      %v939 = vpop.f32.mrb[0].mxu0
      %v940 = vpop.f32.mrb[0].mxu0
      %941 = vdwg.mxu0
      %v942 = vadd.f32 %v896, %v937
      %v943 = vsub.f32 0.0, %v942
      %v944 = vmul.f32 %v943, 1.442695
      %v945 = vpow.pop %v944
      %v946 = vadd.f32 %v945, 1.0
      %v947 = vrcp.pop %v946
      %v948 = vtanh.pop %v942
      %v949 = vmul.f32 %v947, %v865
      %951 = vrot.lane.b32.xlu0 %v948, 96
      %v952 = vpop.permute.xlu0 %951
      %v954 = vmul.f32 %v947, %v952
      %956 = vrot.lane.b32.xlu0 %v954, 16
      %v957 = vpop.permute.xlu0 %956
      %v959 = vadd.f32 %v949, %v957
      %v960 = vtanh.pop %v959
      %962 = vrot.lane.b32.xlu0 %v960, 32
      %v963 = vpop.permute.xlu0 %962
      %v965 = vmul.f32 %v947, %v963
      %v966 = vpack.c.bf16 %v965, %v965
      %v969 = vunpack.c.l.s4 1966171168
      %v970 = vunpack.c.0.s8 %v969
      %v971 = vlaneseq
      %v972 = vshrl.u32 %v971, 7
      %v973 = vsub.s32 %v970, %v972
      %v974 = vrot.slane %v966, %v973
      %v976 = vunpack.c.l.s4 1966171168
      %v977 = vunpack.c.0.s8 %v976
      %v978 = vlaneseq
      %v979 = vshrl.u32 %v978, 7
      %v980 = vsub.s32 %v977, %v979
      %v981 = vrot.slane %v974, %v980
      %982 = vrot.lane.b32.xlu0 %v981, 80
      %v983 = vpop.permute.xlu0 %982
      %s985 = scalar_lea.vmem %s384, %s893
      %986 = vst.msk [vmem:[%s985] sm:$0x1] %vm607, %v983
      %s987 = smul.u32 %s22, 4294967293
      %s988 = sadd.s32 %s987, 5
      %s989 = smul.u32 %s988, 2
      %s990 = scalar_lea.vmem [#allocation4], %s989
      %v991 = vld [vmem:[%s990] sm:$0x3]
      %992 = vrot.lane.b32.xlu0 %v966, 80
      %v993 = vpop.permute.xlu0 %992
      %v995 = vsel %vm515, %v993, 0
      %997 = vmatprep.subr.bf16.mxu0 0
      %998 = vmatpush1.bf16.msra.mxu0 %v513
      %999 = vmatprep.subr.bf16.mxu0 0
      %1000 = vmatpush1.bf16.msra.mxu0 0
      %1001 = vmatprep.subr.bf16.mxu0 0
      %1002 = vmatpush1.bf16.msra.mxu0 0
      %1003 = vmatprep.subr.bf16.mxu0 0
      %1004 = vmatpush1.bf16.msra.mxu0 0
      %1005 = vmatprep.subr.bf16.mxu0 0
      %1006 = vmatpush1.bf16.msra.mxu0 0
      %1007 = vmatprep.subr.bf16.mxu0 0
      %1008 = vmatpush1.bf16.msra.mxu0 0
      %1009 = vmatprep.subr.bf16.mxu0 0
      %1010 = vmatpush1.bf16.msra.mxu0 0
      %1011 = vmatprep.subr.bf16.mxu0 0
      %1012 = vmatpush1.bf16.msra.mxu0 0
      %1013 = vmatprep.subr.bf16.mxu0 0
      %1014 = vmatpush1.bf16.msra.mxu0 0
      %1015 = vmatprep.subr.bf16.mxu0 0
      %1016 = vmatpush1.bf16.msra.mxu0 0
      %1017 = vmatprep.subr.bf16.mxu0 0
      %1018 = vmatpush1.bf16.msra.mxu0 0
      %1019 = vmatprep.subr.bf16.mxu0 0
      %1020 = vmatpush1.bf16.msra.mxu0 0
      %1021 = vmatprep.subr.bf16.mxu0 0
      %1022 = vmatpush1.bf16.msra.mxu0 0
      %1023 = vmatprep.subr.bf16.mxu0 0
      %1024 = vmatpush1.bf16.msra.mxu0 0
      %1025 = vmatprep.subr.bf16.mxu0 0
      %1026 = vmatpush1.bf16.msra.mxu0 0
      %1027 = vmatprep.subr.bf16.mxu0 0
      %1028 = vmatpush1.bf16.msra.mxu0 0
      %1029 = vmatprep.mubr.bf16.mxu0 0
      %1030 = vmatmul.mubr.bf16.gmra.mrb[0].mxu0 %v995
      %v1031 = vpop.f32.mrb[0].mxu0
      %v1032 = vadd.f32 0.0, %v1031
      %v1033 = vpop.f32.mrb[0].mxu0
      %v1034 = vpop.f32.mrb[0].mxu0
      %v1035 = vpop.f32.mrb[0].mxu0
      %1036 = vdwg.mxu0
      %v1037 = vadd.f32 %v991, %v1032
      %v1038 = vsub.f32 0.0, %v1037
      %v1039 = vmul.f32 %v1038, 1.442695
      %v1040 = vpow.pop %v1039
      %v1041 = vadd.f32 %v1040, 1.0
      %v1042 = vrcp.pop %v1041
      %v1043 = vtanh.pop %v1037
      %v1044 = vmul.f32 %v1042, %v959
      %1046 = vrot.lane.b32.xlu0 %v1043, 96
      %v1047 = vpop.permute.xlu0 %1046
      %v1049 = vmul.f32 %v1042, %v1047
      %1051 = vrot.lane.b32.xlu0 %v1049, 16
      %v1052 = vpop.permute.xlu0 %1051
      %v1054 = vadd.f32 %v1044, %v1052
      %v1055 = vtanh.pop %v1054
      %1057 = vrot.lane.b32.xlu0 %v1055, 32
      %v1058 = vpop.permute.xlu0 %1057
      %v1060 = vmul.f32 %v1042, %v1058
      %v1061 = vpack.c.bf16 %v1060, %v1060
      %v1064 = vunpack.c.l.s4 1966171168
      %v1065 = vunpack.c.0.s8 %v1064
      %v1066 = vlaneseq
      %v1067 = vshrl.u32 %v1066, 7
      %v1068 = vsub.s32 %v1065, %v1067
      %v1069 = vrot.slane %v1061, %v1068
      %v1071 = vunpack.c.l.s4 1966171168
      %v1072 = vunpack.c.0.s8 %v1071
      %v1073 = vlaneseq
      %v1074 = vshrl.u32 %v1073, 7
      %v1075 = vsub.s32 %v1072, %v1074
      %v1076 = vrot.slane %v1069, %v1075
      %1077 = vrot.lane.b32.xlu0 %v1076, 80
      %v1078 = vpop.permute.xlu0 %1077
      %s1080 = scalar_lea.vmem %s384, %s988
      %1081 = vst.msk [vmem:[%s1080] sm:$0x1] %vm607, %v1078
      %s1082 = smul.u32 %s22, 4294967291
      %s1083 = sadd.s32 %s1082, 6
      %s1084 = smul.u32 %s1083, 2
      %s1085 = scalar_lea.vmem [#allocation4], %s1084
      %v1086 = vld [vmem:[%s1085] sm:$0x3]
      %1087 = vrot.lane.b32.xlu0 %v1061, 80
      %v1088 = vpop.permute.xlu0 %1087
      %v1090 = vsel %vm515, %v1088, 0
      %1092 = vmatprep.subr.bf16.mxu0 0
      %1093 = vmatpush1.bf16.msra.mxu0 %v513
      %1094 = vmatprep.subr.bf16.mxu0 0
      %1095 = vmatpush1.bf16.msra.mxu0 0
      %1096 = vmatprep.subr.bf16.mxu0 0
      %1097 = vmatpush1.bf16.msra.mxu0 0
      %1098 = vmatprep.subr.bf16.mxu0 0
      %1099 = vmatpush1.bf16.msra.mxu0 0
      %1100 = vmatprep.subr.bf16.mxu0 0
      %1101 = vmatpush1.bf16.msra.mxu0 0
      %1102 = vmatprep.subr.bf16.mxu0 0
      %1103 = vmatpush1.bf16.msra.mxu0 0
      %1104 = vmatprep.subr.bf16.mxu0 0
      %1105 = vmatpush1.bf16.msra.mxu0 0
      %1106 = vmatprep.subr.bf16.mxu0 0
      %1107 = vmatpush1.bf16.msra.mxu0 0
      %1108 = vmatprep.subr.bf16.mxu0 0
      %1109 = vmatpush1.bf16.msra.mxu0 0
      %1110 = vmatprep.subr.bf16.mxu0 0
      %1111 = vmatpush1.bf16.msra.mxu0 0
      %1112 = vmatprep.subr.bf16.mxu0 0
      %1113 = vmatpush1.bf16.msra.mxu0 0
      %1114 = vmatprep.subr.bf16.mxu0 0
      %1115 = vmatpush1.bf16.msra.mxu0 0
      %1116 = vmatprep.subr.bf16.mxu0 0
      %1117 = vmatpush1.bf16.msra.mxu0 0
      %1118 = vmatprep.subr.bf16.mxu0 0
      %1119 = vmatpush1.bf16.msra.mxu0 0
      %1120 = vmatprep.subr.bf16.mxu0 0
      %1121 = vmatpush1.bf16.msra.mxu0 0
      %1122 = vmatprep.subr.bf16.mxu0 0
      %1123 = vmatpush1.bf16.msra.mxu0 0
      %1124 = vmatprep.mubr.bf16.mxu0 0
      %1125 = vmatmul.mubr.bf16.gmra.mrb[0].mxu0 %v1090
      %v1126 = vpop.f32.mrb[0].mxu0
      %v1127 = vadd.f32 0.0, %v1126
      %v1128 = vpop.f32.mrb[0].mxu0
      %v1129 = vpop.f32.mrb[0].mxu0
      %v1130 = vpop.f32.mrb[0].mxu0
      %1131 = vdwg.mxu0
      %v1132 = vadd.f32 %v1086, %v1127
      %v1133 = vsub.f32 0.0, %v1132
      %v1134 = vmul.f32 %v1133, 1.442695
      %v1135 = vpow.pop %v1134
      %v1136 = vadd.f32 %v1135, 1.0
      %v1137 = vrcp.pop %v1136
      %v1138 = vtanh.pop %v1132
      %v1139 = vmul.f32 %v1137, %v1054
      %1141 = vrot.lane.b32.xlu0 %v1138, 96
      %v1142 = vpop.permute.xlu0 %1141
      %v1144 = vmul.f32 %v1137, %v1142
      %1146 = vrot.lane.b32.xlu0 %v1144, 16
      %v1147 = vpop.permute.xlu0 %1146
      %v1149 = vadd.f32 %v1139, %v1147
      %v1150 = vtanh.pop %v1149
      %1152 = vrot.lane.b32.xlu0 %v1150, 32
      %v1153 = vpop.permute.xlu0 %1152
      %v1155 = vmul.f32 %v1137, %v1153
      %v1156 = vpack.c.bf16 %v1155, %v1155
      %v1159 = vunpack.c.l.s4 1966171168
      %v1160 = vunpack.c.0.s8 %v1159
      %v1161 = vlaneseq
      %v1162 = vshrl.u32 %v1161, 7
      %v1163 = vsub.s32 %v1160, %v1162
      %v1164 = vrot.slane %v1156, %v1163
      %v1166 = vunpack.c.l.s4 1966171168
      %v1167 = vunpack.c.0.s8 %v1166
      %v1168 = vlaneseq
      %v1169 = vshrl.u32 %v1168, 7
      %v1170 = vsub.s32 %v1167, %v1169
      %v1171 = vrot.slane %v1164, %v1170
      %1172 = vrot.lane.b32.xlu0 %v1171, 80
      %v1173 = vpop.permute.xlu0 %1172
      %s1175 = scalar_lea.vmem %s384, %s1083
      %1176 = vst.msk [vmem:[%s1175] sm:$0x1] %vm607, %v1173
      %s1177 = smul.u32 %s22, 4294967289
      %s1178 = sadd.s32 %s1177, 7
      %s1179 = smul.u32 %s1178, 2
      %s1180 = scalar_lea.vmem [#allocation4], %s1179
      %v1181 = vld [vmem:[%s1180] sm:$0x3]
      %1182 = vrot.lane.b32.xlu0 %v1156, 80
      %v1183 = vpop.permute.xlu0 %1182
      %v1185 = vsel %vm515, %v1183, 0
      %1187 = vmatprep.subr.bf16.mxu0 0
      %1188 = vmatpush1.bf16.msra.mxu0 %v513
      %1189 = vmatprep.subr.bf16.mxu0 0
      %1190 = vmatpush1.bf16.msra.mxu0 0
      %1191 = vmatprep.subr.bf16.mxu0 0
      %1192 = vmatpush1.bf16.msra.mxu0 0
      %1193 = vmatprep.subr.bf16.mxu0 0
      %1194 = vmatpush1.bf16.msra.mxu0 0
      %1195 = vmatprep.subr.bf16.mxu0 0
      %1196 = vmatpush1.bf16.msra.mxu0 0
      %1197 = vmatprep.subr.bf16.mxu0 0
      %1198 = vmatpush1.bf16.msra.mxu0 0
      %1199 = vmatprep.subr.bf16.mxu0 0
      %1200 = vmatpush1.bf16.msra.mxu0 0
      %1201 = vmatprep.subr.bf16.mxu0 0
      %1202 = vmatpush1.bf16.msra.mxu0 0
      %1203 = vmatprep.subr.bf16.mxu0 0
      %1204 = vmatpush1.bf16.msra.mxu0 0
      %1205 = vmatprep.subr.bf16.mxu0 0
      %1206 = vmatpush1.bf16.msra.mxu0 0
      %1207 = vmatprep.subr.bf16.mxu0 0
      %1208 = vmatpush1.bf16.msra.mxu0 0
      %1209 = vmatprep.subr.bf16.mxu0 0
      %1210 = vmatpush1.bf16.msra.mxu0 0
      %1211 = vmatprep.subr.bf16.mxu0 0
      %1212 = vmatpush1.bf16.msra.mxu0 0
      %1213 = vmatprep.subr.bf16.mxu0 0
      %1214 = vmatpush1.bf16.msra.mxu0 0
      %1215 = vmatprep.subr.bf16.mxu0 0
      %1216 = vmatpush1.bf16.msra.mxu0 0
      %1217 = vmatprep.subr.bf16.mxu0 0
      %1218 = vmatpush1.bf16.msra.mxu0 0
      %1219 = vmatprep.mubr.bf16.mxu0 0
      %1220 = vmatmul.mubr.bf16.gmra.mrb[0].mxu0 %v1185
      %v1221 = vpop.f32.mrb[0].mxu0
      %v1222 = vadd.f32 0.0, %v1221
      %v1223 = vpop.f32.mrb[0].mxu0
      %v1224 = vpop.f32.mrb[0].mxu0
      %v1225 = vpop.f32.mrb[0].mxu0
      %1226 = vdwg.mxu0
      %v1227 = vadd.f32 %v1181, %v1222
      %v1228 = vsub.f32 0.0, %v1227
      %v1229 = vmul.f32 %v1228, 1.442695
      %v1230 = vpow.pop %v1229
      %v1231 = vadd.f32 %v1230, 1.0
      %v1232 = vrcp.pop %v1231
      %v1233 = vtanh.pop %v1227
      %v1234 = vmul.f32 %v1232, %v1149
      %1236 = vrot.lane.b32.xlu0 %v1233, 96
      %v1237 = vpop.permute.xlu0 %1236
      %v1239 = vmul.f32 %v1232, %v1237
      %1241 = vrot.lane.b32.xlu0 %v1239, 16
      %v1242 = vpop.permute.xlu0 %1241
      %v1244 = vadd.f32 %v1234, %v1242
      %v1245 = vtanh.pop %v1244
      %1247 = vrot.lane.b32.xlu0 %v1245, 32
      %v1248 = vpop.permute.xlu0 %1247
      %v1250 = vmul.f32 %v1232, %v1248
      %v1251 = vpack.c.bf16 %v1250, %v1250
      %v1254 = vunpack.c.l.s4 1966171168
      %v1255 = vunpack.c.0.s8 %v1254
      %v1256 = vlaneseq
      %v1257 = vshrl.u32 %v1256, 7
      %v1258 = vsub.s32 %v1255, %v1257
      %v1259 = vrot.slane %v1251, %v1258
      %v1261 = vunpack.c.l.s4 1966171168
      %v1262 = vunpack.c.0.s8 %v1261
      %v1263 = vlaneseq
      %v1264 = vshrl.u32 %v1263, 7
      %v1265 = vsub.s32 %v1262, %v1264
      %v1266 = vrot.slane %v1259, %v1265
      %1267 = vrot.lane.b32.xlu0 %v1266, 80
      %v1268 = vpop.permute.xlu0 %1267
      %s1270 = scalar_lea.vmem %s384, %s1178
      %1271 = vst.msk [vmem:[%s1270] sm:$0x1] %vm607, %v1268
      %1273 = vrot.lane.b32.xlu0 %v1250, 80
      %v1274 = vpop.permute.xlu0 %1273
      %vm1276 = vcmask 123904
      %1277 = vst.msk [vmem:[#allocation2] sm:$0x3] %vm1276, %v1274
      %1279 = vrot.lane.b32.xlu0 %v1244, 112
      %v1280 = vpop.permute.xlu0 %1279
      %1282 = vst.msk [vmem:[#allocation3] sm:$0x3] %vm1276, %v1280
      // Predicated region
      $region41: #{rnn_forward.2} parent=35 // pred_check
        %p1283 = pneg %p399
      $region42: #{rnn_forward.2} parent=35 // pred_check_branch
        %1285 = sbr.rel (%p1283) target = $region44
      $region43: #{rnn_forward.2} parent=35 // pred_region
        %1286 = vst.msk [vmem:[%s393] sm:$0x3] %vm1276, %v1274
        %1287 = vst.msk [vmem:[%s397] sm:$0x3] %vm1276, %v1280
      $region44: #{rnn_forward.2} parent=35 // pred_fallthru
        _
      %s1288 = smul.u32 %s23, 2
      %s1289 = ssub.s32 0, %s1288
      %s1290 = smul.u32 %s22, %s1289
      %s1291 = sadd.s32 %s23, %s1290
      %s1292 = smul.u32 8, %s1291
      %p1293 = scmp.lt.s32.totalorder %s22, 1
      %s1294 = scalar_select %p1293, %s22, 1
      %p1295 = scmp.lt.s32.totalorder %s1292, 7
      %s1296 = scalar_select %p1295, %s1292, 7
      %s1297 = smul.addr %s1294, 8
      %s1298 = sadd.s32 %s1296, %s1297
      %s1299 = scalar_lea.vmem %s4, %s1298
      %p1300 = scmp.lt.s32.totalorder %s22, 1
      %s1301 = scalar_select %p1300, %s22, 1
      %s1302 = smul.addr %s1301, 2
      %s1303 = scalar_lea.vmem %s5, %s1302
      %p1304 = scmp.lt.s32.totalorder %s22, 1
      %s1305 = scalar_select %p1304, %s22, 1
      %s1306 = smul.addr %s1305, 2
      %s1307 = scalar_lea.vmem %s6, %s1306
      // Predicated region
      $region45: #{rnn_forward.2} parent=35 // pred_check
        %p1308 = pneg %p170
      $region46: #{rnn_forward.2} parent=35 // pred_check_branch
        %1310 = sbr.rel (%p1308) target = $region48
      $region47: #{rnn_forward.2} parent=35 // pred_region
        %s1311 = smul.u32 %s23, 2
        %s1312 = ssub.s32 0, %s1311
        %s1313 = smul.u32 %s22, %s1312
        %s1314 = sadd.s32 %s23, %s1313
        %s1315 = smul.u32 8, %s1314
      $region48: #{rnn_forward.2} parent=35 // pred_fallthru
        _
      // Predicated region
      $region49: #{rnn_forward.2} parent=35 // pred_check
        %p1316 = pneg %p196
      $region50: #{rnn_forward.2} parent=35 // pred_check_branch
        %1318 = sbr.rel (%p1316) target = $region52
      $region51: #{rnn_forward.2} parent=35 // pred_region
        _
      $region52: #{rnn_forward.2} parent=35 // pred_fallthru
        _
      // Predicated region
      $region53: #{rnn_forward.2} parent=35 // pred_check
        %p1319 = pneg %p222
      $region54: #{rnn_forward.2} parent=35 // pred_check_branch
        %1321 = sbr.rel (%p1319) target = $region56
      $region55: #{rnn_forward.2} parent=35 // pred_region
        _
      $region56: #{rnn_forward.2} parent=35 // pred_fallthru
        _
    $region36: #{rnn_forward.2} parent=5 // pred_fallthru
      _
    %p1322 = scmp.le.s32.totalorder 2, %s13
    // Predicated region
    $region57: #{rnn_forward.2} parent=5 // pred_check
      %p1323 = pneg %p1322
    $region58: #{rnn_forward.2} parent=5 // pred_check_branch
      %1325 = sbr.rel (%p1323) target = $region60
    $region59: #{rnn_forward.2} parent=5 // pred_region
      %s1326 = ssub.s32 %s13, 2
      // Predicated region
      $region61: #{rnn_forward.2} parent=59 // pred_check
        %p1327 = pneg %p176
      $region62: #{rnn_forward.2} parent=59 // pred_check_branch
        %1329 = sbr.rel (%p1327) target = $region64
      $region63: #{rnn_forward.2} parent=59 // pred_region
        %s1330 = smul.u32 %s25, 2
        %s1331 = ssub.s32 0, %s1330
        %s1332 = smul.u32 %s24, %s1331
        %s1333 = sadd.s32 %s25, %s1332
        %s1334 = smul.u32 8, %s1333
        %p1335 = scmp.lt.s32.totalorder %s24, 1
        %s1336 = scalar_select %p1335, %s24, 1
        %p1337 = scmp.lt.s32.totalorder %s1334, 7
        %s1338 = scalar_select %p1337, %s1334, 7
        %s1339 = smul.addr %s1336, 8
        %s1340 = sadd.s32 %s1338, %s1339
        %s1341 = scalar_lea.vmem %s4, %s1340
      $region64: #{rnn_forward.2} parent=59 // pred_fallthru
        _
      // Predicated region
      $region65: #{rnn_forward.2} parent=59 // pred_check
        %p1342 = pneg %p202
      $region66: #{rnn_forward.2} parent=59 // pred_check_branch
        %1344 = sbr.rel (%p1342) target = $region68
      $region67: #{rnn_forward.2} parent=59 // pred_region
        %p1345 = scmp.lt.s32.totalorder %s24, 1
        %s1346 = scalar_select %p1345, %s24, 1
        %s1347 = smul.addr %s1346, 2
        %s1348 = scalar_lea.vmem %s5, %s1347
      $region68: #{rnn_forward.2} parent=59 // pred_fallthru
        _
      // Predicated region
      $region69: #{rnn_forward.2} parent=59 // pred_check
        %p1349 = pneg %p228
      $region70: #{rnn_forward.2} parent=59 // pred_check_branch
        %1351 = sbr.rel (%p1349) target = $region72
      $region71: #{rnn_forward.2} parent=59 // pred_region
        %p1352 = scmp.lt.s32.totalorder %s24, 1
        %s1353 = scalar_select %p1352, %s24, 1
        %s1354 = smul.addr %s1353, 2
        %s1355 = scalar_lea.vmem %s6, %s1354
      $region72: #{rnn_forward.2} parent=59 // pred_fallthru
        _
    $region60: #{rnn_forward.2} parent=5 // pred_fallthru
      _
  $region6: #{rnn_forward.2} parent=0 // loop_footer
    %s17 = sadd.s32 1, %s13
  $region7: #{rnn_forward.2} parent=0 // loop_footer_branch
    %12 = sbr.rel target = $region3
  $region8: #{rnn_forward.2} parent=0 // loop_exit
    _

</llo_original>
